<compile_context>
chip_gen: v7x
topology: tpu7x:2x2x1
jax: 0.10.0
libtpu: 0.0.40
codegen_flags: <defaults>
</compile_context>

<pallas_src>
import functools
import math

import numpy as np

import jax
import jax.numpy as jnp
from jax.experimental import pallas as pl
from jax.experimental.pallas import tpu as pltpu  # noqa: F401  (TPU backend)


# ---------------------------------------------------------------------------
# In-kernel helpers (traced inside the Pallas kernel body)
# ---------------------------------------------------------------------------
def _layer_norm(t, g, b, eps=1e-5):
    # t: (N, E) f32, g/b: (1, E) f32.  var = E[x^2] - mu^2 keeps the two
    # cross-lane reductions independent.
    mu = jnp.mean(t, axis=-1, keepdims=True)
    ms = jnp.mean(t * t, axis=-1, keepdims=True)
    var = ms - mu * mu
    return (t - mu) * jax.lax.rsqrt(var + eps) * g + b


def _softmax_rows(s):
    # s: (..., Lk) f32; reciprocal of the denominator goes to the EUP.
    m = jnp.max(s, axis=-1, keepdims=True)
    p = jnp.exp(s - m)
    denom = jnp.sum(p, axis=-1, keepdims=True)
    return p * pl.reciprocal(denom, approx=True)


def _attention(q2, k2, v2, bias, num_heads, wo, bo):
    """Head-batched attention over all batch rows at once.

    q2:  (Nq, E) f32  query rows (batch-major flattening)
    k2/v2: (Nk, E) f32 key/value rows
    bias: (Nq, Nk) f32 additive same-batch mask (0 or -1e30)
    wo:  (E, E) bf16, bo: (1, E) f32
    """
    nq, e = q2.shape
    dh = e // num_heads
    scale = 1.0 / math.sqrt(dh)

    # Gather heads onto a leading batch axis, then ONE score einsum, ONE
    # softmax and ONE PV einsum batched over heads (instead of 2*H tiny
    # matmuls + H softmaxes).  bf16 only at the MXU boundary.
    def split_heads(t2):
        return jnp.stack(
            [t2[:, h * dh:(h + 1) * dh] for h in range(num_heads)], axis=0)

    qh = split_heads(q2).astype(jnp.bfloat16)          # (H, Nq, Dh)
    kh = split_heads(k2).astype(jnp.bfloat16)          # (H, Nk, Dh)
    vh = split_heads(v2).astype(jnp.bfloat16)          # (H, Nk, Dh)

    s = jnp.einsum('hqd,hkd->hqk', qh, kh,
                   preferred_element_type=jnp.float32) * scale   # (H, Nq, Nk)
    s = s + bias[None]                                 # mask cross-batch pairs
    p = _softmax_rows(s).astype(jnp.bfloat16)
    o = jnp.einsum('hqk,hkd->hqd', p, vh,
                   preferred_element_type=jnp.float32)           # (H, Nq, Dh)

    o2 = jnp.concatenate([o[h] for h in range(num_heads)], axis=-1)  # (Nq, E)
    return (jnp.dot(o2.astype(jnp.bfloat16), wo,
                    preferred_element_type=jnp.float32) + bo)


# ---------------------------------------------------------------------------
# Fused Pallas kernel: pos add + all decoder layers + output linear
# ---------------------------------------------------------------------------
def fused_decoder_kernel(num_layers, num_heads, B, S, M,
                         x_ref, mem_ref, pos_ref, sbias_ref, cbias_ref,
                         sa_win_ref, sa_bin_ref, sa_wo_ref, sa_bo_ref,
                         ca_wq_ref, ca_bq_ref, ca_wkv_ref, ca_bkv_ref,
                         ca_wo_ref, ca_bo_ref,
                         ln1g_ref, ln1b_ref, ln2g_ref, ln2b_ref,
                         ln3g_ref, ln3b_ref,
                         ffw1_ref, ffb1_ref, ffw2_ref, ffb2_ref,
                         wout_ref, bout_ref,
                         out_ref):
    E = x_ref.shape[-1]

    # positional embedding add + flatten batch into rows
    x = (x_ref[...] + pos_ref[...][None]).reshape(B * S, E)     # (B*S, E) f32
    mem = mem_ref[...].reshape(B * M, E)                        # (B*M, E) f32
    sbias = sbias_ref[...]                                      # (B*S, B*S)
    cbias = cbias_ref[...]                                      # (B*S, B*M)

    # Cross-attention K/V for ALL layers, hoisted out of the layer loop:
    # one (B*M, E) @ (E, 2*L*E) matmul (128-lane-wide output for L=2, E=32).
    kv_all = (jnp.dot(mem.astype(jnp.bfloat16), ca_wkv_ref[...],
                      preferred_element_type=jnp.float32) + ca_bkv_ref[...])

    for l in range(num_layers):                                 # static unroll
        # --- self attention (fused QKV projection) + residual + norm1 ---
        qkv = (jnp.dot(x.astype(jnp.bfloat16), sa_win_ref[l],
                       preferred_element_type=jnp.float32) + sa_bin_ref[l])
        sa = _attention(qkv[:, :E], qkv[:, E:2 * E], qkv[:, 2 * E:],
                        sbias, num_heads, sa_wo_ref[l], sa_bo_ref[l])
        x = _layer_norm(x + sa, ln1g_ref[l], ln1b_ref[l])

        # --- encoder-decoder (cross) attention + residual + norm2 ---
        q = (jnp.dot(x.astype(jnp.bfloat16), ca_wq_ref[l],
                     preferred_element_type=jnp.float32) + ca_bq_ref[l])
        k = kv_all[:, 2 * l * E:(2 * l + 1) * E]
        v = kv_all[:, (2 * l + 1) * E:(2 * l + 2) * E]
        ca = _attention(q, k, v, cbias, num_heads, ca_wo_ref[l], ca_bo_ref[l])
        x = _layer_norm(x + ca, ln2g_ref[l], ln2b_ref[l])

        # --- feed forward (Linear -> ReLU -> Linear) + residual + norm3 ---
        h = jnp.dot(x.astype(jnp.bfloat16), ffw1_ref[l],
                    preferred_element_type=jnp.float32) + ffb1_ref[l]
        h = jnp.maximum(h, 0.0)
        ff = jnp.dot(h.astype(jnp.bfloat16), ffw2_ref[l],
                     preferred_element_type=jnp.float32) + ffb2_ref[l]
        x = _layer_norm(x + ff, ln3g_ref[l], ln3b_ref[l])

    # --- output linear; (B*S, 128) store is lane-dense (128-wide) ---
    out_ref[...] = (jnp.dot(x.astype(jnp.bfloat16), wout_ref[...],
                            preferred_element_type=jnp.float32) + bout_ref[...])


# ---------------------------------------------------------------------------
# One-time parameter packing (OUTSIDE the per-call jitted path)
# ---------------------------------------------------------------------------
def prepare_params(params):
    """Layer-stacking, cross-attn [K|V] column packing across layers, and bf16
    casting of all MXU operands.  Run once at model setup."""
    layers = params["layers"]
    E = params["pos_decoder"].shape[-1]

    def stack(name, dtype):
        return jnp.stack([lp[name] for lp in layers]).astype(dtype)

    return {
        "pos": params["pos_decoder"].astype(jnp.float32),
        # self attention: fused [Q|K|V] projection per layer
        "sa_w_in": stack("sa_w_in", jnp.bfloat16),        # (L, E, 3E)
        "sa_b_in": stack("sa_b_in", jnp.float32),         # (L, 1, 3E)
        "sa_wo": stack("sa_wo", jnp.bfloat16),            # (L, E, E)
        "sa_bo": stack("sa_bo", jnp.float32),             # (L, 1, E)
        # cross attention: Q per layer, [K|V] columns packed across layers
        "ca_wq": jnp.stack([lp["ca_w_in"][:, :E] for lp in layers]
                           ).astype(jnp.bfloat16),        # (L, E, E)
        "ca_bq": jnp.stack([lp["ca_b_in"][:, :E] for lp in layers]
                           ).astype(jnp.float32),         # (L, 1, E)
        "ca_wkv": jnp.concatenate([lp["ca_w_in"][:, E:] for lp in layers],
                                  axis=1).astype(jnp.bfloat16),   # (E, 2*L*E)
        "ca_bkv": jnp.concatenate([lp["ca_b_in"][:, E:] for lp in layers],
                                  axis=1).astype(jnp.float32),    # (1, 2*L*E)
        "ca_wo": stack("ca_wo", jnp.bfloat16),
        "ca_bo": stack("ca_bo", jnp.float32),
        # layer norms
        "ln1_g": stack("ln1_g", jnp.float32), "ln1_b": stack("ln1_b", jnp.float32),
        "ln2_g": stack("ln2_g", jnp.float32), "ln2_b": stack("ln2_b", jnp.float32),
        "ln3_g": stack("ln3_g", jnp.float32), "ln3_b": stack("ln3_b", jnp.float32),
        # feed forward
        "ff_w1": stack("ff_w1", jnp.bfloat16), "ff_b1": stack("ff_b1", jnp.float32),
        "ff_w2": stack("ff_w2", jnp.bfloat16), "ff_b2": stack("ff_b2", jnp.float32),
        # output head
        "w_out": params["w_out"].astype(jnp.bfloat16),
        "b_out": params["b_out"].astype(jnp.float32),
    }


def _same_batch_bias(B, Lq, Lk):
    # Constant built with numpy (folded at trace time): 0 where the query row
    # and key row belong to the same batch element, -1e30 otherwise.
    rq = np.arange(B * Lq)[:, None] // Lq
    rk = np.arange(B * Lk)[None, :] // Lk
    return jnp.asarray(np.where(rq == rk, 0.0, -1e30), dtype=jnp.float32)


# ---------------------------------------------------------------------------
# Wrapper
# ---------------------------------------------------------------------------
def transformer_decoder_forward(x_sbe, mem_mbe, prepared, num_heads):
    """x_sbe: (S, B, E), mem_mbe: (M, B, E) -> (B, 128, S)."""
    S, B, E = x_sbe.shape
    M = mem_mbe.shape[0]
    L = prepared["sa_w_in"].shape[0]
    O = prepared["w_out"].shape[1]

    # layout glue: batch-first for the kernel
    x_bse = jnp.transpose(x_sbe, (1, 0, 2))        # (B, S, E)
    mem_bme = jnp.transpose(mem_mbe, (1, 0, 2))    # (B, M, E)

    sbias = _same_batch_bias(B, S, S)              # (B*S, B*S) constant
    cbias = _same_batch_bias(B, S, M)              # (B*S, B*M) constant

    kernel = functools.partial(fused_decoder_kernel, L, num_heads, B, S, M)
    out2 = pl.pallas_call(
        kernel,
        out_shape=jax.ShapeDtypeStruct((B * S, O), jnp.float32),
    )(x_bse, mem_bme, prepared["pos"], sbias, cbias,
      prepared["sa_w_in"], prepared["sa_b_in"], prepared["sa_wo"], prepared["sa_bo"],
      prepared["ca_wq"], prepared["ca_bq"], prepared["ca_wkv"], prepared["ca_bkv"],
      prepared["ca_wo"], prepared["ca_bo"],
      prepared["ln1_g"], prepared["ln1_b"], prepared["ln2_g"], prepared["ln2_b"],
      prepared["ln3_g"], prepared["ln3_b"],
      prepared["ff_w1"], prepared["ff_b1"], prepared["ff_w2"], prepared["ff_b2"],
      prepared["w_out"], prepared["b_out"])

    return jnp.transpose(out2.reshape(B, S, O), (0, 2, 1))      # (B, 128, S)


# ---------------------------------------------------------------------------
# Pure-JAX reference (f32, for correctness check)
# ---------------------------------------------------------------------------
def _ref_mha(q_in, kv_in, w_in, b_in, wo, bo, H):
    E = q_in.shape[-1]
    Dh = E // H
    q = q_in @ w_in[:, :E] + b_in[0, :E]
    k = kv_in @ w_in[:, E:2 * E] + b_in[0, E:2 * E]
    v = kv_in @ w_in[:, 2 * E:] + b_in[0, 2 * E:]
    Lq, Lk = q.shape[0], k.shape[0]
    q = q.reshape(Lq, H, Dh).transpose(1, 0, 2)
    k = k.reshape(Lk, H, Dh).transpose(1, 0, 2)
    v = v.reshape(Lk, H, Dh).transpose(1, 0, 2)
    s = jnp.einsum("hqd,hkd->hqk", q, k) / math.sqrt(Dh)
    p = jax.nn.softmax(s, axis=-1)
    o = jnp.einsum("hqk,hkd->hqd", p, v)
    o = o.transpose(1, 0, 2).reshape(Lq, E)
    return o @ wo + bo[0]


def _ref_ln(t, g, b, eps=1e-5):
    mu = jnp.mean(t, axis=-1, keepdims=True)
    var = jnp.mean((t - mu) ** 2, axis=-1, keepdims=True)
    return (t - mu) / jnp.sqrt(var + eps) * g[0] + b[0]


def _ref_layer(x, mem, lp, H):
    sa = _ref_mha(x, x, lp["sa_w_in"], lp["sa_b_in"], lp["sa_wo"], lp["sa_bo"], H)
    x = _ref_ln(x + sa, lp["ln1_g"], lp["ln1_b"])
    ca = _ref_mha(x, mem, lp["ca_w_in"], lp["ca_b_in"], lp["ca_wo"], lp["ca_bo"], H)
    x = _ref_ln(x + ca, lp["ln2_g"], lp["ln2_b"])
    h = jax.nn.relu(x @ lp["ff_w1"] + lp["ff_b1"][0])
    ff = h @ lp["ff_w2"] + lp["ff_b2"][0]
    x = _ref_ln(x + ff, lp["ln3_g"], lp["ln3_b"])
    return x


def reference_forward(x_sbe, mem_mbe, params, num_heads):
    x = x_sbe + params["pos_decoder"][:, None, :]
    x = jnp.transpose(x, (1, 0, 2))
    mem = jnp.transpose(mem_mbe, (1, 0, 2))
    for lp in params["layers"]:
        x = jax.vmap(lambda xb, mb: _ref_layer(xb, mb, lp, num_heads))(x, mem)
    out = x @ params["w_out"] + params["b_out"][0]
    return jnp.transpose(out, (0, 2, 1))


# ---------------------------------------------------------------------------
# Deterministic parameter construction
# ---------------------------------------------------------------------------
def init_params(key, num_patches, embed_dim, ff_dim, num_layers, out_dim=128):
    def nrm(k, shape, scale=0.02):
        return (scale * jax.random.normal(k, shape)).astype(jnp.float32)

    keys = jax.random.split(key, 2 + num_layers)
    params = {"pos_decoder": nrm(keys[0], (num_patches, embed_dim))}

    layers = []
    for l in range(num_layers):
        lk = jax.random.split(keys[2 + l], 12)
        layers.append({
            "sa_w_in": nrm(lk[0], (embed_dim, 3 * embed_dim)),
            "sa_b_in": nrm(lk[1], (1, 3 * embed_dim)),
            "sa_wo":   nrm(lk[2], (embed_dim, embed_dim)),
            "sa_bo":   nrm(lk[3], (1, embed_dim)),
            "ca_w_in": nrm(lk[4], (embed_dim, 3 * embed_dim)),
            "ca_b_in": nrm(lk[5], (1, 3 * embed_dim)),
            "ca_wo":   nrm(lk[6], (embed_dim, embed_dim)),
            "ca_bo":   nrm(lk[7], (1, embed_dim)),
            "ln1_g": jnp.ones((1, embed_dim), jnp.float32),
            "ln1_b": jnp.zeros((1, embed_dim), jnp.float32),
            "ln2_g": jnp.ones((1, embed_dim), jnp.float32),
            "ln2_b": jnp.zeros((1, embed_dim), jnp.float32),
            "ln3_g": jnp.ones((1, embed_dim), jnp.float32),
            "ln3_b": jnp.zeros((1, embed_dim), jnp.float32),
            "ff_w1": nrm(lk[8], (embed_dim, ff_dim)),
            "ff_b1": nrm(lk[9], (1, ff_dim)),
            "ff_w2": nrm(lk[10], (ff_dim, embed_dim)),
            "ff_b2": nrm(lk[11], (1, embed_dim)),
        })
    params["layers"] = layers

    ok = jax.random.split(keys[1], 2)
    params["w_out"] = nrm(ok[0], (embed_dim, out_dim))
    params["b_out"] = nrm(ok[1], (1, out_dim))
    return params


# ---------------------------------------------------------------------------
if __name__ == "__main__":
    # Small, module-consistent shapes.
    NUM_PATCHES = 8      # S (decoder sequence length == num_patches)
    BATCH = 2            # B
    EMBED_DIM = 32       # E
    NUM_HEADS = 4
    FF_DIM = 64
    NUM_LAYERS = 2
    MEM_LEN = 16         # M (encoder memory length)

    key = jax.random.PRNGKey(0)
    kx, km, kp = jax.random.split(key, 3)
    x = jax.random.normal(kx, (NUM_PATCHES, BATCH, EMBED_DIM), dtype=jnp.float32)
    memory = jax.random.normal(km, (MEM_LEN, BATCH, EMBED_DIM), dtype=jnp.float32)
    params = init_params(kp, NUM_PATCHES, EMBED_DIM, FF_DIM, NUM_LAYERS)

    # One-time weight packing / bf16 casting, outside the per-call path.
    prepared = prepare_params(params)

    fwd = jax.jit(transformer_decoder_forward, static_argnums=(3,))
    out = jax.block_until_ready(fwd(x, memory, prepared, NUM_HEADS))

    assert out.shape == (BATCH, 128, NUM_PATCHES), out.shape
    ref = jax.block_until_ready(reference_forward(x, memory, params, NUM_HEADS))
    max_err = float(jnp.max(jnp.abs(out - ref)))
    # bf16 MXU operands + approx reciprocal -> allow a slightly looser bound.
    assert max_err < 2e-2, f"mismatch vs reference: {max_err}"

    print("KERNEL_OK")
</pallas_src>

<mosaic_0001>
module attributes {stable_mosaic.version = 11 : i64} {
  func.func @fused_decoder_kernel(%arg0: memref<2x8x32xf32, #tpu.memory_space<vmem>>, %arg1: memref<2x16x32xf32, #tpu.memory_space<vmem>>, %arg2: memref<8x32xf32, #tpu.memory_space<vmem>>, %arg3: memref<16x16xf32, #tpu.memory_space<vmem>>, %arg4: memref<16x32xf32, #tpu.memory_space<vmem>>, %arg5: memref<2x32x96xbf16, #tpu.memory_space<vmem>>, %arg6: memref<2x1x96xf32, #tpu.memory_space<vmem>>, %arg7: memref<2x32x32xbf16, #tpu.memory_space<vmem>>, %arg8: memref<2x1x32xf32, #tpu.memory_space<vmem>>, %arg9: memref<2x32x32xbf16, #tpu.memory_space<vmem>>, %arg10: memref<2x1x32xf32, #tpu.memory_space<vmem>>, %arg11: memref<32x128xbf16, #tpu.memory_space<vmem>>, %arg12: memref<1x128xf32, #tpu.memory_space<vmem>>, %arg13: memref<2x32x32xbf16, #tpu.memory_space<vmem>>, %arg14: memref<2x1x32xf32, #tpu.memory_space<vmem>>, %arg15: memref<2x1x32xf32, #tpu.memory_space<vmem>>, %arg16: memref<2x1x32xf32, #tpu.memory_space<vmem>>, %arg17: memref<2x1x32xf32, #tpu.memory_space<vmem>>, %arg18: memref<2x1x32xf32, #tpu.memory_space<vmem>>, %arg19: memref<2x1x32xf32, #tpu.memory_space<vmem>>, %arg20: memref<2x1x32xf32, #tpu.memory_space<vmem>>, %arg21: memref<2x32x64xbf16, #tpu.memory_space<vmem>>, %arg22: memref<2x1x64xf32, #tpu.memory_space<vmem>>, %arg23: memref<2x64x32xbf16, #tpu.memory_space<vmem>>, %arg24: memref<2x1x32xf32, #tpu.memory_space<vmem>>, %arg25: memref<32x128xbf16, #tpu.memory_space<vmem>>, %arg26: memref<1x128xf32, #tpu.memory_space<vmem>>, %arg27: memref<16x128xf32, #tpu.memory_space<vmem>>) attributes {dimension_semantics = [], scalar_prefetch = 0 : i64, scratch_operands = 0 : i64, tpu.core_type = #tpu.core_type<tc>} {
    %c0 = arith.constant 0 : index
    %c0_0 = arith.constant 0 : index
    %c0_1 = arith.constant 0 : index
    %0 = vector.load %arg0[%c0, %c0_0, %c0_1] : memref<2x8x32xf32, #tpu.memory_space<vmem>>, vector<2x8x32xf32>
    %c0_2 = arith.constant 0 : index
    %c0_3 = arith.constant 0 : index
    %1 = vector.load %arg2[%c0_2, %c0_3] : memref<8x32xf32, #tpu.memory_space<vmem>>, vector<8x32xf32>
    %2 = vector.shape_cast %1 : vector<8x32xf32> to vector<1x8x32xf32>
    %3 = vector.broadcast %2 : vector<1x8x32xf32> to vector<2x8x32xf32>
    %4 = arith.addf %0, %3 : vector<2x8x32xf32>
    %5 = vector.shape_cast %4 : vector<2x8x32xf32> to vector<16x32xf32>
    %c0_4 = arith.constant 0 : index
    %c0_5 = arith.constant 0 : index
    %c0_6 = arith.constant 0 : index
    %6 = vector.load %arg1[%c0_4, %c0_5, %c0_6] : memref<2x16x32xf32, #tpu.memory_space<vmem>>, vector<2x16x32xf32>
    %7 = vector.shape_cast %6 : vector<2x16x32xf32> to vector<32x32xf32>
    %c0_7 = arith.constant 0 : index
    %c0_8 = arith.constant 0 : index
    %8 = vector.load %arg3[%c0_7, %c0_8] : memref<16x16xf32, #tpu.memory_space<vmem>>, vector<16x16xf32>
    %c0_9 = arith.constant 0 : index
    %c0_10 = arith.constant 0 : index
    %9 = vector.load %arg4[%c0_9, %c0_10] : memref<16x32xf32, #tpu.memory_space<vmem>>, vector<16x32xf32>
    %10 = arith.truncf %7 : vector<32x32xf32> to vector<32x32xbf16>
    %c0_11 = arith.constant 0 : index
    %c0_12 = arith.constant 0 : index
    %11 = vector.load %arg11[%c0_11, %c0_12] : memref<32x128xbf16, #tpu.memory_space<vmem>>, vector<32x128xbf16>
    %cst = arith.constant dense<0.000000e+00> : vector<32x128xf32>
    %12 = tpu.matmul %10, %11, %cst {dimension_numbers = #tpu.dot_dimension_numbers<[1], [0], [0], [1], [0, 0, 1, 1], [], []>} : vector<32x32xbf16>, vector<32x128xbf16>, vector<32x128xf32> -> vector<32x128xf32>
    %c0_13 = arith.constant 0 : index
    %c0_14 = arith.constant 0 : index
    %13 = vector.load %arg12[%c0_13, %c0_14] : memref<1x128xf32, #tpu.memory_space<vmem>>, vector<1x128xf32>
    %14 = vector.broadcast %13 : vector<1x128xf32> to vector<32x128xf32>
    %15 = arith.addf %12, %14 : vector<32x128xf32>
    %16 = arith.truncf %5 : vector<16x32xf32> to vector<16x32xbf16>
    %c0_15 = arith.constant 0 : index
    %c0_16 = arith.constant 0 : index
    %c0_17 = arith.constant 0 : index
    %17 = vector.load %arg5[%c0_15, %c0_16, %c0_17] : memref<2x32x96xbf16, #tpu.memory_space<vmem>>, vector<1x32x96xbf16>
    %18 = vector.shape_cast %17 : vector<1x32x96xbf16> to vector<32x96xbf16>
    %cst_18 = arith.constant dense<0.000000e+00> : vector<16x96xf32>
    %19 = tpu.matmul %16, %18, %cst_18 {dimension_numbers = #tpu.dot_dimension_numbers<[1], [0], [0], [1], [0, 0, 1, 1], [], []>} : vector<16x32xbf16>, vector<32x96xbf16>, vector<16x96xf32> -> vector<16x96xf32>
    %c0_19 = arith.constant 0 : index
    %c0_20 = arith.constant 0 : index
    %c0_21 = arith.constant 0 : index
    %20 = vector.load %arg6[%c0_19, %c0_20, %c0_21] : memref<2x1x96xf32, #tpu.memory_space<vmem>>, vector<1x1x96xf32>
    %21 = vector.shape_cast %20 : vector<1x1x96xf32> to vector<1x96xf32>
    %22 = vector.broadcast %21 : vector<1x96xf32> to vector<16x96xf32>
    %23 = arith.addf %19, %22 : vector<16x96xf32>
    %24 = vector.extract_strided_slice %23 {offsets = [0, 0], sizes = [16, 32], strides = [1, 1]} : vector<16x96xf32> to vector<16x32xf32>
    %25 = vector.extract_strided_slice %23 {offsets = [0, 32], sizes = [16, 32], strides = [1, 1]} : vector<16x96xf32> to vector<16x32xf32>
    %26 = vector.extract_strided_slice %23 {offsets = [0, 64], sizes = [16, 32], strides = [1, 1]} : vector<16x96xf32> to vector<16x32xf32>
    %c0_22 = arith.constant 0 : index
    %c0_23 = arith.constant 0 : index
    %c0_24 = arith.constant 0 : index
    %27 = vector.load %arg7[%c0_22, %c0_23, %c0_24] : memref<2x32x32xbf16, #tpu.memory_space<vmem>>, vector<1x32x32xbf16>
    %28 = vector.shape_cast %27 : vector<1x32x32xbf16> to vector<32x32xbf16>
    %c0_25 = arith.constant 0 : index
    %c0_26 = arith.constant 0 : index
    %c0_27 = arith.constant 0 : index
    %29 = vector.load %arg8[%c0_25, %c0_26, %c0_27] : memref<2x1x32xf32, #tpu.memory_space<vmem>>, vector<1x1x32xf32>
    %30 = vector.shape_cast %29 : vector<1x1x32xf32> to vector<1x32xf32>
    %31 = vector.extract_strided_slice %24 {offsets = [0, 0], sizes = [16, 8], strides = [1, 1]} : vector<16x32xf32> to vector<16x8xf32>
    %32 = vector.extract_strided_slice %24 {offsets = [0, 8], sizes = [16, 8], strides = [1, 1]} : vector<16x32xf32> to vector<16x8xf32>
    %33 = vector.extract_strided_slice %24 {offsets = [0, 16], sizes = [16, 8], strides = [1, 1]} : vector<16x32xf32> to vector<16x8xf32>
    %34 = vector.extract_strided_slice %24 {offsets = [0, 24], sizes = [16, 8], strides = [1, 1]} : vector<16x32xf32> to vector<16x8xf32>
    %35 = vector.shape_cast %31 : vector<16x8xf32> to vector<1x16x8xf32>
    %36 = vector.shape_cast %32 : vector<16x8xf32> to vector<1x16x8xf32>
    %37 = vector.shape_cast %33 : vector<16x8xf32> to vector<1x16x8xf32>
    %38 = vector.shape_cast %34 : vector<16x8xf32> to vector<1x16x8xf32>
    %39 = tpu.concatenate %35, %36, %37, %38 in 0 : vector<1x16x8xf32>, vector<1x16x8xf32>, vector<1x16x8xf32>, vector<1x16x8xf32> -> vector<4x16x8xf32>
    %40 = arith.truncf %39 : vector<4x16x8xf32> to vector<4x16x8xbf16>
    %41 = vector.extract_strided_slice %25 {offsets = [0, 0], sizes = [16, 8], strides = [1, 1]} : vector<16x32xf32> to vector<16x8xf32>
    %42 = vector.extract_strided_slice %25 {offsets = [0, 8], sizes = [16, 8], strides = [1, 1]} : vector<16x32xf32> to vector<16x8xf32>
    %43 = vector.extract_strided_slice %25 {offsets = [0, 16], sizes = [16, 8], strides = [1, 1]} : vector<16x32xf32> to vector<16x8xf32>
    %44 = vector.extract_strided_slice %25 {offsets = [0, 24], sizes = [16, 8], strides = [1, 1]} : vector<16x32xf32> to vector<16x8xf32>
    %45 = vector.shape_cast %41 : vector<16x8xf32> to vector<1x16x8xf32>
    %46 = vector.shape_cast %42 : vector<16x8xf32> to vector<1x16x8xf32>
    %47 = vector.shape_cast %43 : vector<16x8xf32> to vector<1x16x8xf32>
    %48 = vector.shape_cast %44 : vector<16x8xf32> to vector<1x16x8xf32>
    %49 = tpu.concatenate %45, %46, %47, %48 in 0 : vector<1x16x8xf32>, vector<1x16x8xf32>, vector<1x16x8xf32>, vector<1x16x8xf32> -> vector<4x16x8xf32>
    %50 = arith.truncf %49 : vector<4x16x8xf32> to vector<4x16x8xbf16>
    %51 = vector.extract_strided_slice %26 {offsets = [0, 0], sizes = [16, 8], strides = [1, 1]} : vector<16x32xf32> to vector<16x8xf32>
    %52 = vector.extract_strided_slice %26 {offsets = [0, 8], sizes = [16, 8], strides = [1, 1]} : vector<16x32xf32> to vector<16x8xf32>
    %53 = vector.extract_strided_slice %26 {offsets = [0, 16], sizes = [16, 8], strides = [1, 1]} : vector<16x32xf32> to vector<16x8xf32>
    %54 = vector.extract_strided_slice %26 {offsets = [0, 24], sizes = [16, 8], strides = [1, 1]} : vector<16x32xf32> to vector<16x8xf32>
    %55 = vector.shape_cast %51 : vector<16x8xf32> to vector<1x16x8xf32>
    %56 = vector.shape_cast %52 : vector<16x8xf32> to vector<1x16x8xf32>
    %57 = vector.shape_cast %53 : vector<16x8xf32> to vector<1x16x8xf32>
    %58 = vector.shape_cast %54 : vector<16x8xf32> to vector<1x16x8xf32>
    %59 = tpu.concatenate %55, %56, %57, %58 in 0 : vector<1x16x8xf32>, vector<1x16x8xf32>, vector<1x16x8xf32>, vector<1x16x8xf32> -> vector<4x16x8xf32>
    %60 = arith.truncf %59 : vector<4x16x8xf32> to vector<4x16x8xbf16>
    "tpu.trace_start"() <{level = 10 : i32, message = "hqd,hkd->hqk"}> : () -> ()
    %cst_28 = arith.constant dense<0.000000e+00> : vector<4x16x16xf32>
    %61 = tpu.matmul %40, %50, %cst_28 {dimension_numbers = #tpu.dot_dimension_numbers<[2], [2], [1], [1], [0, 0, 0, 1, 1, 1], [0], [0]>} : vector<4x16x8xbf16>, vector<4x16x8xbf16>, vector<4x16x16xf32> -> vector<4x16x16xf32>
    "tpu.trace_stop"() : () -> ()
    %cst_29 = arith.constant 0.353553385 : f32
    %62 = vector.broadcast %cst_29 : f32 to vector<4x16x16xf32>
    %63 = arith.mulf %61, %62 : vector<4x16x16xf32>
    %64 = vector.shape_cast %8 : vector<16x16xf32> to vector<1x16x16xf32>
    %65 = vector.broadcast %64 : vector<1x16x16xf32> to vector<4x16x16xf32>
    %66 = arith.addf %63, %65 : vector<4x16x16xf32>
    %cst_30 = arith.constant dense<0xFF800000> : vector<4x16xf32>
    %67 = vector.multi_reduction <maximumf>, %66, %cst_30 [2] : vector<4x16x16xf32> to vector<4x16xf32>
    %68 = vector.shape_cast %67 : vector<4x16xf32> to vector<4x16x1xf32>
    %69 = vector.broadcast %68 : vector<4x16x1xf32> to vector<4x16x16xf32>
    %70 = arith.subf %66, %69 : vector<4x16x16xf32>
    %71 = math.exp %70 : vector<4x16x16xf32>
    %cst_31 = arith.constant dense<0.000000e+00> : vector<4x16xf32>
    %72 = vector.multi_reduction <add>, %71, %cst_31 [2] : vector<4x16x16xf32> to vector<4x16xf32>
    %73 = vector.shape_cast %72 : vector<4x16xf32> to vector<4x16x1xf32>
    %74 = tpu.reciprocal %73 {approx = true} : vector<4x16x1xf32> -> vector<4x16x1xf32>
    %75 = vector.broadcast %74 : vector<4x16x1xf32> to vector<4x16x16xf32>
    %76 = arith.mulf %71, %75 : vector<4x16x16xf32>
    %77 = arith.truncf %76 : vector<4x16x16xf32> to vector<4x16x16xbf16>
    "tpu.trace_start"() <{level = 10 : i32, message = "hqk,hkd->hqd"}> : () -> ()
    %cst_32 = arith.constant dense<0.000000e+00> : vector<4x16x8xf32>
    %78 = tpu.matmul %77, %60, %cst_32 {dimension_numbers = #tpu.dot_dimension_numbers<[2], [1], [1], [2], [0, 0, 0, 1, 1, 2], [0], [0]>} : vector<4x16x16xbf16>, vector<4x16x8xbf16>, vector<4x16x8xf32> -> vector<4x16x8xf32>
    "tpu.trace_stop"() : () -> ()
    %79 = vector.extract_strided_slice %78 {offsets = [0, 0, 0], sizes = [1, 16, 8], strides = [1, 1, 1]} : vector<4x16x8xf32> to vector<1x16x8xf32>
    %80 = vector.shape_cast %79 : vector<1x16x8xf32> to vector<16x8xf32>
    %81 = vector.extract_strided_slice %78 {offsets = [1, 0, 0], sizes = [1, 16, 8], strides = [1, 1, 1]} : vector<4x16x8xf32> to vector<1x16x8xf32>
    %82 = vector.shape_cast %81 : vector<1x16x8xf32> to vector<16x8xf32>
    %83 = vector.extract_strided_slice %78 {offsets = [2, 0, 0], sizes = [1, 16, 8], strides = [1, 1, 1]} : vector<4x16x8xf32> to vector<1x16x8xf32>
    %84 = vector.shape_cast %83 : vector<1x16x8xf32> to vector<16x8xf32>
    %85 = vector.extract_strided_slice %78 {offsets = [3, 0, 0], sizes = [1, 16, 8], strides = [1, 1, 1]} : vector<4x16x8xf32> to vector<1x16x8xf32>
    %86 = vector.shape_cast %85 : vector<1x16x8xf32> to vector<16x8xf32>
    %87 = tpu.concatenate %80, %82, %84, %86 in 1 : vector<16x8xf32>, vector<16x8xf32>, vector<16x8xf32>, vector<16x8xf32> -> vector<16x32xf32>
    %88 = arith.truncf %87 : vector<16x32xf32> to vector<16x32xbf16>
    %cst_33 = arith.constant dense<0.000000e+00> : vector<16x32xf32>
    %89 = tpu.matmul %88, %28, %cst_33 {dimension_numbers = #tpu.dot_dimension_numbers<[1], [0], [0], [1], [0, 0, 1, 1], [], []>} : vector<16x32xbf16>, vector<32x32xbf16>, vector<16x32xf32> -> vector<16x32xf32>
    %90 = vector.broadcast %30 : vector<1x32xf32> to vector<16x32xf32>
    %91 = arith.addf %89, %90 : vector<16x32xf32>
    %92 = arith.addf %5, %91 : vector<16x32xf32>
    %c0_34 = arith.constant 0 : index
    %c0_35 = arith.constant 0 : index
    %c0_36 = arith.constant 0 : index
    %93 = vector.load %arg15[%c0_34, %c0_35, %c0_36] : memref<2x1x32xf32, #tpu.memory_space<vmem>>, vector<1x1x32xf32>
    %94 = vector.shape_cast %93 : vector<1x1x32xf32> to vector<1x32xf32>
    %c0_37 = arith.constant 0 : index
    %c0_38 = arith.constant 0 : index
    %c0_39 = arith.constant 0 : index
    %95 = vector.load %arg16[%c0_37, %c0_38, %c0_39] : memref<2x1x32xf32, #tpu.memory_space<vmem>>, vector<1x1x32xf32>
    %96 = vector.shape_cast %95 : vector<1x1x32xf32> to vector<1x32xf32>
    %cst_40 = arith.constant dense<0.000000e+00> : vector<16xf32>
    %97 = vector.multi_reduction <add>, %92, %cst_40 [1] : vector<16x32xf32> to vector<16xf32>
    %98 = vector.shape_cast %97 : vector<16xf32> to vector<16x1xf32>
    %cst_41 = arith.constant 3.200000e+01 : f32
    %99 = vector.broadcast %cst_41 : f32 to vector<16x1xf32>
    %100 = arith.divf %98, %99 : vector<16x1xf32>
    %101 = arith.mulf %92, %92 : vector<16x32xf32>
    %cst_42 = arith.constant dense<0.000000e+00> : vector<16xf32>
    %102 = vector.multi_reduction <add>, %101, %cst_42 [1] : vector<16x32xf32> to vector<16xf32>
    %103 = vector.shape_cast %102 : vector<16xf32> to vector<16x1xf32>
    %cst_43 = arith.constant 3.200000e+01 : f32
    %104 = vector.broadcast %cst_43 : f32 to vector<16x1xf32>
    %105 = arith.divf %103, %104 : vector<16x1xf32>
    %106 = arith.mulf %100, %100 : vector<16x1xf32>
    %107 = arith.subf %105, %106 : vector<16x1xf32>
    %108 = vector.broadcast %100 : vector<16x1xf32> to vector<16x32xf32>
    %109 = arith.subf %92, %108 : vector<16x32xf32>
    %cst_44 = arith.constant 9.99999974E-6 : f32
    %110 = vector.broadcast %cst_44 : f32 to vector<16x1xf32>
    %111 = arith.addf %107, %110 : vector<16x1xf32>
    %112 = math.rsqrt %111 : vector<16x1xf32>
    %113 = vector.broadcast %112 : vector<16x1xf32> to vector<16x32xf32>
    %114 = arith.mulf %109, %113 : vector<16x32xf32>
    %115 = vector.broadcast %94 : vector<1x32xf32> to vector<16x32xf32>
    %116 = arith.mulf %114, %115 : vector<16x32xf32>
    %117 = vector.broadcast %96 : vector<1x32xf32> to vector<16x32xf32>
    %118 = arith.addf %116, %117 : vector<16x32xf32>
    %119 = arith.truncf %118 : vector<16x32xf32> to vector<16x32xbf16>
    %c0_45 = arith.constant 0 : index
    %c0_46 = arith.constant 0 : index
    %c0_47 = arith.constant 0 : index
    %120 = vector.load %arg9[%c0_45, %c0_46, %c0_47] : memref<2x32x32xbf16, #tpu.memory_space<vmem>>, vector<1x32x32xbf16>
    %121 = vector.shape_cast %120 : vector<1x32x32xbf16> to vector<32x32xbf16>
    %cst_48 = arith.constant dense<0.000000e+00> : vector<16x32xf32>
    %122 = tpu.matmul %119, %121, %cst_48 {dimension_numbers = #tpu.dot_dimension_numbers<[1], [0], [0], [1], [0, 0, 1, 1], [], []>} : vector<16x32xbf16>, vector<32x32xbf16>, vector<16x32xf32> -> vector<16x32xf32>
    %c0_49 = arith.constant 0 : index
    %c0_50 = arith.constant 0 : index
    %c0_51 = arith.constant 0 : index
    %123 = vector.load %arg10[%c0_49, %c0_50, %c0_51] : memref<2x1x32xf32, #tpu.memory_space<vmem>>, vector<1x1x32xf32>
    %124 = vector.shape_cast %123 : vector<1x1x32xf32> to vector<1x32xf32>
    %125 = vector.broadcast %124 : vector<1x32xf32> to vector<16x32xf32>
    %126 = arith.addf %122, %125 : vector<16x32xf32>
    %127 = vector.extract_strided_slice %15 {offsets = [0, 0], sizes = [32, 32], strides = [1, 1]} : vector<32x128xf32> to vector<32x32xf32>
    %128 = vector.extract_strided_slice %15 {offsets = [0, 32], sizes = [32, 32], strides = [1, 1]} : vector<32x128xf32> to vector<32x32xf32>
    %c0_52 = arith.constant 0 : index
    %c0_53 = arith.constant 0 : index
    %c0_54 = arith.constant 0 : index
    %129 = vector.load %arg13[%c0_52, %c0_53, %c0_54] : memref<2x32x32xbf16, #tpu.memory_space<vmem>>, vector<1x32x32xbf16>
    %130 = vector.shape_cast %129 : vector<1x32x32xbf16> to vector<32x32xbf16>
    %c0_55 = arith.constant 0 : index
    %c0_56 = arith.constant 0 : index
    %c0_57 = arith.constant 0 : index
    %131 = vector.load %arg14[%c0_55, %c0_56, %c0_57] : memref<2x1x32xf32, #tpu.memory_space<vmem>>, vector<1x1x32xf32>
    %132 = vector.shape_cast %131 : vector<1x1x32xf32> to vector<1x32xf32>
    %133 = vector.extract_strided_slice %126 {offsets = [0, 0], sizes = [16, 8], strides = [1, 1]} : vector<16x32xf32> to vector<16x8xf32>
    %134 = vector.extract_strided_slice %126 {offsets = [0, 8], sizes = [16, 8], strides = [1, 1]} : vector<16x32xf32> to vector<16x8xf32>
    %135 = vector.extract_strided_slice %126 {offsets = [0, 16], sizes = [16, 8], strides = [1, 1]} : vector<16x32xf32> to vector<16x8xf32>
    %136 = vector.extract_strided_slice %126 {offsets = [0, 24], sizes = [16, 8], strides = [1, 1]} : vector<16x32xf32> to vector<16x8xf32>
    %137 = vector.shape_cast %133 : vector<16x8xf32> to vector<1x16x8xf32>
    %138 = vector.shape_cast %134 : vector<16x8xf32> to vector<1x16x8xf32>
    %139 = vector.shape_cast %135 : vector<16x8xf32> to vector<1x16x8xf32>
    %140 = vector.shape_cast %136 : vector<16x8xf32> to vector<1x16x8xf32>
    %141 = tpu.concatenate %137, %138, %139, %140 in 0 : vector<1x16x8xf32>, vector<1x16x8xf32>, vector<1x16x8xf32>, vector<1x16x8xf32> -> vector<4x16x8xf32>
    %142 = arith.truncf %141 : vector<4x16x8xf32> to vector<4x16x8xbf16>
    %143 = vector.extract_strided_slice %127 {offsets = [0, 0], sizes = [32, 8], strides = [1, 1]} : vector<32x32xf32> to vector<32x8xf32>
    %144 = vector.extract_strided_slice %127 {offsets = [0, 8], sizes = [32, 8], strides = [1, 1]} : vector<32x32xf32> to vector<32x8xf32>
    %145 = vector.extract_strided_slice %127 {offsets = [0, 16], sizes = [32, 8], strides = [1, 1]} : vector<32x32xf32> to vector<32x8xf32>
    %146 = vector.extract_strided_slice %127 {offsets = [0, 24], sizes = [32, 8], strides = [1, 1]} : vector<32x32xf32> to vector<32x8xf32>
    %147 = vector.shape_cast %143 : vector<32x8xf32> to vector<1x32x8xf32>
    %148 = vector.shape_cast %144 : vector<32x8xf32> to vector<1x32x8xf32>
    %149 = vector.shape_cast %145 : vector<32x8xf32> to vector<1x32x8xf32>
    %150 = vector.shape_cast %146 : vector<32x8xf32> to vector<1x32x8xf32>
    %151 = tpu.concatenate %147, %148, %149, %150 in 0 : vector<1x32x8xf32>, vector<1x32x8xf32>, vector<1x32x8xf32>, vector<1x32x8xf32> -> vector<4x32x8xf32>
    %152 = arith.truncf %151 : vector<4x32x8xf32> to vector<4x32x8xbf16>
    %153 = vector.extract_strided_slice %128 {offsets = [0, 0], sizes = [32, 8], strides = [1, 1]} : vector<32x32xf32> to vector<32x8xf32>
    %154 = vector.extract_strided_slice %128 {offsets = [0, 8], sizes = [32, 8], strides = [1, 1]} : vector<32x32xf32> to vector<32x8xf32>
    %155 = vector.extract_strided_slice %128 {offsets = [0, 16], sizes = [32, 8], strides = [1, 1]} : vector<32x32xf32> to vector<32x8xf32>
    %156 = vector.extract_strided_slice %128 {offsets = [0, 24], sizes = [32, 8], strides = [1, 1]} : vector<32x32xf32> to vector<32x8xf32>
    %157 = vector.shape_cast %153 : vector<32x8xf32> to vector<1x32x8xf32>
    %158 = vector.shape_cast %154 : vector<32x8xf32> to vector<1x32x8xf32>
    %159 = vector.shape_cast %155 : vector<32x8xf32> to vector<1x32x8xf32>
    %160 = vector.shape_cast %156 : vector<32x8xf32> to vector<1x32x8xf32>
    %161 = tpu.concatenate %157, %158, %159, %160 in 0 : vector<1x32x8xf32>, vector<1x32x8xf32>, vector<1x32x8xf32>, vector<1x32x8xf32> -> vector<4x32x8xf32>
    %162 = arith.truncf %161 : vector<4x32x8xf32> to vector<4x32x8xbf16>
    "tpu.trace_start"() <{level = 10 : i32, message = "hqd,hkd->hqk"}> : () -> ()
    %cst_58 = arith.constant dense<0.000000e+00> : vector<4x16x32xf32>
    %163 = tpu.matmul %142, %152, %cst_58 {dimension_numbers = #tpu.dot_dimension_numbers<[2], [2], [1], [1], [0, 0, 0, 1, 1, 1], [0], [0]>} : vector<4x16x8xbf16>, vector<4x32x8xbf16>, vector<4x16x32xf32> -> vector<4x16x32xf32>
    "tpu.trace_stop"() : () -> ()
    %cst_59 = arith.constant 0.353553385 : f32
    %164 = vector.broadcast %cst_59 : f32 to vector<4x16x32xf32>
    %165 = arith.mulf %163, %164 : vector<4x16x32xf32>
    %166 = vector.shape_cast %9 : vector<16x32xf32> to vector<1x16x32xf32>
    %167 = vector.broadcast %166 : vector<1x16x32xf32> to vector<4x16x32xf32>
    %168 = arith.addf %165, %167 : vector<4x16x32xf32>
    %cst_60 = arith.constant dense<0xFF800000> : vector<4x16xf32>
    %169 = vector.multi_reduction <maximumf>, %168, %cst_60 [2] : vector<4x16x32xf32> to vector<4x16xf32>
    %170 = vector.shape_cast %169 : vector<4x16xf32> to vector<4x16x1xf32>
    %171 = vector.broadcast %170 : vector<4x16x1xf32> to vector<4x16x32xf32>
    %172 = arith.subf %168, %171 : vector<4x16x32xf32>
    %173 = math.exp %172 : vector<4x16x32xf32>
    %cst_61 = arith.constant dense<0.000000e+00> : vector<4x16xf32>
    %174 = vector.multi_reduction <add>, %173, %cst_61 [2] : vector<4x16x32xf32> to vector<4x16xf32>
    %175 = vector.shape_cast %174 : vector<4x16xf32> to vector<4x16x1xf32>
    %176 = tpu.reciprocal %175 {approx = true} : vector<4x16x1xf32> -> vector<4x16x1xf32>
    %177 = vector.broadcast %176 : vector<4x16x1xf32> to vector<4x16x32xf32>
    %178 = arith.mulf %173, %177 : vector<4x16x32xf32>
    %179 = arith.truncf %178 : vector<4x16x32xf32> to vector<4x16x32xbf16>
    "tpu.trace_start"() <{level = 10 : i32, message = "hqk,hkd->hqd"}> : () -> ()
    %cst_62 = arith.constant dense<0.000000e+00> : vector<4x16x8xf32>
    %180 = tpu.matmul %179, %162, %cst_62 {dimension_numbers = #tpu.dot_dimension_numbers<[2], [1], [1], [2], [0, 0, 0, 1, 1, 2], [0], [0]>} : vector<4x16x32xbf16>, vector<4x32x8xbf16>, vector<4x16x8xf32> -> vector<4x16x8xf32>
    "tpu.trace_stop"() : () -> ()
    %181 = vector.extract_strided_slice %180 {offsets = [0, 0, 0], sizes = [1, 16, 8], strides = [1, 1, 1]} : vector<4x16x8xf32> to vector<1x16x8xf32>
    %182 = vector.shape_cast %181 : vector<1x16x8xf32> to vector<16x8xf32>
    %183 = vector.extract_strided_slice %180 {offsets = [1, 0, 0], sizes = [1, 16, 8], strides = [1, 1, 1]} : vector<4x16x8xf32> to vector<1x16x8xf32>
    %184 = vector.shape_cast %183 : vector<1x16x8xf32> to vector<16x8xf32>
    %185 = vector.extract_strided_slice %180 {offsets = [2, 0, 0], sizes = [1, 16, 8], strides = [1, 1, 1]} : vector<4x16x8xf32> to vector<1x16x8xf32>
    %186 = vector.shape_cast %185 : vector<1x16x8xf32> to vector<16x8xf32>
    %187 = vector.extract_strided_slice %180 {offsets = [3, 0, 0], sizes = [1, 16, 8], strides = [1, 1, 1]} : vector<4x16x8xf32> to vector<1x16x8xf32>
    %188 = vector.shape_cast %187 : vector<1x16x8xf32> to vector<16x8xf32>
    %189 = tpu.concatenate %182, %184, %186, %188 in 1 : vector<16x8xf32>, vector<16x8xf32>, vector<16x8xf32>, vector<16x8xf32> -> vector<16x32xf32>
    %190 = arith.truncf %189 : vector<16x32xf32> to vector<16x32xbf16>
    %cst_63 = arith.constant dense<0.000000e+00> : vector<16x32xf32>
    %191 = tpu.matmul %190, %130, %cst_63 {dimension_numbers = #tpu.dot_dimension_numbers<[1], [0], [0], [1], [0, 0, 1, 1], [], []>} : vector<16x32xbf16>, vector<32x32xbf16>, vector<16x32xf32> -> vector<16x32xf32>
    %192 = vector.broadcast %132 : vector<1x32xf32> to vector<16x32xf32>
    %193 = arith.addf %191, %192 : vector<16x32xf32>
    %194 = arith.addf %118, %193 : vector<16x32xf32>
    %c0_64 = arith.constant 0 : index
    %c0_65 = arith.constant 0 : index
    %c0_66 = arith.constant 0 : index
    %195 = vector.load %arg17[%c0_64, %c0_65, %c0_66] : memref<2x1x32xf32, #tpu.memory_space<vmem>>, vector<1x1x32xf32>
    %196 = vector.shape_cast %195 : vector<1x1x32xf32> to vector<1x32xf32>
    %c0_67 = arith.constant 0 : index
    %c0_68 = arith.constant 0 : index
    %c0_69 = arith.constant 0 : index
    %197 = vector.load %arg18[%c0_67, %c0_68, %c0_69] : memref<2x1x32xf32, #tpu.memory_space<vmem>>, vector<1x1x32xf32>
    %198 = vector.shape_cast %197 : vector<1x1x32xf32> to vector<1x32xf32>
    %cst_70 = arith.constant dense<0.000000e+00> : vector<16xf32>
    %199 = vector.multi_reduction <add>, %194, %cst_70 [1] : vector<16x32xf32> to vector<16xf32>
    %200 = vector.shape_cast %199 : vector<16xf32> to vector<16x1xf32>
    %cst_71 = arith.constant 3.200000e+01 : f32
    %201 = vector.broadcast %cst_71 : f32 to vector<16x1xf32>
    %202 = arith.divf %200, %201 : vector<16x1xf32>
    %203 = arith.mulf %194, %194 : vector<16x32xf32>
    %cst_72 = arith.constant dense<0.000000e+00> : vector<16xf32>
    %204 = vector.multi_reduction <add>, %203, %cst_72 [1] : vector<16x32xf32> to vector<16xf32>
    %205 = vector.shape_cast %204 : vector<16xf32> to vector<16x1xf32>
    %cst_73 = arith.constant 3.200000e+01 : f32
    %206 = vector.broadcast %cst_73 : f32 to vector<16x1xf32>
    %207 = arith.divf %205, %206 : vector<16x1xf32>
    %208 = arith.mulf %202, %202 : vector<16x1xf32>
    %209 = arith.subf %207, %208 : vector<16x1xf32>
    %210 = vector.broadcast %202 : vector<16x1xf32> to vector<16x32xf32>
    %211 = arith.subf %194, %210 : vector<16x32xf32>
    %cst_74 = arith.constant 9.99999974E-6 : f32
    %212 = vector.broadcast %cst_74 : f32 to vector<16x1xf32>
    %213 = arith.addf %209, %212 : vector<16x1xf32>
    %214 = math.rsqrt %213 : vector<16x1xf32>
    %215 = vector.broadcast %214 : vector<16x1xf32> to vector<16x32xf32>
    %216 = arith.mulf %211, %215 : vector<16x32xf32>
    %217 = vector.broadcast %196 : vector<1x32xf32> to vector<16x32xf32>
    %218 = arith.mulf %216, %217 : vector<16x32xf32>
    %219 = vector.broadcast %198 : vector<1x32xf32> to vector<16x32xf32>
    %220 = arith.addf %218, %219 : vector<16x32xf32>
    %221 = arith.truncf %220 : vector<16x32xf32> to vector<16x32xbf16>
    %c0_75 = arith.constant 0 : index
    %c0_76 = arith.constant 0 : index
    %c0_77 = arith.constant 0 : index
    %222 = vector.load %arg21[%c0_75, %c0_76, %c0_77] : memref<2x32x64xbf16, #tpu.memory_space<vmem>>, vector<1x32x64xbf16>
    %223 = vector.shape_cast %222 : vector<1x32x64xbf16> to vector<32x64xbf16>
    %cst_78 = arith.constant dense<0.000000e+00> : vector<16x64xf32>
    %224 = tpu.matmul %221, %223, %cst_78 {dimension_numbers = #tpu.dot_dimension_numbers<[1], [0], [0], [1], [0, 0, 1, 1], [], []>} : vector<16x32xbf16>, vector<32x64xbf16>, vector<16x64xf32> -> vector<16x64xf32>
    %c0_79 = arith.constant 0 : index
    %c0_80 = arith.constant 0 : index
    %c0_81 = arith.constant 0 : index
    %225 = vector.load %arg22[%c0_79, %c0_80, %c0_81] : memref<2x1x64xf32, #tpu.memory_space<vmem>>, vector<1x1x64xf32>
    %226 = vector.shape_cast %225 : vector<1x1x64xf32> to vector<1x64xf32>
    %227 = vector.broadcast %226 : vector<1x64xf32> to vector<16x64xf32>
    %228 = arith.addf %224, %227 : vector<16x64xf32>
    %cst_82 = arith.constant 0.000000e+00 : f32
    %229 = vector.broadcast %cst_82 : f32 to vector<16x64xf32>
    %230 = arith.maximumf %228, %229 : vector<16x64xf32>
    %231 = arith.truncf %230 : vector<16x64xf32> to vector<16x64xbf16>
    %c0_83 = arith.constant 0 : index
    %c0_84 = arith.constant 0 : index
    %c0_85 = arith.constant 0 : index
    %232 = vector.load %arg23[%c0_83, %c0_84, %c0_85] : memref<2x64x32xbf16, #tpu.memory_space<vmem>>, vector<1x64x32xbf16>
    %233 = vector.shape_cast %232 : vector<1x64x32xbf16> to vector<64x32xbf16>
    %cst_86 = arith.constant dense<0.000000e+00> : vector<16x32xf32>
    %234 = tpu.matmul %231, %233, %cst_86 {dimension_numbers = #tpu.dot_dimension_numbers<[1], [0], [0], [1], [0, 0, 1, 1], [], []>} : vector<16x64xbf16>, vector<64x32xbf16>, vector<16x32xf32> -> vector<16x32xf32>
    %c0_87 = arith.constant 0 : index
    %c0_88 = arith.constant 0 : index
    %c0_89 = arith.constant 0 : index
    %235 = vector.load %arg24[%c0_87, %c0_88, %c0_89] : memref<2x1x32xf32, #tpu.memory_space<vmem>>, vector<1x1x32xf32>
    %236 = vector.shape_cast %235 : vector<1x1x32xf32> to vector<1x32xf32>
    %237 = vector.broadcast %236 : vector<1x32xf32> to vector<16x32xf32>
    %238 = arith.addf %234, %237 : vector<16x32xf32>
    %239 = arith.addf %220, %238 : vector<16x32xf32>
    %c0_90 = arith.constant 0 : index
    %c0_91 = arith.constant 0 : index
    %c0_92 = arith.constant 0 : index
    %240 = vector.load %arg19[%c0_90, %c0_91, %c0_92] : memref<2x1x32xf32, #tpu.memory_space<vmem>>, vector<1x1x32xf32>
    %241 = vector.shape_cast %240 : vector<1x1x32xf32> to vector<1x32xf32>
    %c0_93 = arith.constant 0 : index
    %c0_94 = arith.constant 0 : index
    %c0_95 = arith.constant 0 : index
    %242 = vector.load %arg20[%c0_93, %c0_94, %c0_95] : memref<2x1x32xf32, #tpu.memory_space<vmem>>, vector<1x1x32xf32>
    %243 = vector.shape_cast %242 : vector<1x1x32xf32> to vector<1x32xf32>
    %cst_96 = arith.constant dense<0.000000e+00> : vector<16xf32>
    %244 = vector.multi_reduction <add>, %239, %cst_96 [1] : vector<16x32xf32> to vector<16xf32>
    %245 = vector.shape_cast %244 : vector<16xf32> to vector<16x1xf32>
    %cst_97 = arith.constant 3.200000e+01 : f32
    %246 = vector.broadcast %cst_97 : f32 to vector<16x1xf32>
    %247 = arith.divf %245, %246 : vector<16x1xf32>
    %248 = arith.mulf %239, %239 : vector<16x32xf32>
    %cst_98 = arith.constant dense<0.000000e+00> : vector<16xf32>
    %249 = vector.multi_reduction <add>, %248, %cst_98 [1] : vector<16x32xf32> to vector<16xf32>
    %250 = vector.shape_cast %249 : vector<16xf32> to vector<16x1xf32>
    %cst_99 = arith.constant 3.200000e+01 : f32
    %251 = vector.broadcast %cst_99 : f32 to vector<16x1xf32>
    %252 = arith.divf %250, %251 : vector<16x1xf32>
    %253 = arith.mulf %247, %247 : vector<16x1xf32>
    %254 = arith.subf %252, %253 : vector<16x1xf32>
    %255 = vector.broadcast %247 : vector<16x1xf32> to vector<16x32xf32>
    %256 = arith.subf %239, %255 : vector<16x32xf32>
    %cst_100 = arith.constant 9.99999974E-6 : f32
    %257 = vector.broadcast %cst_100 : f32 to vector<16x1xf32>
    %258 = arith.addf %254, %257 : vector<16x1xf32>
    %259 = math.rsqrt %258 : vector<16x1xf32>
    %260 = vector.broadcast %259 : vector<16x1xf32> to vector<16x32xf32>
    %261 = arith.mulf %256, %260 : vector<16x32xf32>
    %262 = vector.broadcast %241 : vector<1x32xf32> to vector<16x32xf32>
    %263 = arith.mulf %261, %262 : vector<16x32xf32>
    %264 = vector.broadcast %243 : vector<1x32xf32> to vector<16x32xf32>
    %265 = arith.addf %263, %264 : vector<16x32xf32>
    %266 = arith.truncf %265 : vector<16x32xf32> to vector<16x32xbf16>
    %c1 = arith.constant 1 : index
    %c0_101 = arith.constant 0 : index
    %c0_102 = arith.constant 0 : index
    %267 = vector.load %arg5[%c1, %c0_101, %c0_102] : memref<2x32x96xbf16, #tpu.memory_space<vmem>>, vector<1x32x96xbf16>
    %268 = vector.shape_cast %267 : vector<1x32x96xbf16> to vector<32x96xbf16>
    %cst_103 = arith.constant dense<0.000000e+00> : vector<16x96xf32>
    %269 = tpu.matmul %266, %268, %cst_103 {dimension_numbers = #tpu.dot_dimension_numbers<[1], [0], [0], [1], [0, 0, 1, 1], [], []>} : vector<16x32xbf16>, vector<32x96xbf16>, vector<16x96xf32> -> vector<16x96xf32>
    %c1_104 = arith.constant 1 : index
    %c0_105 = arith.constant 0 : index
    %c0_106 = arith.constant 0 : index
    %270 = vector.load %arg6[%c1_104, %c0_105, %c0_106] : memref<2x1x96xf32, #tpu.memory_space<vmem>>, vector<1x1x96xf32>
    %271 = vector.shape_cast %270 : vector<1x1x96xf32> to vector<1x96xf32>
    %272 = vector.broadcast %271 : vector<1x96xf32> to vector<16x96xf32>
    %273 = arith.addf %269, %272 : vector<16x96xf32>
    %274 = vector.extract_strided_slice %273 {offsets = [0, 0], sizes = [16, 32], strides = [1, 1]} : vector<16x96xf32> to vector<16x32xf32>
    %275 = vector.extract_strided_slice %273 {offsets = [0, 32], sizes = [16, 32], strides = [1, 1]} : vector<16x96xf32> to vector<16x32xf32>
    %276 = vector.extract_strided_slice %273 {offsets = [0, 64], sizes = [16, 32], strides = [1, 1]} : vector<16x96xf32> to vector<16x32xf32>
    %c1_107 = arith.constant 1 : index
    %c0_108 = arith.constant 0 : index
    %c0_109 = arith.constant 0 : index
    %277 = vector.load %arg7[%c1_107, %c0_108, %c0_109] : memref<2x32x32xbf16, #tpu.memory_space<vmem>>, vector<1x32x32xbf16>
    %278 = vector.shape_cast %277 : vector<1x32x32xbf16> to vector<32x32xbf16>
    %c1_110 = arith.constant 1 : index
    %c0_111 = arith.constant 0 : index
    %c0_112 = arith.constant 0 : index
    %279 = vector.load %arg8[%c1_110, %c0_111, %c0_112] : memref<2x1x32xf32, #tpu.memory_space<vmem>>, vector<1x1x32xf32>
    %280 = vector.shape_cast %279 : vector<1x1x32xf32> to vector<1x32xf32>
    %281 = vector.extract_strided_slice %274 {offsets = [0, 0], sizes = [16, 8], strides = [1, 1]} : vector<16x32xf32> to vector<16x8xf32>
    %282 = vector.extract_strided_slice %274 {offsets = [0, 8], sizes = [16, 8], strides = [1, 1]} : vector<16x32xf32> to vector<16x8xf32>
    %283 = vector.extract_strided_slice %274 {offsets = [0, 16], sizes = [16, 8], strides = [1, 1]} : vector<16x32xf32> to vector<16x8xf32>
    %284 = vector.extract_strided_slice %274 {offsets = [0, 24], sizes = [16, 8], strides = [1, 1]} : vector<16x32xf32> to vector<16x8xf32>
    %285 = vector.shape_cast %281 : vector<16x8xf32> to vector<1x16x8xf32>
    %286 = vector.shape_cast %282 : vector<16x8xf32> to vector<1x16x8xf32>
    %287 = vector.shape_cast %283 : vector<16x8xf32> to vector<1x16x8xf32>
    %288 = vector.shape_cast %284 : vector<16x8xf32> to vector<1x16x8xf32>
    %289 = tpu.concatenate %285, %286, %287, %288 in 0 : vector<1x16x8xf32>, vector<1x16x8xf32>, vector<1x16x8xf32>, vector<1x16x8xf32> -> vector<4x16x8xf32>
    %290 = arith.truncf %289 : vector<4x16x8xf32> to vector<4x16x8xbf16>
    %291 = vector.extract_strided_slice %275 {offsets = [0, 0], sizes = [16, 8], strides = [1, 1]} : vector<16x32xf32> to vector<16x8xf32>
    %292 = vector.extract_strided_slice %275 {offsets = [0, 8], sizes = [16, 8], strides = [1, 1]} : vector<16x32xf32> to vector<16x8xf32>
    %293 = vector.extract_strided_slice %275 {offsets = [0, 16], sizes = [16, 8], strides = [1, 1]} : vector<16x32xf32> to vector<16x8xf32>
    %294 = vector.extract_strided_slice %275 {offsets = [0, 24], sizes = [16, 8], strides = [1, 1]} : vector<16x32xf32> to vector<16x8xf32>
    %295 = vector.shape_cast %291 : vector<16x8xf32> to vector<1x16x8xf32>
    %296 = vector.shape_cast %292 : vector<16x8xf32> to vector<1x16x8xf32>
    %297 = vector.shape_cast %293 : vector<16x8xf32> to vector<1x16x8xf32>
    %298 = vector.shape_cast %294 : vector<16x8xf32> to vector<1x16x8xf32>
    %299 = tpu.concatenate %295, %296, %297, %298 in 0 : vector<1x16x8xf32>, vector<1x16x8xf32>, vector<1x16x8xf32>, vector<1x16x8xf32> -> vector<4x16x8xf32>
    %300 = arith.truncf %299 : vector<4x16x8xf32> to vector<4x16x8xbf16>
    %301 = vector.extract_strided_slice %276 {offsets = [0, 0], sizes = [16, 8], strides = [1, 1]} : vector<16x32xf32> to vector<16x8xf32>
    %302 = vector.extract_strided_slice %276 {offsets = [0, 8], sizes = [16, 8], strides = [1, 1]} : vector<16x32xf32> to vector<16x8xf32>
    %303 = vector.extract_strided_slice %276 {offsets = [0, 16], sizes = [16, 8], strides = [1, 1]} : vector<16x32xf32> to vector<16x8xf32>
    %304 = vector.extract_strided_slice %276 {offsets = [0, 24], sizes = [16, 8], strides = [1, 1]} : vector<16x32xf32> to vector<16x8xf32>
    %305 = vector.shape_cast %301 : vector<16x8xf32> to vector<1x16x8xf32>
    %306 = vector.shape_cast %302 : vector<16x8xf32> to vector<1x16x8xf32>
    %307 = vector.shape_cast %303 : vector<16x8xf32> to vector<1x16x8xf32>
    %308 = vector.shape_cast %304 : vector<16x8xf32> to vector<1x16x8xf32>
    %309 = tpu.concatenate %305, %306, %307, %308 in 0 : vector<1x16x8xf32>, vector<1x16x8xf32>, vector<1x16x8xf32>, vector<1x16x8xf32> -> vector<4x16x8xf32>
    %310 = arith.truncf %309 : vector<4x16x8xf32> to vector<4x16x8xbf16>
    "tpu.trace_start"() <{level = 10 : i32, message = "hqd,hkd->hqk"}> : () -> ()
    %cst_113 = arith.constant dense<0.000000e+00> : vector<4x16x16xf32>
    %311 = tpu.matmul %290, %300, %cst_113 {dimension_numbers = #tpu.dot_dimension_numbers<[2], [2], [1], [1], [0, 0, 0, 1, 1, 1], [0], [0]>} : vector<4x16x8xbf16>, vector<4x16x8xbf16>, vector<4x16x16xf32> -> vector<4x16x16xf32>
    "tpu.trace_stop"() : () -> ()
    %cst_114 = arith.constant 0.353553385 : f32
    %312 = vector.broadcast %cst_114 : f32 to vector<4x16x16xf32>
    %313 = arith.mulf %311, %312 : vector<4x16x16xf32>
    %314 = vector.shape_cast %8 : vector<16x16xf32> to vector<1x16x16xf32>
    %315 = vector.broadcast %314 : vector<1x16x16xf32> to vector<4x16x16xf32>
    %316 = arith.addf %313, %315 : vector<4x16x16xf32>
    %cst_115 = arith.constant dense<0xFF800000> : vector<4x16xf32>
    %317 = vector.multi_reduction <maximumf>, %316, %cst_115 [2] : vector<4x16x16xf32> to vector<4x16xf32>
    %318 = vector.shape_cast %317 : vector<4x16xf32> to vector<4x16x1xf32>
    %319 = vector.broadcast %318 : vector<4x16x1xf32> to vector<4x16x16xf32>
    %320 = arith.subf %316, %319 : vector<4x16x16xf32>
    %321 = math.exp %320 : vector<4x16x16xf32>
    %cst_116 = arith.constant dense<0.000000e+00> : vector<4x16xf32>
    %322 = vector.multi_reduction <add>, %321, %cst_116 [2] : vector<4x16x16xf32> to vector<4x16xf32>
    %323 = vector.shape_cast %322 : vector<4x16xf32> to vector<4x16x1xf32>
    %324 = tpu.reciprocal %323 {approx = true} : vector<4x16x1xf32> -> vector<4x16x1xf32>
    %325 = vector.broadcast %324 : vector<4x16x1xf32> to vector<4x16x16xf32>
    %326 = arith.mulf %321, %325 : vector<4x16x16xf32>
    %327 = arith.truncf %326 : vector<4x16x16xf32> to vector<4x16x16xbf16>
    "tpu.trace_start"() <{level = 10 : i32, message = "hqk,hkd->hqd"}> : () -> ()
    %cst_117 = arith.constant dense<0.000000e+00> : vector<4x16x8xf32>
    %328 = tpu.matmul %327, %310, %cst_117 {dimension_numbers = #tpu.dot_dimension_numbers<[2], [1], [1], [2], [0, 0, 0, 1, 1, 2], [0], [0]>} : vector<4x16x16xbf16>, vector<4x16x8xbf16>, vector<4x16x8xf32> -> vector<4x16x8xf32>
    "tpu.trace_stop"() : () -> ()
    %329 = vector.extract_strided_slice %328 {offsets = [0, 0, 0], sizes = [1, 16, 8], strides = [1, 1, 1]} : vector<4x16x8xf32> to vector<1x16x8xf32>
    %330 = vector.shape_cast %329 : vector<1x16x8xf32> to vector<16x8xf32>
    %331 = vector.extract_strided_slice %328 {offsets = [1, 0, 0], sizes = [1, 16, 8], strides = [1, 1, 1]} : vector<4x16x8xf32> to vector<1x16x8xf32>
    %332 = vector.shape_cast %331 : vector<1x16x8xf32> to vector<16x8xf32>
    %333 = vector.extract_strided_slice %328 {offsets = [2, 0, 0], sizes = [1, 16, 8], strides = [1, 1, 1]} : vector<4x16x8xf32> to vector<1x16x8xf32>
    %334 = vector.shape_cast %333 : vector<1x16x8xf32> to vector<16x8xf32>
    %335 = vector.extract_strided_slice %328 {offsets = [3, 0, 0], sizes = [1, 16, 8], strides = [1, 1, 1]} : vector<4x16x8xf32> to vector<1x16x8xf32>
    %336 = vector.shape_cast %335 : vector<1x16x8xf32> to vector<16x8xf32>
    %337 = tpu.concatenate %330, %332, %334, %336 in 1 : vector<16x8xf32>, vector<16x8xf32>, vector<16x8xf32>, vector<16x8xf32> -> vector<16x32xf32>
    %338 = arith.truncf %337 : vector<16x32xf32> to vector<16x32xbf16>
    %cst_118 = arith.constant dense<0.000000e+00> : vector<16x32xf32>
    %339 = tpu.matmul %338, %278, %cst_118 {dimension_numbers = #tpu.dot_dimension_numbers<[1], [0], [0], [1], [0, 0, 1, 1], [], []>} : vector<16x32xbf16>, vector<32x32xbf16>, vector<16x32xf32> -> vector<16x32xf32>
    %340 = vector.broadcast %280 : vector<1x32xf32> to vector<16x32xf32>
    %341 = arith.addf %339, %340 : vector<16x32xf32>
    %342 = arith.addf %265, %341 : vector<16x32xf32>
    %c1_119 = arith.constant 1 : index
    %c0_120 = arith.constant 0 : index
    %c0_121 = arith.constant 0 : index
    %343 = vector.load %arg15[%c1_119, %c0_120, %c0_121] : memref<2x1x32xf32, #tpu.memory_space<vmem>>, vector<1x1x32xf32>
    %344 = vector.shape_cast %343 : vector<1x1x32xf32> to vector<1x32xf32>
    %c1_122 = arith.constant 1 : index
    %c0_123 = arith.constant 0 : index
    %c0_124 = arith.constant 0 : index
    %345 = vector.load %arg16[%c1_122, %c0_123, %c0_124] : memref<2x1x32xf32, #tpu.memory_space<vmem>>, vector<1x1x32xf32>
    %346 = vector.shape_cast %345 : vector<1x1x32xf32> to vector<1x32xf32>
    %cst_125 = arith.constant dense<0.000000e+00> : vector<16xf32>
    %347 = vector.multi_reduction <add>, %342, %cst_125 [1] : vector<16x32xf32> to vector<16xf32>
    %348 = vector.shape_cast %347 : vector<16xf32> to vector<16x1xf32>
    %cst_126 = arith.constant 3.200000e+01 : f32
    %349 = vector.broadcast %cst_126 : f32 to vector<16x1xf32>
    %350 = arith.divf %348, %349 : vector<16x1xf32>
    %351 = arith.mulf %342, %342 : vector<16x32xf32>
    %cst_127 = arith.constant dense<0.000000e+00> : vector<16xf32>
    %352 = vector.multi_reduction <add>, %351, %cst_127 [1] : vector<16x32xf32> to vector<16xf32>
    %353 = vector.shape_cast %352 : vector<16xf32> to vector<16x1xf32>
    %cst_128 = arith.constant 3.200000e+01 : f32
    %354 = vector.broadcast %cst_128 : f32 to vector<16x1xf32>
    %355 = arith.divf %353, %354 : vector<16x1xf32>
    %356 = arith.mulf %350, %350 : vector<16x1xf32>
    %357 = arith.subf %355, %356 : vector<16x1xf32>
    %358 = vector.broadcast %350 : vector<16x1xf32> to vector<16x32xf32>
    %359 = arith.subf %342, %358 : vector<16x32xf32>
    %cst_129 = arith.constant 9.99999974E-6 : f32
    %360 = vector.broadcast %cst_129 : f32 to vector<16x1xf32>
    %361 = arith.addf %357, %360 : vector<16x1xf32>
    %362 = math.rsqrt %361 : vector<16x1xf32>
    %363 = vector.broadcast %362 : vector<16x1xf32> to vector<16x32xf32>
    %364 = arith.mulf %359, %363 : vector<16x32xf32>
    %365 = vector.broadcast %344 : vector<1x32xf32> to vector<16x32xf32>
    %366 = arith.mulf %364, %365 : vector<16x32xf32>
    %367 = vector.broadcast %346 : vector<1x32xf32> to vector<16x32xf32>
    %368 = arith.addf %366, %367 : vector<16x32xf32>
    %369 = arith.truncf %368 : vector<16x32xf32> to vector<16x32xbf16>
    %c1_130 = arith.constant 1 : index
    %c0_131 = arith.constant 0 : index
    %c0_132 = arith.constant 0 : index
    %370 = vector.load %arg9[%c1_130, %c0_131, %c0_132] : memref<2x32x32xbf16, #tpu.memory_space<vmem>>, vector<1x32x32xbf16>
    %371 = vector.shape_cast %370 : vector<1x32x32xbf16> to vector<32x32xbf16>
    %cst_133 = arith.constant dense<0.000000e+00> : vector<16x32xf32>
    %372 = tpu.matmul %369, %371, %cst_133 {dimension_numbers = #tpu.dot_dimension_numbers<[1], [0], [0], [1], [0, 0, 1, 1], [], []>} : vector<16x32xbf16>, vector<32x32xbf16>, vector<16x32xf32> -> vector<16x32xf32>
    %c1_134 = arith.constant 1 : index
    %c0_135 = arith.constant 0 : index
    %c0_136 = arith.constant 0 : index
    %373 = vector.load %arg10[%c1_134, %c0_135, %c0_136] : memref<2x1x32xf32, #tpu.memory_space<vmem>>, vector<1x1x32xf32>
    %374 = vector.shape_cast %373 : vector<1x1x32xf32> to vector<1x32xf32>
    %375 = vector.broadcast %374 : vector<1x32xf32> to vector<16x32xf32>
    %376 = arith.addf %372, %375 : vector<16x32xf32>
    %377 = vector.extract_strided_slice %15 {offsets = [0, 64], sizes = [32, 32], strides = [1, 1]} : vector<32x128xf32> to vector<32x32xf32>
    %378 = vector.extract_strided_slice %15 {offsets = [0, 96], sizes = [32, 32], strides = [1, 1]} : vector<32x128xf32> to vector<32x32xf32>
    %c1_137 = arith.constant 1 : index
    %c0_138 = arith.constant 0 : index
    %c0_139 = arith.constant 0 : index
    %379 = vector.load %arg13[%c1_137, %c0_138, %c0_139] : memref<2x32x32xbf16, #tpu.memory_space<vmem>>, vector<1x32x32xbf16>
    %380 = vector.shape_cast %379 : vector<1x32x32xbf16> to vector<32x32xbf16>
    %c1_140 = arith.constant 1 : index
    %c0_141 = arith.constant 0 : index
    %c0_142 = arith.constant 0 : index
    %381 = vector.load %arg14[%c1_140, %c0_141, %c0_142] : memref<2x1x32xf32, #tpu.memory_space<vmem>>, vector<1x1x32xf32>
    %382 = vector.shape_cast %381 : vector<1x1x32xf32> to vector<1x32xf32>
    %383 = vector.extract_strided_slice %376 {offsets = [0, 0], sizes = [16, 8], strides = [1, 1]} : vector<16x32xf32> to vector<16x8xf32>
    %384 = vector.extract_strided_slice %376 {offsets = [0, 8], sizes = [16, 8], strides = [1, 1]} : vector<16x32xf32> to vector<16x8xf32>
    %385 = vector.extract_strided_slice %376 {offsets = [0, 16], sizes = [16, 8], strides = [1, 1]} : vector<16x32xf32> to vector<16x8xf32>
    %386 = vector.extract_strided_slice %376 {offsets = [0, 24], sizes = [16, 8], strides = [1, 1]} : vector<16x32xf32> to vector<16x8xf32>
    %387 = vector.shape_cast %383 : vector<16x8xf32> to vector<1x16x8xf32>
    %388 = vector.shape_cast %384 : vector<16x8xf32> to vector<1x16x8xf32>
    %389 = vector.shape_cast %385 : vector<16x8xf32> to vector<1x16x8xf32>
    %390 = vector.shape_cast %386 : vector<16x8xf32> to vector<1x16x8xf32>
    %391 = tpu.concatenate %387, %388, %389, %390 in 0 : vector<1x16x8xf32>, vector<1x16x8xf32>, vector<1x16x8xf32>, vector<1x16x8xf32> -> vector<4x16x8xf32>
    %392 = arith.truncf %391 : vector<4x16x8xf32> to vector<4x16x8xbf16>
    %393 = vector.extract_strided_slice %377 {offsets = [0, 0], sizes = [32, 8], strides = [1, 1]} : vector<32x32xf32> to vector<32x8xf32>
    %394 = vector.extract_strided_slice %377 {offsets = [0, 8], sizes = [32, 8], strides = [1, 1]} : vector<32x32xf32> to vector<32x8xf32>
    %395 = vector.extract_strided_slice %377 {offsets = [0, 16], sizes = [32, 8], strides = [1, 1]} : vector<32x32xf32> to vector<32x8xf32>
    %396 = vector.extract_strided_slice %377 {offsets = [0, 24], sizes = [32, 8], strides = [1, 1]} : vector<32x32xf32> to vector<32x8xf32>
    %397 = vector.shape_cast %393 : vector<32x8xf32> to vector<1x32x8xf32>
    %398 = vector.shape_cast %394 : vector<32x8xf32> to vector<1x32x8xf32>
    %399 = vector.shape_cast %395 : vector<32x8xf32> to vector<1x32x8xf32>
    %400 = vector.shape_cast %396 : vector<32x8xf32> to vector<1x32x8xf32>
    %401 = tpu.concatenate %397, %398, %399, %400 in 0 : vector<1x32x8xf32>, vector<1x32x8xf32>, vector<1x32x8xf32>, vector<1x32x8xf32> -> vector<4x32x8xf32>
    %402 = arith.truncf %401 : vector<4x32x8xf32> to vector<4x32x8xbf16>
    %403 = vector.extract_strided_slice %378 {offsets = [0, 0], sizes = [32, 8], strides = [1, 1]} : vector<32x32xf32> to vector<32x8xf32>
    %404 = vector.extract_strided_slice %378 {offsets = [0, 8], sizes = [32, 8], strides = [1, 1]} : vector<32x32xf32> to vector<32x8xf32>
    %405 = vector.extract_strided_slice %378 {offsets = [0, 16], sizes = [32, 8], strides = [1, 1]} : vector<32x32xf32> to vector<32x8xf32>
    %406 = vector.extract_strided_slice %378 {offsets = [0, 24], sizes = [32, 8], strides = [1, 1]} : vector<32x32xf32> to vector<32x8xf32>
    %407 = vector.shape_cast %403 : vector<32x8xf32> to vector<1x32x8xf32>
    %408 = vector.shape_cast %404 : vector<32x8xf32> to vector<1x32x8xf32>
    %409 = vector.shape_cast %405 : vector<32x8xf32> to vector<1x32x8xf32>
    %410 = vector.shape_cast %406 : vector<32x8xf32> to vector<1x32x8xf32>
    %411 = tpu.concatenate %407, %408, %409, %410 in 0 : vector<1x32x8xf32>, vector<1x32x8xf32>, vector<1x32x8xf32>, vector<1x32x8xf32> -> vector<4x32x8xf32>
    %412 = arith.truncf %411 : vector<4x32x8xf32> to vector<4x32x8xbf16>
    "tpu.trace_start"() <{level = 10 : i32, message = "hqd,hkd->hqk"}> : () -> ()
    %cst_143 = arith.constant dense<0.000000e+00> : vector<4x16x32xf32>
    %413 = tpu.matmul %392, %402, %cst_143 {dimension_numbers = #tpu.dot_dimension_numbers<[2], [2], [1], [1], [0, 0, 0, 1, 1, 1], [0], [0]>} : vector<4x16x8xbf16>, vector<4x32x8xbf16>, vector<4x16x32xf32> -> vector<4x16x32xf32>
    "tpu.trace_stop"() : () -> ()
    %cst_144 = arith.constant 0.353553385 : f32
    %414 = vector.broadcast %cst_144 : f32 to vector<4x16x32xf32>
    %415 = arith.mulf %413, %414 : vector<4x16x32xf32>
    %416 = vector.shape_cast %9 : vector<16x32xf32> to vector<1x16x32xf32>
    %417 = vector.broadcast %416 : vector<1x16x32xf32> to vector<4x16x32xf32>
    %418 = arith.addf %415, %417 : vector<4x16x32xf32>
    %cst_145 = arith.constant dense<0xFF800000> : vector<4x16xf32>
    %419 = vector.multi_reduction <maximumf>, %418, %cst_145 [2] : vector<4x16x32xf32> to vector<4x16xf32>
    %420 = vector.shape_cast %419 : vector<4x16xf32> to vector<4x16x1xf32>
    %421 = vector.broadcast %420 : vector<4x16x1xf32> to vector<4x16x32xf32>
    %422 = arith.subf %418, %421 : vector<4x16x32xf32>
    %423 = math.exp %422 : vector<4x16x32xf32>
    %cst_146 = arith.constant dense<0.000000e+00> : vector<4x16xf32>
    %424 = vector.multi_reduction <add>, %423, %cst_146 [2] : vector<4x16x32xf32> to vector<4x16xf32>
    %425 = vector.shape_cast %424 : vector<4x16xf32> to vector<4x16x1xf32>
    %426 = tpu.reciprocal %425 {approx = true} : vector<4x16x1xf32> -> vector<4x16x1xf32>
    %427 = vector.broadcast %426 : vector<4x16x1xf32> to vector<4x16x32xf32>
    %428 = arith.mulf %423, %427 : vector<4x16x32xf32>
    %429 = arith.truncf %428 : vector<4x16x32xf32> to vector<4x16x32xbf16>
    "tpu.trace_start"() <{level = 10 : i32, message = "hqk,hkd->hqd"}> : () -> ()
    %cst_147 = arith.constant dense<0.000000e+00> : vector<4x16x8xf32>
    %430 = tpu.matmul %429, %412, %cst_147 {dimension_numbers = #tpu.dot_dimension_numbers<[2], [1], [1], [2], [0, 0, 0, 1, 1, 2], [0], [0]>} : vector<4x16x32xbf16>, vector<4x32x8xbf16>, vector<4x16x8xf32> -> vector<4x16x8xf32>
    "tpu.trace_stop"() : () -> ()
    %431 = vector.extract_strided_slice %430 {offsets = [0, 0, 0], sizes = [1, 16, 8], strides = [1, 1, 1]} : vector<4x16x8xf32> to vector<1x16x8xf32>
    %432 = vector.shape_cast %431 : vector<1x16x8xf32> to vector<16x8xf32>
    %433 = vector.extract_strided_slice %430 {offsets = [1, 0, 0], sizes = [1, 16, 8], strides = [1, 1, 1]} : vector<4x16x8xf32> to vector<1x16x8xf32>
    %434 = vector.shape_cast %433 : vector<1x16x8xf32> to vector<16x8xf32>
    %435 = vector.extract_strided_slice %430 {offsets = [2, 0, 0], sizes = [1, 16, 8], strides = [1, 1, 1]} : vector<4x16x8xf32> to vector<1x16x8xf32>
    %436 = vector.shape_cast %435 : vector<1x16x8xf32> to vector<16x8xf32>
    %437 = vector.extract_strided_slice %430 {offsets = [3, 0, 0], sizes = [1, 16, 8], strides = [1, 1, 1]} : vector<4x16x8xf32> to vector<1x16x8xf32>
    %438 = vector.shape_cast %437 : vector<1x16x8xf32> to vector<16x8xf32>
    %439 = tpu.concatenate %432, %434, %436, %438 in 1 : vector<16x8xf32>, vector<16x8xf32>, vector<16x8xf32>, vector<16x8xf32> -> vector<16x32xf32>
    %440 = arith.truncf %439 : vector<16x32xf32> to vector<16x32xbf16>
    %cst_148 = arith.constant dense<0.000000e+00> : vector<16x32xf32>
    %441 = tpu.matmul %440, %380, %cst_148 {dimension_numbers = #tpu.dot_dimension_numbers<[1], [0], [0], [1], [0, 0, 1, 1], [], []>} : vector<16x32xbf16>, vector<32x32xbf16>, vector<16x32xf32> -> vector<16x32xf32>
    %442 = vector.broadcast %382 : vector<1x32xf32> to vector<16x32xf32>
    %443 = arith.addf %441, %442 : vector<16x32xf32>
    %444 = arith.addf %368, %443 : vector<16x32xf32>
    %c1_149 = arith.constant 1 : index
    %c0_150 = arith.constant 0 : index
    %c0_151 = arith.constant 0 : index
    %445 = vector.load %arg17[%c1_149, %c0_150, %c0_151] : memref<2x1x32xf32, #tpu.memory_space<vmem>>, vector<1x1x32xf32>
    %446 = vector.shape_cast %445 : vector<1x1x32xf32> to vector<1x32xf32>
    %c1_152 = arith.constant 1 : index
    %c0_153 = arith.constant 0 : index
    %c0_154 = arith.constant 0 : index
    %447 = vector.load %arg18[%c1_152, %c0_153, %c0_154] : memref<2x1x32xf32, #tpu.memory_space<vmem>>, vector<1x1x32xf32>
    %448 = vector.shape_cast %447 : vector<1x1x32xf32> to vector<1x32xf32>
    %cst_155 = arith.constant dense<0.000000e+00> : vector<16xf32>
    %449 = vector.multi_reduction <add>, %444, %cst_155 [1] : vector<16x32xf32> to vector<16xf32>
    %450 = vector.shape_cast %449 : vector<16xf32> to vector<16x1xf32>
    %cst_156 = arith.constant 3.200000e+01 : f32
    %451 = vector.broadcast %cst_156 : f32 to vector<16x1xf32>
    %452 = arith.divf %450, %451 : vector<16x1xf32>
    %453 = arith.mulf %444, %444 : vector<16x32xf32>
    %cst_157 = arith.constant dense<0.000000e+00> : vector<16xf32>
    %454 = vector.multi_reduction <add>, %453, %cst_157 [1] : vector<16x32xf32> to vector<16xf32>
    %455 = vector.shape_cast %454 : vector<16xf32> to vector<16x1xf32>
    %cst_158 = arith.constant 3.200000e+01 : f32
    %456 = vector.broadcast %cst_158 : f32 to vector<16x1xf32>
    %457 = arith.divf %455, %456 : vector<16x1xf32>
    %458 = arith.mulf %452, %452 : vector<16x1xf32>
    %459 = arith.subf %457, %458 : vector<16x1xf32>
    %460 = vector.broadcast %452 : vector<16x1xf32> to vector<16x32xf32>
    %461 = arith.subf %444, %460 : vector<16x32xf32>
    %cst_159 = arith.constant 9.99999974E-6 : f32
    %462 = vector.broadcast %cst_159 : f32 to vector<16x1xf32>
    %463 = arith.addf %459, %462 : vector<16x1xf32>
    %464 = math.rsqrt %463 : vector<16x1xf32>
    %465 = vector.broadcast %464 : vector<16x1xf32> to vector<16x32xf32>
    %466 = arith.mulf %461, %465 : vector<16x32xf32>
    %467 = vector.broadcast %446 : vector<1x32xf32> to vector<16x32xf32>
    %468 = arith.mulf %466, %467 : vector<16x32xf32>
    %469 = vector.broadcast %448 : vector<1x32xf32> to vector<16x32xf32>
    %470 = arith.addf %468, %469 : vector<16x32xf32>
    %471 = arith.truncf %470 : vector<16x32xf32> to vector<16x32xbf16>
    %c1_160 = arith.constant 1 : index
    %c0_161 = arith.constant 0 : index
    %c0_162 = arith.constant 0 : index
    %472 = vector.load %arg21[%c1_160, %c0_161, %c0_162] : memref<2x32x64xbf16, #tpu.memory_space<vmem>>, vector<1x32x64xbf16>
    %473 = vector.shape_cast %472 : vector<1x32x64xbf16> to vector<32x64xbf16>
    %cst_163 = arith.constant dense<0.000000e+00> : vector<16x64xf32>
    %474 = tpu.matmul %471, %473, %cst_163 {dimension_numbers = #tpu.dot_dimension_numbers<[1], [0], [0], [1], [0, 0, 1, 1], [], []>} : vector<16x32xbf16>, vector<32x64xbf16>, vector<16x64xf32> -> vector<16x64xf32>
    %c1_164 = arith.constant 1 : index
    %c0_165 = arith.constant 0 : index
    %c0_166 = arith.constant 0 : index
    %475 = vector.load %arg22[%c1_164, %c0_165, %c0_166] : memref<2x1x64xf32, #tpu.memory_space<vmem>>, vector<1x1x64xf32>
    %476 = vector.shape_cast %475 : vector<1x1x64xf32> to vector<1x64xf32>
    %477 = vector.broadcast %476 : vector<1x64xf32> to vector<16x64xf32>
    %478 = arith.addf %474, %477 : vector<16x64xf32>
    %cst_167 = arith.constant 0.000000e+00 : f32
    %479 = vector.broadcast %cst_167 : f32 to vector<16x64xf32>
    %480 = arith.maximumf %478, %479 : vector<16x64xf32>
    %481 = arith.truncf %480 : vector<16x64xf32> to vector<16x64xbf16>
    %c1_168 = arith.constant 1 : index
    %c0_169 = arith.constant 0 : index
    %c0_170 = arith.constant 0 : index
    %482 = vector.load %arg23[%c1_168, %c0_169, %c0_170] : memref<2x64x32xbf16, #tpu.memory_space<vmem>>, vector<1x64x32xbf16>
    %483 = vector.shape_cast %482 : vector<1x64x32xbf16> to vector<64x32xbf16>
    %cst_171 = arith.constant dense<0.000000e+00> : vector<16x32xf32>
    %484 = tpu.matmul %481, %483, %cst_171 {dimension_numbers = #tpu.dot_dimension_numbers<[1], [0], [0], [1], [0, 0, 1, 1], [], []>} : vector<16x64xbf16>, vector<64x32xbf16>, vector<16x32xf32> -> vector<16x32xf32>
    %c1_172 = arith.constant 1 : index
    %c0_173 = arith.constant 0 : index
    %c0_174 = arith.constant 0 : index
    %485 = vector.load %arg24[%c1_172, %c0_173, %c0_174] : memref<2x1x32xf32, #tpu.memory_space<vmem>>, vector<1x1x32xf32>
    %486 = vector.shape_cast %485 : vector<1x1x32xf32> to vector<1x32xf32>
    %487 = vector.broadcast %486 : vector<1x32xf32> to vector<16x32xf32>
    %488 = arith.addf %484, %487 : vector<16x32xf32>
    %489 = arith.addf %470, %488 : vector<16x32xf32>
    %c1_175 = arith.constant 1 : index
    %c0_176 = arith.constant 0 : index
    %c0_177 = arith.constant 0 : index
    %490 = vector.load %arg19[%c1_175, %c0_176, %c0_177] : memref<2x1x32xf32, #tpu.memory_space<vmem>>, vector<1x1x32xf32>
    %491 = vector.shape_cast %490 : vector<1x1x32xf32> to vector<1x32xf32>
    %c1_178 = arith.constant 1 : index
    %c0_179 = arith.constant 0 : index
    %c0_180 = arith.constant 0 : index
    %492 = vector.load %arg20[%c1_178, %c0_179, %c0_180] : memref<2x1x32xf32, #tpu.memory_space<vmem>>, vector<1x1x32xf32>
    %493 = vector.shape_cast %492 : vector<1x1x32xf32> to vector<1x32xf32>
    %cst_181 = arith.constant dense<0.000000e+00> : vector<16xf32>
    %494 = vector.multi_reduction <add>, %489, %cst_181 [1] : vector<16x32xf32> to vector<16xf32>
    %495 = vector.shape_cast %494 : vector<16xf32> to vector<16x1xf32>
    %cst_182 = arith.constant 3.200000e+01 : f32
    %496 = vector.broadcast %cst_182 : f32 to vector<16x1xf32>
    %497 = arith.divf %495, %496 : vector<16x1xf32>
    %498 = arith.mulf %489, %489 : vector<16x32xf32>
    %cst_183 = arith.constant dense<0.000000e+00> : vector<16xf32>
    %499 = vector.multi_reduction <add>, %498, %cst_183 [1] : vector<16x32xf32> to vector<16xf32>
    %500 = vector.shape_cast %499 : vector<16xf32> to vector<16x1xf32>
    %cst_184 = arith.constant 3.200000e+01 : f32
    %501 = vector.broadcast %cst_184 : f32 to vector<16x1xf32>
    %502 = arith.divf %500, %501 : vector<16x1xf32>
    %503 = arith.mulf %497, %497 : vector<16x1xf32>
    %504 = arith.subf %502, %503 : vector<16x1xf32>
    %505 = vector.broadcast %497 : vector<16x1xf32> to vector<16x32xf32>
    %506 = arith.subf %489, %505 : vector<16x32xf32>
    %cst_185 = arith.constant 9.99999974E-6 : f32
    %507 = vector.broadcast %cst_185 : f32 to vector<16x1xf32>
    %508 = arith.addf %504, %507 : vector<16x1xf32>
    %509 = math.rsqrt %508 : vector<16x1xf32>
    %510 = vector.broadcast %509 : vector<16x1xf32> to vector<16x32xf32>
    %511 = arith.mulf %506, %510 : vector<16x32xf32>
    %512 = vector.broadcast %491 : vector<1x32xf32> to vector<16x32xf32>
    %513 = arith.mulf %511, %512 : vector<16x32xf32>
    %514 = vector.broadcast %493 : vector<1x32xf32> to vector<16x32xf32>
    %515 = arith.addf %513, %514 : vector<16x32xf32>
    %516 = arith.truncf %515 : vector<16x32xf32> to vector<16x32xbf16>
    %c0_186 = arith.constant 0 : index
    %c0_187 = arith.constant 0 : index
    %517 = vector.load %arg25[%c0_186, %c0_187] : memref<32x128xbf16, #tpu.memory_space<vmem>>, vector<32x128xbf16>
    %cst_188 = arith.constant dense<0.000000e+00> : vector<16x128xf32>
    %518 = tpu.matmul %516, %517, %cst_188 {dimension_numbers = #tpu.dot_dimension_numbers<[1], [0], [0], [1], [0, 0, 1, 1], [], []>} : vector<16x32xbf16>, vector<32x128xbf16>, vector<16x128xf32> -> vector<16x128xf32>
    %c0_189 = arith.constant 0 : index
    %c0_190 = arith.constant 0 : index
    %519 = vector.load %arg26[%c0_189, %c0_190] : memref<1x128xf32, #tpu.memory_space<vmem>>, vector<1x128xf32>
    %520 = vector.broadcast %519 : vector<1x128xf32> to vector<16x128xf32>
    %521 = arith.addf %518, %520 : vector<16x128xf32>
    %c0_191 = arith.constant 0 : index
    %c0_192 = arith.constant 0 : index
    %522 = vector.load %arg27[%c0_191, %c0_192] : memref<16x128xf32, #tpu.memory_space<vmem>>, vector<16x128xf32>
    tpu.vector_store %arg27[%c0_191, %c0_192], %521 {strides = array<i32>} : memref<16x128xf32, #tpu.memory_space<vmem>>, vector<16x128xf32>,
    return
  }
}

</mosaic_0001>

<llo_original>
// kernel: transformer_decoder_forward.1
$region0: #{transformer_decoder_forward.1}
  #allocation0 [shape = 'u32[]', space=smem, size = 0x4, offset = 0x4, fixed_abs, tag = 'smem constant byte address 0x4 - core index']
  #allocation1 [shape = 'u32[144,128]{1,0:T(1,128)}', space=vmem, size = 0x12000, scoped, tag = 'internal scratch']
  %s0 = inlined_call_operand.vmem [shape: f32[2,8,32], index: 0, kind: input, shape index: {}]
  %s1 = inlined_call_operand.vmem [shape: f32[2,16,32], index: 1, kind: input, shape index: {}]
  %s2 = inlined_call_operand.hbm [shape: f32[8,32], index: 2, kind: input, shape index: {}]
  %s3 = inlined_call_operand.vmem [shape: f32[16,16], index: 3, kind: input, shape index: {}]
  %s4 = inlined_call_operand.vmem [shape: f32[16,32], index: 4, kind: input, shape index: {}]
  %s5 = inlined_call_operand.vmem [shape: bf16[2,32,96], index: 5, kind: input, shape index: {}]
  %s6 = inlined_call_operand.vmem [shape: f32[2,1,96], index: 6, kind: input, shape index: {}]
  %s7 = inlined_call_operand.vmem [shape: bf16[2,32,32], index: 7, kind: input, shape index: {}]
  %s8 = inlined_call_operand.vmem [shape: f32[2,1,32], index: 8, kind: input, shape index: {}]
  %s9 = inlined_call_operand.vmem [shape: bf16[2,32,32], index: 9, kind: input, shape index: {}]
  %s10 = inlined_call_operand.hbm [shape: f32[2,1,32], index: 10, kind: input, shape index: {}]
  %s11 = inlined_call_operand.vmem [shape: bf16[32,128], index: 11, kind: input, shape index: {}]
  %s12 = inlined_call_operand.hbm [shape: f32[1,128], index: 12, kind: input, shape index: {}]
  %s13 = inlined_call_operand.vmem [shape: bf16[2,32,32], index: 13, kind: input, shape index: {}]
  %s14 = inlined_call_operand.hbm [shape: f32[2,1,32], index: 14, kind: input, shape index: {}]
  %s15 = inlined_call_operand.hbm [shape: f32[2,1,32], index: 15, kind: input, shape index: {}]
  %s16 = inlined_call_operand.hbm [shape: f32[2,1,32], index: 16, kind: input, shape index: {}]
  %s17 = inlined_call_operand.hbm [shape: f32[2,1,32], index: 17, kind: input, shape index: {}]
  %s18 = inlined_call_operand.hbm [shape: f32[2,1,32], index: 18, kind: input, shape index: {}]
  %s19 = inlined_call_operand.hbm [shape: f32[2,1,32], index: 19, kind: input, shape index: {}]
  %s20 = inlined_call_operand.hbm [shape: f32[2,1,32], index: 20, kind: input, shape index: {}]
  %s21 = inlined_call_operand.vmem [shape: bf16[2,32,64], index: 21, kind: input, shape index: {}]
  %s22 = inlined_call_operand.hbm [shape: f32[2,1,64], index: 22, kind: input, shape index: {}]
  %s23 = inlined_call_operand.vmem [shape: bf16[2,64,32], index: 23, kind: input, shape index: {}]
  %s24 = inlined_call_operand.hbm [shape: f32[2,1,32], index: 24, kind: input, shape index: {}]
  %s25 = inlined_call_operand.vmem [shape: bf16[32,128], index: 25, kind: input, shape index: {}]
  %s26 = inlined_call_operand.hbm [shape: f32[1,128], index: 26, kind: input, shape index: {}]
  %s27 = inlined_call_operand.hbm [shape: f32[16,128], index: 27, kind: output, shape index: {}]
  %s28 = sld [smem:[#allocation0]]
  $region170: #{transformer_decoder_forward.1} parent=0
    _
  %s30 = ssub.s32 1, %s28
  %s31 = scalar_select 0, %s30, %s28
  $region1: #{transformer_decoder_forward.1} parent=0
    #allocation2 [shape = 'u8[4096]{0}', space=vmem, size = 0x1000, scoped, tag = 'input window, operand 2, single buffered']
    #allocation3 [shape = 's32[1]{0}', space=sflag, size = 0x4, scoped, tag = 'scoped memory for transformer_decoder_forward.1']
    #allocation4 [shape = 's32[1]{0}', space=sflag, size = 0x4, scoped, tag = 'scoped memory for transformer_decoder_forward.1']
    #allocation5 [shape = 'u8[1024]{0}', space=vmem, size = 0x400, scoped, tag = 'input window, operand 10, single buffered']
    #allocation6 [shape = 's32[1]{0}', space=sflag, size = 0x4, scoped, tag = 'scoped memory for transformer_decoder_forward.1']
    #allocation7 [shape = 'u8[512]{0}', space=vmem, size = 0x400, scoped, tag = 'input window, operand 12, single buffered']
    #allocation8 [shape = 'u8[1024]{0}', space=vmem, size = 0x400, scoped, tag = 'input window, operand 14, single buffered']
    #allocation9 [shape = 's32[1]{0}', space=sflag, size = 0x4, scoped, tag = 'scoped memory for transformer_decoder_forward.1']
    #allocation10 [shape = 'u8[1024]{0}', space=vmem, size = 0x400, scoped, tag = 'input window, operand 15, single buffered']
    #allocation11 [shape = 'u8[1024]{0}', space=vmem, size = 0x400, scoped, tag = 'input window, operand 16, single buffered']
    #allocation12 [shape = 's32[1]{0}', space=sflag, size = 0x4, scoped, tag = 'scoped memory for transformer_decoder_forward.1']
    #allocation13 [shape = 'u8[1024]{0}', space=vmem, size = 0x400, scoped, tag = 'input window, operand 17, single buffered']
    #allocation14 [shape = 'u8[1024]{0}', space=vmem, size = 0x400, scoped, tag = 'input window, operand 18, single buffered']
    #allocation15 [shape = 's32[1]{0}', space=sflag, size = 0x4, scoped, tag = 'scoped memory for transformer_decoder_forward.1']
    #allocation16 [shape = 'u8[1024]{0}', space=vmem, size = 0x400, scoped, tag = 'input window, operand 19, single buffered']
    #allocation17 [shape = 'u8[1024]{0}', space=vmem, size = 0x400, scoped, tag = 'input window, operand 20, single buffered']
    #allocation18 [shape = 's32[1]{0}', space=sflag, size = 0x4, scoped, tag = 'scoped memory for transformer_decoder_forward.1']
    #allocation19 [shape = 'u8[1024]{0}', space=vmem, size = 0x400, scoped, tag = 'input window, operand 22, single buffered']
    #allocation20 [shape = 'u8[1024]{0}', space=vmem, size = 0x400, scoped, tag = 'input window, operand 24, single buffered']
    #allocation21 [shape = 's32[1]{0}', space=sflag, size = 0x4, scoped, tag = 'scoped memory for transformer_decoder_forward.1']
    #allocation22 [shape = 'u8[512]{0}', space=vmem, size = 0x400, scoped, tag = 'input window, operand 26, single buffered']
    #allocation23 [shape = 'u8[8192]{0}', space=vmem, size = 0x2000, scoped, tag = 'output window, operand 0, single buffered']
    %32 = vsyncpa [#allocation3], 0
    %33 = vsyncpa [#allocation6], 0
    %34 = vsyncpa [#allocation9], 0
    %35 = vsyncpa [#allocation12], 0
    %36 = vsyncpa [#allocation15], 0
    %37 = vsyncpa [#allocation18], 0
    %38 = vsyncpa [#allocation21], 0
    %39 = vsyncpa [#allocation4], 0
    // Predicated region
    $region2: #{transformer_decoder_forward.1} parent=1 // pred_check
      _
    $region3: #{transformer_decoder_forward.1} parent=1 // pred_check_branch
      %41 = sbr.rel (0) target = $region5
    $region4: #{transformer_decoder_forward.1} parent=1 // pred_region
      _
    $region5: #{transformer_decoder_forward.1} parent=1 // pred_fallthru
      _
    // Predicated region
    $region6: #{transformer_decoder_forward.1} parent=1 // pred_check
      _
    $region7: #{transformer_decoder_forward.1} parent=1 // pred_check_branch
      %43 = sbr.rel (0) target = $region9
    $region8: #{transformer_decoder_forward.1} parent=1 // pred_region
      _
    $region9: #{transformer_decoder_forward.1} parent=1 // pred_fallthru
      _
    // Predicated region
    $region10: #{transformer_decoder_forward.1} parent=1 // pred_check
      _
    $region11: #{transformer_decoder_forward.1} parent=1 // pred_check_branch
      %45 = sbr.rel (0) target = $region13
    $region12: #{transformer_decoder_forward.1} parent=1 // pred_region
      %s47 = ssub.s32 128, 128
      %48 = vsyncadd [#allocation3], %s47
      %s50 = sshll.u32 [#allocation2], 4
      %s51 = int_to_ptr.vmem [resolvable:$true] %s50
      %53 = dma.hbm_to_vmem [thread:$0]  %s2, 128, %s51, [#allocation3]
    $region13: #{transformer_decoder_forward.1} parent=1 // pred_fallthru
      _
    // Predicated region
    $region14: #{transformer_decoder_forward.1} parent=1 // pred_check
      _
    $region15: #{transformer_decoder_forward.1} parent=1 // pred_check_branch
      %55 = sbr.rel (0) target = $region17
    $region16: #{transformer_decoder_forward.1} parent=1 // pred_region
      _
    $region17: #{transformer_decoder_forward.1} parent=1 // pred_fallthru
      _
    // Predicated region
    $region18: #{transformer_decoder_forward.1} parent=1 // pred_check
      _
    $region19: #{transformer_decoder_forward.1} parent=1 // pred_check_branch
      %57 = sbr.rel (0) target = $region21
    $region20: #{transformer_decoder_forward.1} parent=1 // pred_region
      _
    $region21: #{transformer_decoder_forward.1} parent=1 // pred_fallthru
      _
    // Predicated region
    $region22: #{transformer_decoder_forward.1} parent=1 // pred_check
      _
    $region23: #{transformer_decoder_forward.1} parent=1 // pred_check_branch
      %59 = sbr.rel (0) target = $region25
    $region24: #{transformer_decoder_forward.1} parent=1 // pred_region
      _
    $region25: #{transformer_decoder_forward.1} parent=1 // pred_fallthru
      _
    // Predicated region
    $region26: #{transformer_decoder_forward.1} parent=1 // pred_check
      _
    $region27: #{transformer_decoder_forward.1} parent=1 // pred_check_branch
      %61 = sbr.rel (0) target = $region29
    $region28: #{transformer_decoder_forward.1} parent=1 // pred_region
      _
    $region29: #{transformer_decoder_forward.1} parent=1 // pred_fallthru
      _
    // Predicated region
    $region30: #{transformer_decoder_forward.1} parent=1 // pred_check
      _
    $region31: #{transformer_decoder_forward.1} parent=1 // pred_check_branch
      %63 = sbr.rel (0) target = $region33
    $region32: #{transformer_decoder_forward.1} parent=1 // pred_region
      _
    $region33: #{transformer_decoder_forward.1} parent=1 // pred_fallthru
      _
    // Predicated region
    $region34: #{transformer_decoder_forward.1} parent=1 // pred_check
      _
    $region35: #{transformer_decoder_forward.1} parent=1 // pred_check_branch
      %65 = sbr.rel (0) target = $region37
    $region36: #{transformer_decoder_forward.1} parent=1 // pred_region
      _
    $region37: #{transformer_decoder_forward.1} parent=1 // pred_fallthru
      _
    // Predicated region
    $region38: #{transformer_decoder_forward.1} parent=1 // pred_check
      _
    $region39: #{transformer_decoder_forward.1} parent=1 // pred_check_branch
      %67 = sbr.rel (0) target = $region41
    $region40: #{transformer_decoder_forward.1} parent=1 // pred_region
      _
    $region41: #{transformer_decoder_forward.1} parent=1 // pred_fallthru
      _
    // Predicated region
    $region42: #{transformer_decoder_forward.1} parent=1 // pred_check
      _
    $region43: #{transformer_decoder_forward.1} parent=1 // pred_check_branch
      %69 = sbr.rel (0) target = $region45
    $region44: #{transformer_decoder_forward.1} parent=1 // pred_region
      %s71 = ssub.s32 32, 32
      %72 = vsyncadd [#allocation6], %s71
      %s73 = sshll.u32 [#allocation5], 4
      %s74 = int_to_ptr.vmem [resolvable:$true] %s73
      %79 = dma.hbm_to_vmem [thread:$0]  %s10, 32, %s74, [#allocation6], 16, 16, 1
    $region45: #{transformer_decoder_forward.1} parent=1 // pred_fallthru
      _
    // Predicated region
    $region46: #{transformer_decoder_forward.1} parent=1 // pred_check
      _
    $region47: #{transformer_decoder_forward.1} parent=1 // pred_check_branch
      %81 = sbr.rel (0) target = $region49
    $region48: #{transformer_decoder_forward.1} parent=1 // pred_region
      _
    $region49: #{transformer_decoder_forward.1} parent=1 // pred_fallthru
      _
    // Predicated region
    $region50: #{transformer_decoder_forward.1} parent=1 // pred_check
      _
    $region51: #{transformer_decoder_forward.1} parent=1 // pred_check_branch
      %83 = sbr.rel (0) target = $region53
    $region52: #{transformer_decoder_forward.1} parent=1 // pred_region
      %s85 = ssub.s32 16, 16
      %86 = vsyncadd [#allocation6], %s85
      %s88 = sshll.u32 [#allocation7], 4
      %s89 = int_to_ptr.vmem [resolvable:$true] %s88
      %91 = dma.hbm_to_vmem [thread:$0]  %s12, 16, %s89, [#allocation6]
    $region53: #{transformer_decoder_forward.1} parent=1 // pred_fallthru
      _
    // Predicated region
    $region54: #{transformer_decoder_forward.1} parent=1 // pred_check
      _
    $region55: #{transformer_decoder_forward.1} parent=1 // pred_check_branch
      %93 = sbr.rel (0) target = $region57
    $region56: #{transformer_decoder_forward.1} parent=1 // pred_region
      _
    $region57: #{transformer_decoder_forward.1} parent=1 // pred_fallthru
      _
    // Predicated region
    $region58: #{transformer_decoder_forward.1} parent=1 // pred_check
      _
    $region59: #{transformer_decoder_forward.1} parent=1 // pred_check_branch
      %95 = sbr.rel (0) target = $region61
    $region60: #{transformer_decoder_forward.1} parent=1 // pred_region
      %s97 = ssub.s32 32, 32
      %98 = vsyncadd [#allocation9], %s97
      %s99 = sshll.u32 [#allocation8], 4
      %s100 = int_to_ptr.vmem [resolvable:$true] %s99
      %105 = dma.hbm_to_vmem [thread:$0]  %s14, 32, %s100, [#allocation9], 16, 16, 1
    $region61: #{transformer_decoder_forward.1} parent=1 // pred_fallthru
      _
    // Predicated region
    $region62: #{transformer_decoder_forward.1} parent=1 // pred_check
      _
    $region63: #{transformer_decoder_forward.1} parent=1 // pred_check_branch
      %107 = sbr.rel (0) target = $region65
    $region64: #{transformer_decoder_forward.1} parent=1 // pred_region
      %s109 = ssub.s32 32, 32
      %110 = vsyncadd [#allocation9], %s109
      %s111 = sshll.u32 [#allocation10], 4
      %s112 = int_to_ptr.vmem [resolvable:$true] %s111
      %117 = dma.hbm_to_vmem [thread:$0]  %s15, 32, %s112, [#allocation9], 16, 16, 1
    $region65: #{transformer_decoder_forward.1} parent=1 // pred_fallthru
      _
    // Predicated region
    $region66: #{transformer_decoder_forward.1} parent=1 // pred_check
      _
    $region67: #{transformer_decoder_forward.1} parent=1 // pred_check_branch
      %119 = sbr.rel (0) target = $region69
    $region68: #{transformer_decoder_forward.1} parent=1 // pred_region
      %s121 = ssub.s32 32, 32
      %122 = vsyncadd [#allocation12], %s121
      %s123 = sshll.u32 [#allocation11], 4
      %s124 = int_to_ptr.vmem [resolvable:$true] %s123
      %129 = dma.hbm_to_vmem [thread:$0]  %s16, 32, %s124, [#allocation12], 16, 16, 1
    $region69: #{transformer_decoder_forward.1} parent=1 // pred_fallthru
      _
    // Predicated region
    $region70: #{transformer_decoder_forward.1} parent=1 // pred_check
      _
    $region71: #{transformer_decoder_forward.1} parent=1 // pred_check_branch
      %131 = sbr.rel (0) target = $region73
    $region72: #{transformer_decoder_forward.1} parent=1 // pred_region
      %s133 = ssub.s32 32, 32
      %134 = vsyncadd [#allocation12], %s133
      %s135 = sshll.u32 [#allocation13], 4
      %s136 = int_to_ptr.vmem [resolvable:$true] %s135
      %141 = dma.hbm_to_vmem [thread:$0]  %s17, 32, %s136, [#allocation12], 16, 16, 1
    $region73: #{transformer_decoder_forward.1} parent=1 // pred_fallthru
      _
    // Predicated region
    $region74: #{transformer_decoder_forward.1} parent=1 // pred_check
      _
    $region75: #{transformer_decoder_forward.1} parent=1 // pred_check_branch
      %143 = sbr.rel (0) target = $region77
    $region76: #{transformer_decoder_forward.1} parent=1 // pred_region
      %s145 = ssub.s32 32, 32
      %146 = vsyncadd [#allocation15], %s145
      %s147 = sshll.u32 [#allocation14], 4
      %s148 = int_to_ptr.vmem [resolvable:$true] %s147
      %153 = dma.hbm_to_vmem [thread:$0]  %s18, 32, %s148, [#allocation15], 16, 16, 1
    $region77: #{transformer_decoder_forward.1} parent=1 // pred_fallthru
      _
    // Predicated region
    $region78: #{transformer_decoder_forward.1} parent=1 // pred_check
      _
    $region79: #{transformer_decoder_forward.1} parent=1 // pred_check_branch
      %155 = sbr.rel (0) target = $region81
    $region80: #{transformer_decoder_forward.1} parent=1 // pred_region
      %s157 = ssub.s32 32, 32
      %158 = vsyncadd [#allocation15], %s157
      %s159 = sshll.u32 [#allocation16], 4
      %s160 = int_to_ptr.vmem [resolvable:$true] %s159
      %165 = dma.hbm_to_vmem [thread:$0]  %s19, 32, %s160, [#allocation15], 16, 16, 1
    $region81: #{transformer_decoder_forward.1} parent=1 // pred_fallthru
      _
    // Predicated region
    $region82: #{transformer_decoder_forward.1} parent=1 // pred_check
      _
    $region83: #{transformer_decoder_forward.1} parent=1 // pred_check_branch
      %167 = sbr.rel (0) target = $region85
    $region84: #{transformer_decoder_forward.1} parent=1 // pred_region
      %s169 = ssub.s32 32, 32
      %170 = vsyncadd [#allocation18], %s169
      %s171 = sshll.u32 [#allocation17], 4
      %s172 = int_to_ptr.vmem [resolvable:$true] %s171
      %177 = dma.hbm_to_vmem [thread:$0]  %s20, 32, %s172, [#allocation18], 16, 16, 1
    $region85: #{transformer_decoder_forward.1} parent=1 // pred_fallthru
      _
    // Predicated region
    $region86: #{transformer_decoder_forward.1} parent=1 // pred_check
      _
    $region87: #{transformer_decoder_forward.1} parent=1 // pred_check_branch
      %179 = sbr.rel (0) target = $region89
    $region88: #{transformer_decoder_forward.1} parent=1 // pred_region
      _
    $region89: #{transformer_decoder_forward.1} parent=1 // pred_fallthru
      _
    // Predicated region
    $region90: #{transformer_decoder_forward.1} parent=1 // pred_check
      _
    $region91: #{transformer_decoder_forward.1} parent=1 // pred_check_branch
      %181 = sbr.rel (0) target = $region93
    $region92: #{transformer_decoder_forward.1} parent=1 // pred_region
      %s183 = ssub.s32 32, 32
      %184 = vsyncadd [#allocation18], %s183
      %s185 = sshll.u32 [#allocation19], 4
      %s186 = int_to_ptr.vmem [resolvable:$true] %s185
      %191 = dma.hbm_to_vmem [thread:$0]  %s22, 32, %s186, [#allocation18], 16, 16, 1
    $region93: #{transformer_decoder_forward.1} parent=1 // pred_fallthru
      _
    // Predicated region
    $region94: #{transformer_decoder_forward.1} parent=1 // pred_check
      _
    $region95: #{transformer_decoder_forward.1} parent=1 // pred_check_branch
      %193 = sbr.rel (0) target = $region97
    $region96: #{transformer_decoder_forward.1} parent=1 // pred_region
      _
    $region97: #{transformer_decoder_forward.1} parent=1 // pred_fallthru
      _
    // Predicated region
    $region98: #{transformer_decoder_forward.1} parent=1 // pred_check
      _
    $region99: #{transformer_decoder_forward.1} parent=1 // pred_check_branch
      %195 = sbr.rel (0) target = $region101
    $region100: #{transformer_decoder_forward.1} parent=1 // pred_region
      %s197 = ssub.s32 32, 32
      %198 = vsyncadd [#allocation21], %s197
      %s199 = sshll.u32 [#allocation20], 4
      %s200 = int_to_ptr.vmem [resolvable:$true] %s199
      %205 = dma.hbm_to_vmem [thread:$0]  %s24, 32, %s200, [#allocation21], 16, 16, 1
    $region101: #{transformer_decoder_forward.1} parent=1 // pred_fallthru
      _
    // Predicated region
    $region102: #{transformer_decoder_forward.1} parent=1 // pred_check
      _
    $region103: #{transformer_decoder_forward.1} parent=1 // pred_check_branch
      %207 = sbr.rel (0) target = $region105
    $region104: #{transformer_decoder_forward.1} parent=1 // pred_region
      _
    $region105: #{transformer_decoder_forward.1} parent=1 // pred_fallthru
      _
    // Predicated region
    $region106: #{transformer_decoder_forward.1} parent=1 // pred_check
      _
    $region107: #{transformer_decoder_forward.1} parent=1 // pred_check_branch
      %209 = sbr.rel (0) target = $region109
    $region108: #{transformer_decoder_forward.1} parent=1 // pred_region
      %s211 = ssub.s32 16, 16
      %212 = vsyncadd [#allocation21], %s211
      %s214 = sshll.u32 [#allocation22], 4
      %s215 = int_to_ptr.vmem [resolvable:$true] %s214
      %217 = dma.hbm_to_vmem [thread:$0]  %s26, 16, %s215, [#allocation21]
    $region109: #{transformer_decoder_forward.1} parent=1 // pred_fallthru
      _
    // Predicated region
    $region110: #{transformer_decoder_forward.1} parent=1 // pred_check
      _
    $region111: #{transformer_decoder_forward.1} parent=1 // pred_check_branch
      %219 = sbr.rel (0) target = $region113
    $region112: #{transformer_decoder_forward.1} parent=1 // pred_region
      %220 = dma.done [#allocation3], 128
    $region113: #{transformer_decoder_forward.1} parent=1 // pred_fallthru
      _
    // Predicated region
    $region114: #{transformer_decoder_forward.1} parent=1 // pred_check
      _
    $region115: #{transformer_decoder_forward.1} parent=1 // pred_check_branch
      %222 = sbr.rel (0) target = $region117
    $region116: #{transformer_decoder_forward.1} parent=1 // pred_region
      %223 = dma.done [#allocation6], 32
    $region117: #{transformer_decoder_forward.1} parent=1 // pred_fallthru
      _
    // Predicated region
    $region118: #{transformer_decoder_forward.1} parent=1 // pred_check
      _
    $region119: #{transformer_decoder_forward.1} parent=1 // pred_check_branch
      %225 = sbr.rel (0) target = $region121
    $region120: #{transformer_decoder_forward.1} parent=1 // pred_region
      %226 = dma.done [#allocation6], 16
    $region121: #{transformer_decoder_forward.1} parent=1 // pred_fallthru
      _
    // Predicated region
    $region122: #{transformer_decoder_forward.1} parent=1 // pred_check
      _
    $region123: #{transformer_decoder_forward.1} parent=1 // pred_check_branch
      %228 = sbr.rel (0) target = $region125
    $region124: #{transformer_decoder_forward.1} parent=1 // pred_region
      %229 = dma.done [#allocation9], 32
    $region125: #{transformer_decoder_forward.1} parent=1 // pred_fallthru
      _
    // Predicated region
    $region126: #{transformer_decoder_forward.1} parent=1 // pred_check
      _
    $region127: #{transformer_decoder_forward.1} parent=1 // pred_check_branch
      %231 = sbr.rel (0) target = $region129
    $region128: #{transformer_decoder_forward.1} parent=1 // pred_region
      %232 = dma.done [#allocation9], 32
    $region129: #{transformer_decoder_forward.1} parent=1 // pred_fallthru
      _
    // Predicated region
    $region130: #{transformer_decoder_forward.1} parent=1 // pred_check
      _
    $region131: #{transformer_decoder_forward.1} parent=1 // pred_check_branch
      %234 = sbr.rel (0) target = $region133
    $region132: #{transformer_decoder_forward.1} parent=1 // pred_region
      %235 = dma.done [#allocation12], 32
    $region133: #{transformer_decoder_forward.1} parent=1 // pred_fallthru
      _
    // Predicated region
    $region134: #{transformer_decoder_forward.1} parent=1 // pred_check
      _
    $region135: #{transformer_decoder_forward.1} parent=1 // pred_check_branch
      %237 = sbr.rel (0) target = $region137
    $region136: #{transformer_decoder_forward.1} parent=1 // pred_region
      %238 = dma.done [#allocation12], 32
    $region137: #{transformer_decoder_forward.1} parent=1 // pred_fallthru
      _
    // Predicated region
    $region138: #{transformer_decoder_forward.1} parent=1 // pred_check
      _
    $region139: #{transformer_decoder_forward.1} parent=1 // pred_check_branch
      %240 = sbr.rel (0) target = $region141
    $region140: #{transformer_decoder_forward.1} parent=1 // pred_region
      %241 = dma.done [#allocation15], 32
    $region141: #{transformer_decoder_forward.1} parent=1 // pred_fallthru
      _
    // Predicated region
    $region142: #{transformer_decoder_forward.1} parent=1 // pred_check
      _
    $region143: #{transformer_decoder_forward.1} parent=1 // pred_check_branch
      %243 = sbr.rel (0) target = $region145
    $region144: #{transformer_decoder_forward.1} parent=1 // pred_region
      %244 = dma.done [#allocation15], 32
    $region145: #{transformer_decoder_forward.1} parent=1 // pred_fallthru
      _
    // Predicated region
    $region146: #{transformer_decoder_forward.1} parent=1 // pred_check
      _
    $region147: #{transformer_decoder_forward.1} parent=1 // pred_check_branch
      %246 = sbr.rel (0) target = $region149
    $region148: #{transformer_decoder_forward.1} parent=1 // pred_region
      %247 = dma.done [#allocation18], 32
    $region149: #{transformer_decoder_forward.1} parent=1 // pred_fallthru
      _
    // Predicated region
    $region150: #{transformer_decoder_forward.1} parent=1 // pred_check
      _
    $region151: #{transformer_decoder_forward.1} parent=1 // pred_check_branch
      %249 = sbr.rel (0) target = $region153
    $region152: #{transformer_decoder_forward.1} parent=1 // pred_region
      %250 = dma.done [#allocation18], 32
    $region153: #{transformer_decoder_forward.1} parent=1 // pred_fallthru
      _
    // Predicated region
    $region154: #{transformer_decoder_forward.1} parent=1 // pred_check
      _
    $region155: #{transformer_decoder_forward.1} parent=1 // pred_check_branch
      %252 = sbr.rel (0) target = $region157
    $region156: #{transformer_decoder_forward.1} parent=1 // pred_region
      %253 = dma.done [#allocation21], 32
    $region157: #{transformer_decoder_forward.1} parent=1 // pred_fallthru
      _
    // Predicated region
    $region158: #{transformer_decoder_forward.1} parent=1 // pred_check
      _
    $region159: #{transformer_decoder_forward.1} parent=1 // pred_check_branch
      %255 = sbr.rel (0) target = $region161
    $region160: #{transformer_decoder_forward.1} parent=1 // pred_region
      %256 = dma.done [#allocation21], 16
    $region161: #{transformer_decoder_forward.1} parent=1 // pred_fallthru
      _
    %v258 = vld [vmem:[%s0] sm:$0xff]
    %v259 = vld [vmem:[%s0 + $0x8] sm:$0xff]
    %v260 = vld [vmem:[#allocation2] sm:$0xff]
    %v261 = vadd.f32 %v258, %v260
    %v262 = vadd.f32 %v259, %v260
    %v263 = vld [vmem:[%s1] sm:$0xff]
    %v264 = vld [vmem:[%s1 + $0x8] sm:$0xff]
    %v265 = vld [vmem:[%s1 + $0x10] sm:$0xff]
    %v266 = vld [vmem:[%s1 + $0x18] sm:$0xff]
    %v267 = vld [vmem:[%s3] sm:$0xff]
    %v268 = vld [vmem:[%s3 + $0x8] sm:$0xff]
    %v269 = vld [vmem:[%s4] sm:$0xff]
    %v270 = vld [vmem:[%s4 + $0x8] sm:$0xff]
    %v271 = vpack.c.bf16 %v264, %v263
    %v272 = vpack.c.bf16 %v266, %v265
    %v273 = vld [vmem:[%s11] sm:$0xf]
    %v274 = vld [vmem:[%s11 + $0x4] sm:$0xf]
    %v275 = vld [vmem:[%s11 + $0x8] sm:$0xf]
    %v276 = vld [vmem:[%s11 + $0xc] sm:$0xf]
    %v277 = vld [vmem:[#allocation7] sm:$0x1]
    %v279 = vlaneseq
    %v280 = vshrl.u32 %v279, 7
    %v281 = vsub.s32 0, %v280
    %v282 = vrot.slane %v277, %v281
    %v288 = vunpack.c.l.b16 %v273
    %v289 = vunpack.c.l.b16 %v274
    %v290 = vunpack.c.l.b16 %v275
    %v291 = vunpack.c.l.b16 %v276
    %v292 = vpack.c.b16 %v289, %v288
    %v293 = vpack.c.b16 %v291, %v290
    %vm296 = vcmask 261120
    %v298 = vsel %vm296, %v271, 0
    %v301 = vsel %vm296, %v272, 0
    %303 = vmatprep.subr.bf16.mxu0 0
    %304 = vmatpush1.bf16.msra.mxu0 %v292
    %305 = vmatprep.subr.bf16.mxu0 0
    %306 = vmatpush1.bf16.msra.mxu0 %v293
    %307 = vmatprep.subr.bf16.mxu0 0
    %308 = vmatpush1.bf16.msra.mxu0 0
    %309 = vmatprep.subr.bf16.mxu0 0
    %310 = vmatpush1.bf16.msra.mxu0 0
    %311 = vmatprep.subr.bf16.mxu0 0
    %312 = vmatpush1.bf16.msra.mxu0 0
    %313 = vmatprep.subr.bf16.mxu0 0
    %314 = vmatpush1.bf16.msra.mxu0 0
    %315 = vmatprep.subr.bf16.mxu0 0
    %316 = vmatpush1.bf16.msra.mxu0 0
    %317 = vmatprep.subr.bf16.mxu0 0
    %318 = vmatpush1.bf16.msra.mxu0 0
    %319 = vmatprep.subr.bf16.mxu0 0
    %320 = vmatpush1.bf16.msra.mxu0 0
    %321 = vmatprep.subr.bf16.mxu0 0
    %322 = vmatpush1.bf16.msra.mxu0 0
    %323 = vmatprep.subr.bf16.mxu0 0
    %324 = vmatpush1.bf16.msra.mxu0 0
    %325 = vmatprep.subr.bf16.mxu0 0
    %326 = vmatpush1.bf16.msra.mxu0 0
    %327 = vmatprep.subr.bf16.mxu0 0
    %328 = vmatpush1.bf16.msra.mxu0 0
    %329 = vmatprep.subr.bf16.mxu0 0
    %330 = vmatpush1.bf16.msra.mxu0 0
    %331 = vmatprep.subr.bf16.mxu0 0
    %332 = vmatpush1.bf16.msra.mxu0 0
    %333 = vmatprep.subr.bf16.mxu0 0
    %334 = vmatpush1.bf16.msra.mxu0 0
    %335 = vmatprep.mubr.bf16.mxu0 0
    %336 = vmatmul.mubr.bf16.gmra.mrb[0].mxu0 %v298
    %v337 = vpop.f32.mrb[0].mxu0
    %v338 = vadd.f32 %v282, %v337
    %v339 = vpop.f32.mrb[0].mxu0
    %v340 = vpop.f32.mrb[0].mxu0
    %v341 = vadd.f32 %v282, %v340
    %v342 = vpop.f32.mrb[0].mxu0
    %343 = vmatprep.mubr.bf16.mxu0 0
    %344 = vmatmul.mubr.bf16.gmra.mrb[0].mxu0 %v301
    %v345 = vpop.f32.mrb[0].mxu0
    %v346 = vadd.f32 %v282, %v345
    %v347 = vpop.f32.mrb[0].mxu0
    %v348 = vpop.f32.mrb[0].mxu0
    %v349 = vadd.f32 %v282, %v348
    %v350 = vpop.f32.mrb[0].mxu0
    %351 = vdwg.mxu0
    %v352 = vpack.c.bf16 %v262, %v261
    %v353 = vld [vmem:[%s5] sm:$0xf]
    %v354 = vld [vmem:[%s5 + $0x4] sm:$0xf]
    %v355 = vld [vmem:[%s5 + $0x8] sm:$0xf]
    %v356 = vld [vmem:[%s5 + $0xc] sm:$0xf]
    %v357 = vld [vmem:[%s6] sm:$0x1]
    %v359 = vlaneseq
    %v360 = vshrl.u32 %v359, 7
    %v361 = vsub.s32 0, %v360
    %v362 = vrot.slane %v357, %v361
    %v368 = vunpack.c.l.b16 %v353
    %v369 = vunpack.c.l.b16 %v354
    %v370 = vunpack.c.l.b16 %v355
    %v371 = vunpack.c.l.b16 %v356
    %v372 = vpack.c.b16 %v369, %v368
    %v373 = vpack.c.b16 %v371, %v370
    %v377 = vsel %vm296, %v352, 0
    %379 = vmatprep.subr.bf16.mxu0 0
    %380 = vmatpush1.bf16.msra.mxu0 %v372
    %381 = vmatprep.subr.bf16.mxu0 0
    %382 = vmatpush1.bf16.msra.mxu0 %v373
    %383 = vmatprep.subr.bf16.mxu0 0
    %384 = vmatpush1.bf16.msra.mxu0 0
    %385 = vmatprep.subr.bf16.mxu0 0
    %386 = vmatpush1.bf16.msra.mxu0 0
    %387 = vmatprep.subr.bf16.mxu0 0
    %388 = vmatpush1.bf16.msra.mxu0 0
    %389 = vmatprep.subr.bf16.mxu0 0
    %390 = vmatpush1.bf16.msra.mxu0 0
    %391 = vmatprep.subr.bf16.mxu0 0
    %392 = vmatpush1.bf16.msra.mxu0 0
    %393 = vmatprep.subr.bf16.mxu0 0
    %394 = vmatpush1.bf16.msra.mxu0 0
    %395 = vmatprep.subr.bf16.mxu0 0
    %396 = vmatpush1.bf16.msra.mxu0 0
    %397 = vmatprep.subr.bf16.mxu0 0
    %398 = vmatpush1.bf16.msra.mxu0 0
    %399 = vmatprep.subr.bf16.mxu0 0
    %400 = vmatpush1.bf16.msra.mxu0 0
    %401 = vmatprep.subr.bf16.mxu0 0
    %402 = vmatpush1.bf16.msra.mxu0 0
    %403 = vmatprep.subr.bf16.mxu0 0
    %404 = vmatpush1.bf16.msra.mxu0 0
    %405 = vmatprep.subr.bf16.mxu0 0
    %406 = vmatpush1.bf16.msra.mxu0 0
    %407 = vmatprep.subr.bf16.mxu0 0
    %408 = vmatpush1.bf16.msra.mxu0 0
    %409 = vmatprep.subr.bf16.mxu0 0
    %410 = vmatpush1.bf16.msra.mxu0 0
    %411 = vmatprep.mubr.bf16.mxu0 0
    %412 = vmatmul.mubr.bf16.gmra.mrb[0].mxu0 %v377
    %v413 = vpop.f32.mrb[0].mxu0
    %v414 = vadd.f32 %v362, %v413
    %v415 = vpop.f32.mrb[0].mxu0
    %v416 = vpop.f32.mrb[0].mxu0
    %v417 = vadd.f32 %v362, %v416
    %v418 = vpop.f32.mrb[0].mxu0
    %419 = vdwg.mxu0
    %v420 = vld [vmem:[%s7] sm:$0xf]
    %v421 = vld [vmem:[%s7 + $0x4] sm:$0xf]
    %v422 = vld [vmem:[%s7 + $0x8] sm:$0xf]
    %v423 = vld [vmem:[%s7 + $0xc] sm:$0xf]
    %v424 = vld [vmem:[%s8] sm:$0x1]
    %427 = vrot.lane.b32.xlu0 %v414, 120
    %v428 = vpop.permute.xlu0 %427
    %429 = vrot.lane.b32.xlu0 %v417, 120
    %v430 = vpop.permute.xlu0 %429
    %433 = vrot.lane.b32.xlu0 %v414, 112
    %v434 = vpop.permute.xlu0 %433
    %435 = vrot.lane.b32.xlu0 %v417, 112
    %v436 = vpop.permute.xlu0 %435
    %439 = vrot.lane.b32.xlu0 %v414, 104
    %v440 = vpop.permute.xlu0 %439
    %441 = vrot.lane.b32.xlu0 %v417, 104
    %v442 = vpop.permute.xlu0 %441
    %v445 = vpack.c.bf16 %v417, %v414
    %v446 = vpack.c.bf16 %v430, %v428
    %v447 = vpack.c.bf16 %v436, %v434
    %v448 = vpack.c.bf16 %v442, %v440
    %450 = vrot.lane.b32.xlu0 %v445, 96
    %v451 = vpop.permute.xlu0 %450
    %vm452 = vcmask 64512
    %v454 = vsel %vm452, %v445, 0
    %v457 = vsel %vm452, %v451, 0
    %459 = vmatprep.subr.bf16.mxu0 0
    %460 = vmatpush1.bf16.xpose.msra.mxu0 %v457
    %461 = vmatprep.subr.bf16.mxu0 0
    %462 = vmatpush1.bf16.xpose.msra.mxu0 0
    %463 = vmatprep.subr.bf16.mxu0 0
    %464 = vmatpush1.bf16.xpose.msra.mxu0 0
    %465 = vmatprep.subr.bf16.mxu0 0
    %466 = vmatpush1.bf16.xpose.msra.mxu0 0
    %467 = vmatprep.subr.bf16.mxu0 0
    %468 = vmatpush1.bf16.xpose.msra.mxu0 0
    %469 = vmatprep.subr.bf16.mxu0 0
    %470 = vmatpush1.bf16.xpose.msra.mxu0 0
    %471 = vmatprep.subr.bf16.mxu0 0
    %472 = vmatpush1.bf16.xpose.msra.mxu0 0
    %473 = vmatprep.subr.bf16.mxu0 0
    %474 = vmatpush1.bf16.xpose.msra.mxu0 0
    %475 = vmatprep.subr.bf16.mxu0 0
    %476 = vmatpush1.bf16.xpose.msra.mxu0 0
    %477 = vmatprep.subr.bf16.mxu0 0
    %478 = vmatpush1.bf16.xpose.msra.mxu0 0
    %479 = vmatprep.subr.bf16.mxu0 0
    %480 = vmatpush1.bf16.xpose.msra.mxu0 0
    %481 = vmatprep.subr.bf16.mxu0 0
    %482 = vmatpush1.bf16.xpose.msra.mxu0 0
    %483 = vmatprep.subr.bf16.mxu0 0
    %484 = vmatpush1.bf16.xpose.msra.mxu0 0
    %485 = vmatprep.subr.bf16.mxu0 0
    %486 = vmatpush1.bf16.xpose.msra.mxu0 0
    %487 = vmatprep.subr.bf16.mxu0 0
    %488 = vmatpush1.bf16.xpose.msra.mxu0 0
    %489 = vmatprep.subr.bf16.mxu0 0
    %490 = vmatpush1.bf16.xpose.msra.mxu0 0
    %491 = vmatprep.mubr.bf16.mxu0 0
    %492 = vmatmul.mubr.bf16.gmra.mrb[0].mxu0 %v454
    %v493 = vpop.f32.mrb[0].mxu0
    %v494 = vadd.f32 0.0, %v493
    %v495 = vpop.f32.mrb[0].mxu0
    %v496 = vpop.f32.mrb[0].mxu0
    %v497 = vadd.f32 0.0, %v496
    %v498 = vpop.f32.mrb[0].mxu0
    %499 = vdwg.mxu0
    %501 = vrot.lane.b32.xlu0 %v446, 96
    %v502 = vpop.permute.xlu0 %501
    %v504 = vsel %vm452, %v446, 0
    %v507 = vsel %vm452, %v502, 0
    %509 = vmatprep.subr.bf16.mxu0 0
    %510 = vmatpush1.bf16.xpose.msra.mxu0 %v507
    %511 = vmatprep.subr.bf16.mxu0 0
    %512 = vmatpush1.bf16.xpose.msra.mxu0 0
    %513 = vmatprep.subr.bf16.mxu0 0
    %514 = vmatpush1.bf16.xpose.msra.mxu0 0
    %515 = vmatprep.subr.bf16.mxu0 0
    %516 = vmatpush1.bf16.xpose.msra.mxu0 0
    %517 = vmatprep.subr.bf16.mxu0 0
    %518 = vmatpush1.bf16.xpose.msra.mxu0 0
    %519 = vmatprep.subr.bf16.mxu0 0
    %520 = vmatpush1.bf16.xpose.msra.mxu0 0
    %521 = vmatprep.subr.bf16.mxu0 0
    %522 = vmatpush1.bf16.xpose.msra.mxu0 0
    %523 = vmatprep.subr.bf16.mxu0 0
    %524 = vmatpush1.bf16.xpose.msra.mxu0 0
    %525 = vmatprep.subr.bf16.mxu0 0
    %526 = vmatpush1.bf16.xpose.msra.mxu0 0
    %527 = vmatprep.subr.bf16.mxu0 0
    %528 = vmatpush1.bf16.xpose.msra.mxu0 0
    %529 = vmatprep.subr.bf16.mxu0 0
    %530 = vmatpush1.bf16.xpose.msra.mxu0 0
    %531 = vmatprep.subr.bf16.mxu0 0
    %532 = vmatpush1.bf16.xpose.msra.mxu0 0
    %533 = vmatprep.subr.bf16.mxu0 0
    %534 = vmatpush1.bf16.xpose.msra.mxu0 0
    %535 = vmatprep.subr.bf16.mxu0 0
    %536 = vmatpush1.bf16.xpose.msra.mxu0 0
    %537 = vmatprep.subr.bf16.mxu0 0
    %538 = vmatpush1.bf16.xpose.msra.mxu0 0
    %539 = vmatprep.subr.bf16.mxu0 0
    %540 = vmatpush1.bf16.xpose.msra.mxu0 0
    %541 = vmatprep.mubr.bf16.mxu0 0
    %542 = vmatmul.mubr.bf16.gmra.mrb[0].mxu0 %v504
    %v543 = vpop.f32.mrb[0].mxu0
    %v544 = vadd.f32 0.0, %v543
    %v545 = vpop.f32.mrb[0].mxu0
    %v546 = vpop.f32.mrb[0].mxu0
    %v547 = vadd.f32 0.0, %v546
    %v548 = vpop.f32.mrb[0].mxu0
    %549 = vdwg.mxu0
    %551 = vrot.lane.b32.xlu0 %v447, 96
    %v552 = vpop.permute.xlu0 %551
    %v554 = vsel %vm452, %v447, 0
    %v557 = vsel %vm452, %v552, 0
    %559 = vmatprep.subr.bf16.mxu0 0
    %560 = vmatpush1.bf16.xpose.msra.mxu0 %v557
    %561 = vmatprep.subr.bf16.mxu0 0
    %562 = vmatpush1.bf16.xpose.msra.mxu0 0
    %563 = vmatprep.subr.bf16.mxu0 0
    %564 = vmatpush1.bf16.xpose.msra.mxu0 0
    %565 = vmatprep.subr.bf16.mxu0 0
    %566 = vmatpush1.bf16.xpose.msra.mxu0 0
    %567 = vmatprep.subr.bf16.mxu0 0
    %568 = vmatpush1.bf16.xpose.msra.mxu0 0
    %569 = vmatprep.subr.bf16.mxu0 0
    %570 = vmatpush1.bf16.xpose.msra.mxu0 0
    %571 = vmatprep.subr.bf16.mxu0 0
    %572 = vmatpush1.bf16.xpose.msra.mxu0 0
    %573 = vmatprep.subr.bf16.mxu0 0
    %574 = vmatpush1.bf16.xpose.msra.mxu0 0
    %575 = vmatprep.subr.bf16.mxu0 0
    %576 = vmatpush1.bf16.xpose.msra.mxu0 0
    %577 = vmatprep.subr.bf16.mxu0 0
    %578 = vmatpush1.bf16.xpose.msra.mxu0 0
    %579 = vmatprep.subr.bf16.mxu0 0
    %580 = vmatpush1.bf16.xpose.msra.mxu0 0
    %581 = vmatprep.subr.bf16.mxu0 0
    %582 = vmatpush1.bf16.xpose.msra.mxu0 0
    %583 = vmatprep.subr.bf16.mxu0 0
    %584 = vmatpush1.bf16.xpose.msra.mxu0 0
    %585 = vmatprep.subr.bf16.mxu0 0
    %586 = vmatpush1.bf16.xpose.msra.mxu0 0
    %587 = vmatprep.subr.bf16.mxu0 0
    %588 = vmatpush1.bf16.xpose.msra.mxu0 0
    %589 = vmatprep.subr.bf16.mxu0 0
    %590 = vmatpush1.bf16.xpose.msra.mxu0 0
    %591 = vmatprep.mubr.bf16.mxu0 0
    %592 = vmatmul.mubr.bf16.gmra.mrb[0].mxu0 %v554
    %v593 = vpop.f32.mrb[0].mxu0
    %v594 = vadd.f32 0.0, %v593
    %v595 = vpop.f32.mrb[0].mxu0
    %v596 = vpop.f32.mrb[0].mxu0
    %v597 = vadd.f32 0.0, %v596
    %v598 = vpop.f32.mrb[0].mxu0
    %599 = vdwg.mxu0
    %601 = vrot.lane.b32.xlu0 %v448, 96
    %v602 = vpop.permute.xlu0 %601
    %v604 = vsel %vm452, %v448, 0
    %v607 = vsel %vm452, %v602, 0
    %609 = vmatprep.subr.bf16.mxu0 0
    %610 = vmatpush1.bf16.xpose.msra.mxu0 %v607
    %611 = vmatprep.subr.bf16.mxu0 0
    %612 = vmatpush1.bf16.xpose.msra.mxu0 0
    %613 = vmatprep.subr.bf16.mxu0 0
    %614 = vmatpush1.bf16.xpose.msra.mxu0 0
    %615 = vmatprep.subr.bf16.mxu0 0
    %616 = vmatpush1.bf16.xpose.msra.mxu0 0
    %617 = vmatprep.subr.bf16.mxu0 0
    %618 = vmatpush1.bf16.xpose.msra.mxu0 0
    %619 = vmatprep.subr.bf16.mxu0 0
    %620 = vmatpush1.bf16.xpose.msra.mxu0 0
    %621 = vmatprep.subr.bf16.mxu0 0
    %622 = vmatpush1.bf16.xpose.msra.mxu0 0
    %623 = vmatprep.subr.bf16.mxu0 0
    %624 = vmatpush1.bf16.xpose.msra.mxu0 0
    %625 = vmatprep.subr.bf16.mxu0 0
    %626 = vmatpush1.bf16.xpose.msra.mxu0 0
    %627 = vmatprep.subr.bf16.mxu0 0
    %628 = vmatpush1.bf16.xpose.msra.mxu0 0
    %629 = vmatprep.subr.bf16.mxu0 0
    %630 = vmatpush1.bf16.xpose.msra.mxu0 0
    %631 = vmatprep.subr.bf16.mxu0 0
    %632 = vmatpush1.bf16.xpose.msra.mxu0 0
    %633 = vmatprep.subr.bf16.mxu0 0
    %634 = vmatpush1.bf16.xpose.msra.mxu0 0
    %635 = vmatprep.subr.bf16.mxu0 0
    %636 = vmatpush1.bf16.xpose.msra.mxu0 0
    %637 = vmatprep.subr.bf16.mxu0 0
    %638 = vmatpush1.bf16.xpose.msra.mxu0 0
    %639 = vmatprep.subr.bf16.mxu0 0
    %640 = vmatpush1.bf16.xpose.msra.mxu0 0
    %641 = vmatprep.mubr.bf16.mxu0 0
    %642 = vmatmul.mubr.bf16.gmra.mrb[0].mxu0 %v604
    %v643 = vpop.f32.mrb[0].mxu0
    %v644 = vadd.f32 0.0, %v643
    %v645 = vpop.f32.mrb[0].mxu0
    %v646 = vpop.f32.mrb[0].mxu0
    %v647 = vadd.f32 0.0, %v646
    %v648 = vpop.f32.mrb[0].mxu0
    %649 = vdwg.mxu0
    %v650 = vmul.f32 %v494, 0.35355338
    %v651 = vmul.f32 %v497, 0.35355338
    %v652 = vmul.f32 %v544, 0.35355338
    %v653 = vmul.f32 %v547, 0.35355338
    %v654 = vmul.f32 %v594, 0.35355338
    %v655 = vmul.f32 %v597, 0.35355338
    %v656 = vmul.f32 %v644, 0.35355338
    %v657 = vmul.f32 %v647, 0.35355338
    %v658 = vadd.f32 %v650, %v267
    %v659 = vadd.f32 %v651, %v268
    %v660 = vadd.f32 %v652, %v267
    %v661 = vadd.f32 %v653, %v268
    %v662 = vadd.f32 %v654, %v267
    %v663 = vadd.f32 %v655, %v268
    %v664 = vadd.f32 %v656, %v267
    %v665 = vadd.f32 %v657, %v268
    %vm666 = vcmask 130048
    %v667 = vsel %vm666, %v658, -inf
    %668 = vmax.xlane.f32.xlu0 %v667
    %v669 = vpop.xlane.xlu0 %668
    %v670 = vsel %vm666, %v659, -inf
    %671 = vmax.xlane.f32.xlu0 %v670
    %v672 = vpop.xlane.xlu0 %671
    %v673 = vsel %vm666, %v660, -inf
    %674 = vmax.xlane.f32.xlu0 %v673
    %v675 = vpop.xlane.xlu0 %674
    %v676 = vsel %vm666, %v661, -inf
    %677 = vmax.xlane.f32.xlu0 %v676
    %v678 = vpop.xlane.xlu0 %677
    %v679 = vsel %vm666, %v662, -inf
    %680 = vmax.xlane.f32.xlu0 %v679
    %v681 = vpop.xlane.xlu0 %680
    %v682 = vsel %vm666, %v663, -inf
    %683 = vmax.xlane.f32.xlu0 %v682
    %v684 = vpop.xlane.xlu0 %683
    %v685 = vsel %vm666, %v664, -inf
    %686 = vmax.xlane.f32.xlu0 %v685
    %v687 = vpop.xlane.xlu0 %686
    %v688 = vsel %vm666, %v665, -inf
    %689 = vmax.xlane.f32.xlu0 %v688
    %v690 = vpop.xlane.xlu0 %689
    %v691 = vsub.f32 %v658, %v669
    %v692 = vsub.f32 %v659, %v672
    %v693 = vsub.f32 %v660, %v675
    %v694 = vsub.f32 %v661, %v678
    %v695 = vsub.f32 %v662, %v681
    %v696 = vsub.f32 %v663, %v684
    %v697 = vsub.f32 %v664, %v687
    %v698 = vsub.f32 %v665, %v690
    %v699 = vmul.f32 %v691, 1.442695
    %v700 = vpow.pop %v699
    %v701 = vmul.f32 %v692, 1.442695
    %v702 = vpow.pop %v701
    %v703 = vmul.f32 %v693, 1.442695
    %v704 = vpow.pop %v703
    %v705 = vmul.f32 %v694, 1.442695
    %v706 = vpow.pop %v705
    %v707 = vmul.f32 %v695, 1.442695
    %v708 = vpow.pop %v707
    %v709 = vmul.f32 %v696, 1.442695
    %v710 = vpow.pop %v709
    %v711 = vmul.f32 %v697, 1.442695
    %v712 = vpow.pop %v711
    %v713 = vmul.f32 %v698, 1.442695
    %v714 = vpow.pop %v713
    %v715 = vsel %vm666, %v700, 0.0
    %716 = vadd.xlane.f32.xlu0 %v715
    %v717 = vpop.xlane.xlu0 %716
    %v718 = vsel %vm666, %v702, 0.0
    %719 = vadd.xlane.f32.xlu0 %v718
    %v720 = vpop.xlane.xlu0 %719
    %v721 = vsel %vm666, %v704, 0.0
    %722 = vadd.xlane.f32.xlu0 %v721
    %v723 = vpop.xlane.xlu0 %722
    %v724 = vsel %vm666, %v706, 0.0
    %725 = vadd.xlane.f32.xlu0 %v724
    %v726 = vpop.xlane.xlu0 %725
    %v727 = vsel %vm666, %v708, 0.0
    %728 = vadd.xlane.f32.xlu0 %v727
    %v729 = vpop.xlane.xlu0 %728
    %v730 = vsel %vm666, %v710, 0.0
    %731 = vadd.xlane.f32.xlu0 %v730
    %v732 = vpop.xlane.xlu0 %731
    %v733 = vsel %vm666, %v712, 0.0
    %734 = vadd.xlane.f32.xlu0 %v733
    %v735 = vpop.xlane.xlu0 %734
    %v736 = vsel %vm666, %v714, 0.0
    %737 = vadd.xlane.f32.xlu0 %v736
    %v738 = vpop.xlane.xlu0 %737
    %v739 = vrcp.pop %v717
    %v740 = vrcp.pop %v720
    %v741 = vrcp.pop %v723
    %v742 = vrcp.pop %v726
    %v743 = vrcp.pop %v729
    %v744 = vrcp.pop %v732
    %v745 = vrcp.pop %v735
    %v746 = vrcp.pop %v738
    %v747 = vmul.f32 %v700, %v739
    %v748 = vmul.f32 %v702, %v740
    %v749 = vmul.f32 %v704, %v741
    %v750 = vmul.f32 %v706, %v742
    %v751 = vmul.f32 %v708, %v743
    %v752 = vmul.f32 %v710, %v744
    %v753 = vmul.f32 %v712, %v745
    %v754 = vmul.f32 %v714, %v746
    %v755 = vpack.c.bf16 %v748, %v747
    %v756 = vpack.c.bf16 %v750, %v749
    %v757 = vpack.c.bf16 %v752, %v751
    %v758 = vpack.c.bf16 %v754, %v753
    %759 = vrot.lane.b32.xlu0 %v445, 64
    %v760 = vpop.permute.xlu0 %759
    %v763 = vsel %vm666, %v755, 0
    %765 = vmatprep.subr.bf16.mxu0 0
    %766 = vmatpush1.bf16.msra.mxu0 %v760
    %767 = vmatprep.subr.bf16.mxu0 0
    %768 = vmatpush1.bf16.msra.mxu0 0
    %769 = vmatprep.subr.bf16.mxu0 0
    %770 = vmatpush1.bf16.msra.mxu0 0
    %771 = vmatprep.subr.bf16.mxu0 0
    %772 = vmatpush1.bf16.msra.mxu0 0
    %773 = vmatprep.subr.bf16.mxu0 0
    %774 = vmatpush1.bf16.msra.mxu0 0
    %775 = vmatprep.subr.bf16.mxu0 0
    %776 = vmatpush1.bf16.msra.mxu0 0
    %777 = vmatprep.subr.bf16.mxu0 0
    %778 = vmatpush1.bf16.msra.mxu0 0
    %779 = vmatprep.subr.bf16.mxu0 0
    %780 = vmatpush1.bf16.msra.mxu0 0
    %781 = vmatprep.subr.bf16.mxu0 0
    %782 = vmatpush1.bf16.msra.mxu0 0
    %783 = vmatprep.subr.bf16.mxu0 0
    %784 = vmatpush1.bf16.msra.mxu0 0
    %785 = vmatprep.subr.bf16.mxu0 0
    %786 = vmatpush1.bf16.msra.mxu0 0
    %787 = vmatprep.subr.bf16.mxu0 0
    %788 = vmatpush1.bf16.msra.mxu0 0
    %789 = vmatprep.subr.bf16.mxu0 0
    %790 = vmatpush1.bf16.msra.mxu0 0
    %791 = vmatprep.subr.bf16.mxu0 0
    %792 = vmatpush1.bf16.msra.mxu0 0
    %793 = vmatprep.subr.bf16.mxu0 0
    %794 = vmatpush1.bf16.msra.mxu0 0
    %795 = vmatprep.subr.bf16.mxu0 0
    %796 = vmatpush1.bf16.msra.mxu0 0
    %797 = vmatprep.mubr.bf16.mxu0 0
    %798 = vmatmul.mubr.bf16.gmra.mrb[0].mxu0 %v763
    %v799 = vpop.f32.mrb[0].mxu0
    %v800 = vadd.f32 0.0, %v799
    %v801 = vpop.f32.mrb[0].mxu0
    %v802 = vpop.f32.mrb[0].mxu0
    %v803 = vadd.f32 0.0, %v802
    %v804 = vpop.f32.mrb[0].mxu0
    %805 = vdwg.mxu0
    %806 = vrot.lane.b32.xlu0 %v446, 64
    %v807 = vpop.permute.xlu0 %806
    %v810 = vsel %vm666, %v756, 0
    %812 = vmatprep.subr.bf16.mxu0 0
    %813 = vmatpush1.bf16.msra.mxu0 %v807
    %814 = vmatprep.subr.bf16.mxu0 0
    %815 = vmatpush1.bf16.msra.mxu0 0
    %816 = vmatprep.subr.bf16.mxu0 0
    %817 = vmatpush1.bf16.msra.mxu0 0
    %818 = vmatprep.subr.bf16.mxu0 0
    %819 = vmatpush1.bf16.msra.mxu0 0
    %820 = vmatprep.subr.bf16.mxu0 0
    %821 = vmatpush1.bf16.msra.mxu0 0
    %822 = vmatprep.subr.bf16.mxu0 0
    %823 = vmatpush1.bf16.msra.mxu0 0
    %824 = vmatprep.subr.bf16.mxu0 0
    %825 = vmatpush1.bf16.msra.mxu0 0
    %826 = vmatprep.subr.bf16.mxu0 0
    %827 = vmatpush1.bf16.msra.mxu0 0
    %828 = vmatprep.subr.bf16.mxu0 0
    %829 = vmatpush1.bf16.msra.mxu0 0
    %830 = vmatprep.subr.bf16.mxu0 0
    %831 = vmatpush1.bf16.msra.mxu0 0
    %832 = vmatprep.subr.bf16.mxu0 0
    %833 = vmatpush1.bf16.msra.mxu0 0
    %834 = vmatprep.subr.bf16.mxu0 0
    %835 = vmatpush1.bf16.msra.mxu0 0
    %836 = vmatprep.subr.bf16.mxu0 0
    %837 = vmatpush1.bf16.msra.mxu0 0
    %838 = vmatprep.subr.bf16.mxu0 0
    %839 = vmatpush1.bf16.msra.mxu0 0
    %840 = vmatprep.subr.bf16.mxu0 0
    %841 = vmatpush1.bf16.msra.mxu0 0
    %842 = vmatprep.subr.bf16.mxu0 0
    %843 = vmatpush1.bf16.msra.mxu0 0
    %844 = vmatprep.mubr.bf16.mxu0 0
    %845 = vmatmul.mubr.bf16.gmra.mrb[0].mxu0 %v810
    %v846 = vpop.f32.mrb[0].mxu0
    %v847 = vadd.f32 0.0, %v846
    %v848 = vpop.f32.mrb[0].mxu0
    %v849 = vpop.f32.mrb[0].mxu0
    %v850 = vadd.f32 0.0, %v849
    %v851 = vpop.f32.mrb[0].mxu0
    %852 = vdwg.mxu0
    %853 = vrot.lane.b32.xlu0 %v447, 64
    %v854 = vpop.permute.xlu0 %853
    %v857 = vsel %vm666, %v757, 0
    %859 = vmatprep.subr.bf16.mxu0 0
    %860 = vmatpush1.bf16.msra.mxu0 %v854
    %861 = vmatprep.subr.bf16.mxu0 0
    %862 = vmatpush1.bf16.msra.mxu0 0
    %863 = vmatprep.subr.bf16.mxu0 0
    %864 = vmatpush1.bf16.msra.mxu0 0
    %865 = vmatprep.subr.bf16.mxu0 0
    %866 = vmatpush1.bf16.msra.mxu0 0
    %867 = vmatprep.subr.bf16.mxu0 0
    %868 = vmatpush1.bf16.msra.mxu0 0
    %869 = vmatprep.subr.bf16.mxu0 0
    %870 = vmatpush1.bf16.msra.mxu0 0
    %871 = vmatprep.subr.bf16.mxu0 0
    %872 = vmatpush1.bf16.msra.mxu0 0
    %873 = vmatprep.subr.bf16.mxu0 0
    %874 = vmatpush1.bf16.msra.mxu0 0
    %875 = vmatprep.subr.bf16.mxu0 0
    %876 = vmatpush1.bf16.msra.mxu0 0
    %877 = vmatprep.subr.bf16.mxu0 0
    %878 = vmatpush1.bf16.msra.mxu0 0
    %879 = vmatprep.subr.bf16.mxu0 0
    %880 = vmatpush1.bf16.msra.mxu0 0
    %881 = vmatprep.subr.bf16.mxu0 0
    %882 = vmatpush1.bf16.msra.mxu0 0
    %883 = vmatprep.subr.bf16.mxu0 0
    %884 = vmatpush1.bf16.msra.mxu0 0
    %885 = vmatprep.subr.bf16.mxu0 0
    %886 = vmatpush1.bf16.msra.mxu0 0
    %887 = vmatprep.subr.bf16.mxu0 0
    %888 = vmatpush1.bf16.msra.mxu0 0
    %889 = vmatprep.subr.bf16.mxu0 0
    %890 = vmatpush1.bf16.msra.mxu0 0
    %891 = vmatprep.mubr.bf16.mxu0 0
    %892 = vmatmul.mubr.bf16.gmra.mrb[0].mxu0 %v857
    %v893 = vpop.f32.mrb[0].mxu0
    %v894 = vadd.f32 0.0, %v893
    %v895 = vpop.f32.mrb[0].mxu0
    %v896 = vpop.f32.mrb[0].mxu0
    %v897 = vadd.f32 0.0, %v896
    %v898 = vpop.f32.mrb[0].mxu0
    %899 = vdwg.mxu0
    %900 = vrot.lane.b32.xlu0 %v448, 64
    %v901 = vpop.permute.xlu0 %900
    %v904 = vsel %vm666, %v758, 0
    %906 = vmatprep.subr.bf16.mxu0 0
    %907 = vmatpush1.bf16.msra.mxu0 %v901
    %908 = vmatprep.subr.bf16.mxu0 0
    %909 = vmatpush1.bf16.msra.mxu0 0
    %910 = vmatprep.subr.bf16.mxu0 0
    %911 = vmatpush1.bf16.msra.mxu0 0
    %912 = vmatprep.subr.bf16.mxu0 0
    %913 = vmatpush1.bf16.msra.mxu0 0
    %914 = vmatprep.subr.bf16.mxu0 0
    %915 = vmatpush1.bf16.msra.mxu0 0
    %916 = vmatprep.subr.bf16.mxu0 0
    %917 = vmatpush1.bf16.msra.mxu0 0
    %918 = vmatprep.subr.bf16.mxu0 0
    %919 = vmatpush1.bf16.msra.mxu0 0
    %920 = vmatprep.subr.bf16.mxu0 0
    %921 = vmatpush1.bf16.msra.mxu0 0
    %922 = vmatprep.subr.bf16.mxu0 0
    %923 = vmatpush1.bf16.msra.mxu0 0
    %924 = vmatprep.subr.bf16.mxu0 0
    %925 = vmatpush1.bf16.msra.mxu0 0
    %926 = vmatprep.subr.bf16.mxu0 0
    %927 = vmatpush1.bf16.msra.mxu0 0
    %928 = vmatprep.subr.bf16.mxu0 0
    %929 = vmatpush1.bf16.msra.mxu0 0
    %930 = vmatprep.subr.bf16.mxu0 0
    %931 = vmatpush1.bf16.msra.mxu0 0
    %932 = vmatprep.subr.bf16.mxu0 0
    %933 = vmatpush1.bf16.msra.mxu0 0
    %934 = vmatprep.subr.bf16.mxu0 0
    %935 = vmatpush1.bf16.msra.mxu0 0
    %936 = vmatprep.subr.bf16.mxu0 0
    %937 = vmatpush1.bf16.msra.mxu0 0
    %938 = vmatprep.mubr.bf16.mxu0 0
    %939 = vmatmul.mubr.bf16.gmra.mrb[0].mxu0 %v904
    %v940 = vpop.f32.mrb[0].mxu0
    %v941 = vadd.f32 0.0, %v940
    %v942 = vpop.f32.mrb[0].mxu0
    %v943 = vpop.f32.mrb[0].mxu0
    %v944 = vadd.f32 0.0, %v943
    %v945 = vpop.f32.mrb[0].mxu0
    %946 = vdwg.mxu0
    %949 = vrot.lane.b32.xlu0 %v847, 8
    %v950 = vpop.permute.xlu0 %949
    %951 = vrot.lane.b32.xlu0 %v850, 8
    %v952 = vpop.permute.xlu0 %951
    %957 = vrot.lane.b32.xlu0 %v894, 16
    %v958 = vpop.permute.xlu0 %957
    %959 = vrot.lane.b32.xlu0 %v897, 16
    %v960 = vpop.permute.xlu0 %959
    %965 = vrot.lane.b32.xlu0 %v941, 24
    %v966 = vpop.permute.xlu0 %965
    %967 = vrot.lane.b32.xlu0 %v944, 24
    %v968 = vpop.permute.xlu0 %967
    %v971 = vsel %vm452, %v800, %v950
    %v972 = vsel %vm452, %v803, %v952
    %v973 = vsel %vm666, %v971, %v958
    %v974 = vsel %vm666, %v972, %v960
    %vm975 = vcmask 195584
    %v976 = vsel %vm975, %v973, %v966
    %v977 = vsel %vm975, %v974, %v968
    %v978 = vpack.c.bf16 %v977, %v976
    %v980 = vlaneseq
    %v981 = vshrl.u32 %v980, 7
    %v982 = vsub.s32 0, %v981
    %v983 = vrot.slane %v424, %v982
    %v989 = vunpack.c.l.b16 %v420
    %v990 = vunpack.c.l.b16 %v421
    %v991 = vunpack.c.l.b16 %v422
    %v992 = vunpack.c.l.b16 %v423
    %v993 = vpack.c.b16 %v990, %v989
    %v994 = vpack.c.b16 %v992, %v991
    %v998 = vsel %vm296, %v978, 0
    %1000 = vmatprep.subr.bf16.mxu0 0
    %1001 = vmatpush1.bf16.msra.mxu0 %v993
    %1002 = vmatprep.subr.bf16.mxu0 0
    %1003 = vmatpush1.bf16.msra.mxu0 %v994
    %1004 = vmatprep.subr.bf16.mxu0 0
    %1005 = vmatpush1.bf16.msra.mxu0 0
    %1006 = vmatprep.subr.bf16.mxu0 0
    %1007 = vmatpush1.bf16.msra.mxu0 0
    %1008 = vmatprep.subr.bf16.mxu0 0
    %1009 = vmatpush1.bf16.msra.mxu0 0
    %1010 = vmatprep.subr.bf16.mxu0 0
    %1011 = vmatpush1.bf16.msra.mxu0 0
    %1012 = vmatprep.subr.bf16.mxu0 0
    %1013 = vmatpush1.bf16.msra.mxu0 0
    %1014 = vmatprep.subr.bf16.mxu0 0
    %1015 = vmatpush1.bf16.msra.mxu0 0
    %1016 = vmatprep.subr.bf16.mxu0 0
    %1017 = vmatpush1.bf16.msra.mxu0 0
    %1018 = vmatprep.subr.bf16.mxu0 0
    %1019 = vmatpush1.bf16.msra.mxu0 0
    %1020 = vmatprep.subr.bf16.mxu0 0
    %1021 = vmatpush1.bf16.msra.mxu0 0
    %1022 = vmatprep.subr.bf16.mxu0 0
    %1023 = vmatpush1.bf16.msra.mxu0 0
    %1024 = vmatprep.subr.bf16.mxu0 0
    %1025 = vmatpush1.bf16.msra.mxu0 0
    %1026 = vmatprep.subr.bf16.mxu0 0
    %1027 = vmatpush1.bf16.msra.mxu0 0
    %1028 = vmatprep.subr.bf16.mxu0 0
    %1029 = vmatpush1.bf16.msra.mxu0 0
    %1030 = vmatprep.subr.bf16.mxu0 0
    %1031 = vmatpush1.bf16.msra.mxu0 0
    %1032 = vmatprep.mubr.bf16.mxu0 0
    %1033 = vmatmul.mubr.bf16.gmra.mrb[0].mxu0 %v998
    %v1034 = vpop.f32.mrb[0].mxu0
    %v1035 = vadd.f32 %v983, %v1034
    %v1036 = vpop.f32.mrb[0].mxu0
    %v1037 = vpop.f32.mrb[0].mxu0
    %v1038 = vadd.f32 %v983, %v1037
    %v1039 = vpop.f32.mrb[0].mxu0
    %1040 = vdwg.mxu0
    %v1041 = vadd.f32 %v261, %v1035
    %v1042 = vadd.f32 %v262, %v1038
    %v1043 = vld [vmem:[#allocation10] sm:$0x1]
    %v1044 = vld [vmem:[#allocation11] sm:$0x1]
    %v1045 = vsel %vm296, %v1041, 0.0
    %1046 = vadd.xlane.f32.xlu0 %v1045
    %v1047 = vpop.xlane.xlu0 %1046
    %v1048 = vsel %vm296, %v1042, 0.0
    %1049 = vadd.xlane.f32.xlu0 %v1048
    %v1050 = vpop.xlane.xlu0 %1049
    %v1051 = vrcp.pop 32.0
    %v1052 = vmul.f32 %v1047, %v1051
    %v1053 = vmul.f32 %v1050, %v1051
    %v1054 = vmul.f32 %v1041, %v1041
    %v1055 = vmul.f32 %v1042, %v1042
    %v1056 = vsel %vm296, %v1054, 0.0
    %1057 = vadd.xlane.f32.xlu0 %v1056
    %v1058 = vpop.xlane.xlu0 %1057
    %v1059 = vsel %vm296, %v1055, 0.0
    %1060 = vadd.xlane.f32.xlu0 %v1059
    %v1061 = vpop.xlane.xlu0 %1060
    %v1062 = vmul.f32 %v1058, %v1051
    %v1063 = vmul.f32 %v1061, %v1051
    %v1064 = vmul.f32 %v1052, %v1052
    %v1065 = vmul.f32 %v1053, %v1053
    %v1066 = vsub.f32 %v1062, %v1064
    %v1067 = vsub.f32 %v1063, %v1065
    %v1068 = vsub.f32 %v1041, %v1052
    %v1069 = vsub.f32 %v1042, %v1053
    %v1070 = vadd.f32 %v1066, 1e-05
    %v1071 = vadd.f32 %v1067, 1e-05
    %v1072 = vrsqrt.pop %v1070
    %v1073 = vrsqrt.pop %v1071
    %v1074 = vmul.f32 %v1068, %v1072
    %v1075 = vmul.f32 %v1069, %v1073
    %v1077 = vlaneseq
    %v1078 = vshrl.u32 %v1077, 7
    %v1079 = vsub.s32 0, %v1078
    %v1080 = vrot.slane %v1043, %v1079
    %v1082 = vmul.f32 %v1074, %v1080
    %v1083 = vmul.f32 %v1075, %v1080
    %v1085 = vlaneseq
    %v1086 = vshrl.u32 %v1085, 7
    %v1087 = vsub.s32 0, %v1086
    %v1088 = vrot.slane %v1044, %v1087
    %v1090 = vadd.f32 %v1082, %v1088
    %v1091 = vadd.f32 %v1083, %v1088
    %v1092 = vpack.c.bf16 %v1091, %v1090
    %v1093 = vld [vmem:[%s9] sm:$0xf]
    %v1094 = vld [vmem:[%s9 + $0x4] sm:$0xf]
    %v1095 = vld [vmem:[%s9 + $0x8] sm:$0xf]
    %v1096 = vld [vmem:[%s9 + $0xc] sm:$0xf]
    %v1097 = vld [vmem:[#allocation5] sm:$0x1]
    %v1099 = vlaneseq
    %v1100 = vshrl.u32 %v1099, 7
    %v1101 = vsub.s32 0, %v1100
    %v1102 = vrot.slane %v1097, %v1101
    %v1108 = vunpack.c.l.b16 %v1093
    %v1109 = vunpack.c.l.b16 %v1094
    %v1110 = vunpack.c.l.b16 %v1095
    %v1111 = vunpack.c.l.b16 %v1096
    %v1112 = vpack.c.b16 %v1109, %v1108
    %v1113 = vpack.c.b16 %v1111, %v1110
    %v1117 = vsel %vm296, %v1092, 0
    %1119 = vmatprep.subr.bf16.mxu0 0
    %1120 = vmatpush1.bf16.msra.mxu0 %v1112
    %1121 = vmatprep.subr.bf16.mxu0 0
    %1122 = vmatpush1.bf16.msra.mxu0 %v1113
    %1123 = vmatprep.subr.bf16.mxu0 0
    %1124 = vmatpush1.bf16.msra.mxu0 0
    %1125 = vmatprep.subr.bf16.mxu0 0
    %1126 = vmatpush1.bf16.msra.mxu0 0
    %1127 = vmatprep.subr.bf16.mxu0 0
    %1128 = vmatpush1.bf16.msra.mxu0 0
    %1129 = vmatprep.subr.bf16.mxu0 0
    %1130 = vmatpush1.bf16.msra.mxu0 0
    %1131 = vmatprep.subr.bf16.mxu0 0
    %1132 = vmatpush1.bf16.msra.mxu0 0
    %1133 = vmatprep.subr.bf16.mxu0 0
    %1134 = vmatpush1.bf16.msra.mxu0 0
    %1135 = vmatprep.subr.bf16.mxu0 0
    %1136 = vmatpush1.bf16.msra.mxu0 0
    %1137 = vmatprep.subr.bf16.mxu0 0
    %1138 = vmatpush1.bf16.msra.mxu0 0
    %1139 = vmatprep.subr.bf16.mxu0 0
    %1140 = vmatpush1.bf16.msra.mxu0 0
    %1141 = vmatprep.subr.bf16.mxu0 0
    %1142 = vmatpush1.bf16.msra.mxu0 0
    %1143 = vmatprep.subr.bf16.mxu0 0
    %1144 = vmatpush1.bf16.msra.mxu0 0
    %1145 = vmatprep.subr.bf16.mxu0 0
    %1146 = vmatpush1.bf16.msra.mxu0 0
    %1147 = vmatprep.subr.bf16.mxu0 0
    %1148 = vmatpush1.bf16.msra.mxu0 0
    %1149 = vmatprep.subr.bf16.mxu0 0
    %1150 = vmatpush1.bf16.msra.mxu0 0
    %1151 = vmatprep.mubr.bf16.mxu0 0
    %1152 = vmatmul.mubr.bf16.gmra.mrb[0].mxu0 %v1117
    %v1153 = vpop.f32.mrb[0].mxu0
    %v1154 = vadd.f32 %v1102, %v1153
    %v1155 = vpop.f32.mrb[0].mxu0
    %v1156 = vpop.f32.mrb[0].mxu0
    %v1157 = vadd.f32 %v1102, %v1156
    %v1158 = vpop.f32.mrb[0].mxu0
    %1159 = vdwg.mxu0
    %v1160 = vld [vmem:[%s13] sm:$0xf]
    %v1161 = vld [vmem:[%s13 + $0x4] sm:$0xf]
    %v1162 = vld [vmem:[%s13 + $0x8] sm:$0xf]
    %v1163 = vld [vmem:[%s13 + $0xc] sm:$0xf]
    %v1164 = vld [vmem:[#allocation8] sm:$0x1]
    %1167 = vrot.lane.b32.xlu0 %v1154, 120
    %v1168 = vpop.permute.xlu0 %1167
    %1169 = vrot.lane.b32.xlu0 %v1157, 120
    %v1170 = vpop.permute.xlu0 %1169
    %1173 = vrot.lane.b32.xlu0 %v1154, 112
    %v1174 = vpop.permute.xlu0 %1173
    %1175 = vrot.lane.b32.xlu0 %v1157, 112
    %v1176 = vpop.permute.xlu0 %1175
    %1179 = vrot.lane.b32.xlu0 %v1154, 104
    %v1180 = vpop.permute.xlu0 %1179
    %1181 = vrot.lane.b32.xlu0 %v1157, 104
    %v1182 = vpop.permute.xlu0 %1181
    %v1185 = vpack.c.bf16 %v1157, %v1154
    %v1186 = vpack.c.bf16 %v1170, %v1168
    %v1187 = vpack.c.bf16 %v1176, %v1174
    %v1188 = vpack.c.bf16 %v1182, %v1180
    %1193 = vrot.lane.b32.xlu0 %v338, 120
    %v1194 = vpop.permute.xlu0 %1193
    %1195 = vrot.lane.b32.xlu0 %v341, 120
    %v1196 = vpop.permute.xlu0 %1195
    %1197 = vrot.lane.b32.xlu0 %v346, 120
    %v1198 = vpop.permute.xlu0 %1197
    %1199 = vrot.lane.b32.xlu0 %v349, 120
    %v1200 = vpop.permute.xlu0 %1199
    %1205 = vrot.lane.b32.xlu0 %v338, 112
    %v1206 = vpop.permute.xlu0 %1205
    %1207 = vrot.lane.b32.xlu0 %v341, 112
    %v1208 = vpop.permute.xlu0 %1207
    %1209 = vrot.lane.b32.xlu0 %v346, 112
    %v1210 = vpop.permute.xlu0 %1209
    %1211 = vrot.lane.b32.xlu0 %v349, 112
    %v1212 = vpop.permute.xlu0 %1211
    %1217 = vrot.lane.b32.xlu0 %v338, 104
    %v1218 = vpop.permute.xlu0 %1217
    %1219 = vrot.lane.b32.xlu0 %v341, 104
    %v1220 = vpop.permute.xlu0 %1219
    %1221 = vrot.lane.b32.xlu0 %v346, 104
    %v1222 = vpop.permute.xlu0 %1221
    %1223 = vrot.lane.b32.xlu0 %v349, 104
    %v1224 = vpop.permute.xlu0 %1223
    %v1229 = vpack.c.bf16 %v341, %v338
    %v1230 = vpack.c.bf16 %v349, %v346
    %v1231 = vpack.c.bf16 %v1196, %v1194
    %v1232 = vpack.c.bf16 %v1200, %v1198
    %v1233 = vpack.c.bf16 %v1208, %v1206
    %v1234 = vpack.c.bf16 %v1212, %v1210
    %v1235 = vpack.c.bf16 %v1220, %v1218
    %v1236 = vpack.c.bf16 %v1224, %v1222
    %v1238 = vsel %vm452, %v1185, 0
    %v1241 = vsel %vm452, %v1229, 0
    %v1244 = vsel %vm452, %v1230, 0
    %1246 = vmatprep.subr.bf16.mxu0 0
    %1247 = vmatpush1.bf16.xpose.msra.mxu0 %v1241
    %1248 = vmatprep.subr.bf16.mxu0 0
    %1249 = vmatpush1.bf16.xpose.msra.mxu0 %v1244
    %1250 = vmatprep.subr.bf16.mxu0 0
    %1251 = vmatpush1.bf16.xpose.msra.mxu0 0
    %1252 = vmatprep.subr.bf16.mxu0 0
    %1253 = vmatpush1.bf16.xpose.msra.mxu0 0
    %1254 = vmatprep.subr.bf16.mxu0 0
    %1255 = vmatpush1.bf16.xpose.msra.mxu0 0
    %1256 = vmatprep.subr.bf16.mxu0 0
    %1257 = vmatpush1.bf16.xpose.msra.mxu0 0
    %1258 = vmatprep.subr.bf16.mxu0 0
    %1259 = vmatpush1.bf16.xpose.msra.mxu0 0
    %1260 = vmatprep.subr.bf16.mxu0 0
    %1261 = vmatpush1.bf16.xpose.msra.mxu0 0
    %1262 = vmatprep.subr.bf16.mxu0 0
    %1263 = vmatpush1.bf16.xpose.msra.mxu0 0
    %1264 = vmatprep.subr.bf16.mxu0 0
    %1265 = vmatpush1.bf16.xpose.msra.mxu0 0
    %1266 = vmatprep.subr.bf16.mxu0 0
    %1267 = vmatpush1.bf16.xpose.msra.mxu0 0
    %1268 = vmatprep.subr.bf16.mxu0 0
    %1269 = vmatpush1.bf16.xpose.msra.mxu0 0
    %1270 = vmatprep.subr.bf16.mxu0 0
    %1271 = vmatpush1.bf16.xpose.msra.mxu0 0
    %1272 = vmatprep.subr.bf16.mxu0 0
    %1273 = vmatpush1.bf16.xpose.msra.mxu0 0
    %1274 = vmatprep.subr.bf16.mxu0 0
    %1275 = vmatpush1.bf16.xpose.msra.mxu0 0
    %1276 = vmatprep.subr.bf16.mxu0 0
    %1277 = vmatpush1.bf16.xpose.msra.mxu0 0
    %1278 = vmatprep.mubr.bf16.mxu0 0
    %1279 = vmatmul.mubr.bf16.gmra.mrb[0].mxu0 %v1238
    %v1280 = vpop.f32.mrb[0].mxu0
    %v1281 = vadd.f32 0.0, %v1280
    %v1282 = vpop.f32.mrb[0].mxu0
    %v1283 = vpop.f32.mrb[0].mxu0
    %v1284 = vadd.f32 0.0, %v1283
    %v1285 = vpop.f32.mrb[0].mxu0
    %1286 = vdwg.mxu0
    %v1288 = vsel %vm452, %v1186, 0
    %v1291 = vsel %vm452, %v1231, 0
    %v1294 = vsel %vm452, %v1232, 0
    %1296 = vmatprep.subr.bf16.mxu0 0
    %1297 = vmatpush1.bf16.xpose.msra.mxu0 %v1291
    %1298 = vmatprep.subr.bf16.mxu0 0
    %1299 = vmatpush1.bf16.xpose.msra.mxu0 %v1294
    %1300 = vmatprep.subr.bf16.mxu0 0
    %1301 = vmatpush1.bf16.xpose.msra.mxu0 0
    %1302 = vmatprep.subr.bf16.mxu0 0
    %1303 = vmatpush1.bf16.xpose.msra.mxu0 0
    %1304 = vmatprep.subr.bf16.mxu0 0
    %1305 = vmatpush1.bf16.xpose.msra.mxu0 0
    %1306 = vmatprep.subr.bf16.mxu0 0
    %1307 = vmatpush1.bf16.xpose.msra.mxu0 0
    %1308 = vmatprep.subr.bf16.mxu0 0
    %1309 = vmatpush1.bf16.xpose.msra.mxu0 0
    %1310 = vmatprep.subr.bf16.mxu0 0
    %1311 = vmatpush1.bf16.xpose.msra.mxu0 0
    %1312 = vmatprep.subr.bf16.mxu0 0
    %1313 = vmatpush1.bf16.xpose.msra.mxu0 0
    %1314 = vmatprep.subr.bf16.mxu0 0
    %1315 = vmatpush1.bf16.xpose.msra.mxu0 0
    %1316 = vmatprep.subr.bf16.mxu0 0
    %1317 = vmatpush1.bf16.xpose.msra.mxu0 0
    %1318 = vmatprep.subr.bf16.mxu0 0
    %1319 = vmatpush1.bf16.xpose.msra.mxu0 0
    %1320 = vmatprep.subr.bf16.mxu0 0
    %1321 = vmatpush1.bf16.xpose.msra.mxu0 0
    %1322 = vmatprep.subr.bf16.mxu0 0
    %1323 = vmatpush1.bf16.xpose.msra.mxu0 0
    %1324 = vmatprep.subr.bf16.mxu0 0
    %1325 = vmatpush1.bf16.xpose.msra.mxu0 0
    %1326 = vmatprep.subr.bf16.mxu0 0
    %1327 = vmatpush1.bf16.xpose.msra.mxu0 0
    %1328 = vmatprep.mubr.bf16.mxu0 0
    %1329 = vmatmul.mubr.bf16.gmra.mrb[0].mxu0 %v1288
    %v1330 = vpop.f32.mrb[0].mxu0
    %v1331 = vadd.f32 0.0, %v1330
    %v1332 = vpop.f32.mrb[0].mxu0
    %v1333 = vpop.f32.mrb[0].mxu0
    %v1334 = vadd.f32 0.0, %v1333
    %v1335 = vpop.f32.mrb[0].mxu0
    %1336 = vdwg.mxu0
    %v1338 = vsel %vm452, %v1187, 0
    %v1341 = vsel %vm452, %v1233, 0
    %v1344 = vsel %vm452, %v1234, 0
    %1346 = vmatprep.subr.bf16.mxu0 0
    %1347 = vmatpush1.bf16.xpose.msra.mxu0 %v1341
    %1348 = vmatprep.subr.bf16.mxu0 0
    %1349 = vmatpush1.bf16.xpose.msra.mxu0 %v1344
    %1350 = vmatprep.subr.bf16.mxu0 0
    %1351 = vmatpush1.bf16.xpose.msra.mxu0 0
    %1352 = vmatprep.subr.bf16.mxu0 0
    %1353 = vmatpush1.bf16.xpose.msra.mxu0 0
    %1354 = vmatprep.subr.bf16.mxu0 0
    %1355 = vmatpush1.bf16.xpose.msra.mxu0 0
    %1356 = vmatprep.subr.bf16.mxu0 0
    %1357 = vmatpush1.bf16.xpose.msra.mxu0 0
    %1358 = vmatprep.subr.bf16.mxu0 0
    %1359 = vmatpush1.bf16.xpose.msra.mxu0 0
    %1360 = vmatprep.subr.bf16.mxu0 0
    %1361 = vmatpush1.bf16.xpose.msra.mxu0 0
    %1362 = vmatprep.subr.bf16.mxu0 0
    %1363 = vmatpush1.bf16.xpose.msra.mxu0 0
    %1364 = vmatprep.subr.bf16.mxu0 0
    %1365 = vmatpush1.bf16.xpose.msra.mxu0 0
    %1366 = vmatprep.subr.bf16.mxu0 0
    %1367 = vmatpush1.bf16.xpose.msra.mxu0 0
    %1368 = vmatprep.subr.bf16.mxu0 0
    %1369 = vmatpush1.bf16.xpose.msra.mxu0 0
    %1370 = vmatprep.subr.bf16.mxu0 0
    %1371 = vmatpush1.bf16.xpose.msra.mxu0 0
    %1372 = vmatprep.subr.bf16.mxu0 0
    %1373 = vmatpush1.bf16.xpose.msra.mxu0 0
    %1374 = vmatprep.subr.bf16.mxu0 0
    %1375 = vmatpush1.bf16.xpose.msra.mxu0 0
    %1376 = vmatprep.subr.bf16.mxu0 0
    %1377 = vmatpush1.bf16.xpose.msra.mxu0 0
    %1378 = vmatprep.mubr.bf16.mxu0 0
    %1379 = vmatmul.mubr.bf16.gmra.mrb[0].mxu0 %v1338
    %v1380 = vpop.f32.mrb[0].mxu0
    %v1381 = vadd.f32 0.0, %v1380
    %v1382 = vpop.f32.mrb[0].mxu0
    %v1383 = vpop.f32.mrb[0].mxu0
    %v1384 = vadd.f32 0.0, %v1383
    %v1385 = vpop.f32.mrb[0].mxu0
    %1386 = vdwg.mxu0
    %v1388 = vsel %vm452, %v1188, 0
    %v1391 = vsel %vm452, %v1235, 0
    %v1394 = vsel %vm452, %v1236, 0
    %1396 = vmatprep.subr.bf16.mxu0 0
    %1397 = vmatpush1.bf16.xpose.msra.mxu0 %v1391
    %1398 = vmatprep.subr.bf16.mxu0 0
    %1399 = vmatpush1.bf16.xpose.msra.mxu0 %v1394
    %1400 = vmatprep.subr.bf16.mxu0 0
    %1401 = vmatpush1.bf16.xpose.msra.mxu0 0
    %1402 = vmatprep.subr.bf16.mxu0 0
    %1403 = vmatpush1.bf16.xpose.msra.mxu0 0
    %1404 = vmatprep.subr.bf16.mxu0 0
    %1405 = vmatpush1.bf16.xpose.msra.mxu0 0
    %1406 = vmatprep.subr.bf16.mxu0 0
    %1407 = vmatpush1.bf16.xpose.msra.mxu0 0
    %1408 = vmatprep.subr.bf16.mxu0 0
    %1409 = vmatpush1.bf16.xpose.msra.mxu0 0
    %1410 = vmatprep.subr.bf16.mxu0 0
    %1411 = vmatpush1.bf16.xpose.msra.mxu0 0
    %1412 = vmatprep.subr.bf16.mxu0 0
    %1413 = vmatpush1.bf16.xpose.msra.mxu0 0
    %1414 = vmatprep.subr.bf16.mxu0 0
    %1415 = vmatpush1.bf16.xpose.msra.mxu0 0
    %1416 = vmatprep.subr.bf16.mxu0 0
    %1417 = vmatpush1.bf16.xpose.msra.mxu0 0
    %1418 = vmatprep.subr.bf16.mxu0 0
    %1419 = vmatpush1.bf16.xpose.msra.mxu0 0
    %1420 = vmatprep.subr.bf16.mxu0 0
    %1421 = vmatpush1.bf16.xpose.msra.mxu0 0
    %1422 = vmatprep.subr.bf16.mxu0 0
    %1423 = vmatpush1.bf16.xpose.msra.mxu0 0
    %1424 = vmatprep.subr.bf16.mxu0 0
    %1425 = vmatpush1.bf16.xpose.msra.mxu0 0
    %1426 = vmatprep.subr.bf16.mxu0 0
    %1427 = vmatpush1.bf16.xpose.msra.mxu0 0
    %1428 = vmatprep.mubr.bf16.mxu0 0
    %1429 = vmatmul.mubr.bf16.gmra.mrb[0].mxu0 %v1388
    %v1430 = vpop.f32.mrb[0].mxu0
    %v1431 = vadd.f32 0.0, %v1430
    %v1432 = vpop.f32.mrb[0].mxu0
    %v1433 = vpop.f32.mrb[0].mxu0
    %v1434 = vadd.f32 0.0, %v1433
    %v1435 = vpop.f32.mrb[0].mxu0
    %1436 = vdwg.mxu0
    %v1437 = vmul.f32 %v1281, 0.35355338
    %v1438 = vmul.f32 %v1284, 0.35355338
    %v1439 = vmul.f32 %v1331, 0.35355338
    %v1440 = vmul.f32 %v1334, 0.35355338
    %v1441 = vmul.f32 %v1381, 0.35355338
    %v1442 = vmul.f32 %v1384, 0.35355338
    %v1443 = vmul.f32 %v1431, 0.35355338
    %v1444 = vmul.f32 %v1434, 0.35355338
    %v1445 = vadd.f32 %v1437, %v269
    %v1446 = vadd.f32 %v1438, %v270
    %v1447 = vadd.f32 %v1439, %v269
    %v1448 = vadd.f32 %v1440, %v270
    %v1449 = vadd.f32 %v1441, %v269
    %v1450 = vadd.f32 %v1442, %v270
    %v1451 = vadd.f32 %v1443, %v269
    %v1452 = vadd.f32 %v1444, %v270
    %v1453 = vsel %vm296, %v1445, -inf
    %1454 = vmax.xlane.f32.xlu0 %v1453
    %v1455 = vpop.xlane.xlu0 %1454
    %v1456 = vsel %vm296, %v1446, -inf
    %1457 = vmax.xlane.f32.xlu0 %v1456
    %v1458 = vpop.xlane.xlu0 %1457
    %v1459 = vsel %vm296, %v1447, -inf
    %1460 = vmax.xlane.f32.xlu0 %v1459
    %v1461 = vpop.xlane.xlu0 %1460
    %v1462 = vsel %vm296, %v1448, -inf
    %1463 = vmax.xlane.f32.xlu0 %v1462
    %v1464 = vpop.xlane.xlu0 %1463
    %v1465 = vsel %vm296, %v1449, -inf
    %1466 = vmax.xlane.f32.xlu0 %v1465
    %v1467 = vpop.xlane.xlu0 %1466
    %v1468 = vsel %vm296, %v1450, -inf
    %1469 = vmax.xlane.f32.xlu0 %v1468
    %v1470 = vpop.xlane.xlu0 %1469
    %v1471 = vsel %vm296, %v1451, -inf
    %1472 = vmax.xlane.f32.xlu0 %v1471
    %v1473 = vpop.xlane.xlu0 %1472
    %v1474 = vsel %vm296, %v1452, -inf
    %1475 = vmax.xlane.f32.xlu0 %v1474
    %v1476 = vpop.xlane.xlu0 %1475
    %v1477 = vsub.f32 %v1445, %v1455
    %v1478 = vsub.f32 %v1446, %v1458
    %v1479 = vsub.f32 %v1447, %v1461
    %v1480 = vsub.f32 %v1448, %v1464
    %v1481 = vsub.f32 %v1449, %v1467
    %v1482 = vsub.f32 %v1450, %v1470
    %v1483 = vsub.f32 %v1451, %v1473
    %v1484 = vsub.f32 %v1452, %v1476
    %v1485 = vmul.f32 %v1477, 1.442695
    %v1486 = vpow.pop %v1485
    %v1487 = vmul.f32 %v1478, 1.442695
    %v1488 = vpow.pop %v1487
    %v1489 = vmul.f32 %v1479, 1.442695
    %v1490 = vpow.pop %v1489
    %v1491 = vmul.f32 %v1480, 1.442695
    %v1492 = vpow.pop %v1491
    %v1493 = vmul.f32 %v1481, 1.442695
    %v1494 = vpow.pop %v1493
    %v1495 = vmul.f32 %v1482, 1.442695
    %v1496 = vpow.pop %v1495
    %v1497 = vmul.f32 %v1483, 1.442695
    %v1498 = vpow.pop %v1497
    %v1499 = vmul.f32 %v1484, 1.442695
    %v1500 = vpow.pop %v1499
    %v1501 = vsel %vm296, %v1486, 0.0
    %1502 = vadd.xlane.f32.xlu0 %v1501
    %v1503 = vpop.xlane.xlu0 %1502
    %v1504 = vsel %vm296, %v1488, 0.0
    %1505 = vadd.xlane.f32.xlu0 %v1504
    %v1506 = vpop.xlane.xlu0 %1505
    %v1507 = vsel %vm296, %v1490, 0.0
    %1508 = vadd.xlane.f32.xlu0 %v1507
    %v1509 = vpop.xlane.xlu0 %1508
    %v1510 = vsel %vm296, %v1492, 0.0
    %1511 = vadd.xlane.f32.xlu0 %v1510
    %v1512 = vpop.xlane.xlu0 %1511
    %v1513 = vsel %vm296, %v1494, 0.0
    %1514 = vadd.xlane.f32.xlu0 %v1513
    %v1515 = vpop.xlane.xlu0 %1514
    %v1516 = vsel %vm296, %v1496, 0.0
    %1517 = vadd.xlane.f32.xlu0 %v1516
    %v1518 = vpop.xlane.xlu0 %1517
    %v1519 = vsel %vm296, %v1498, 0.0
    %1520 = vadd.xlane.f32.xlu0 %v1519
    %v1521 = vpop.xlane.xlu0 %1520
    %v1522 = vsel %vm296, %v1500, 0.0
    %1523 = vadd.xlane.f32.xlu0 %v1522
    %v1524 = vpop.xlane.xlu0 %1523
    %v1525 = vrcp.pop %v1503
    %v1526 = vrcp.pop %v1506
    %v1527 = vrcp.pop %v1509
    %v1528 = vrcp.pop %v1512
    %v1529 = vrcp.pop %v1515
    %v1530 = vrcp.pop %v1518
    %v1531 = vrcp.pop %v1521
    %v1532 = vrcp.pop %v1524
    %v1533 = vmul.f32 %v1486, %v1525
    %v1534 = vmul.f32 %v1488, %v1526
    %v1535 = vmul.f32 %v1490, %v1527
    %v1536 = vmul.f32 %v1492, %v1528
    %v1537 = vmul.f32 %v1494, %v1529
    %v1538 = vmul.f32 %v1496, %v1530
    %v1539 = vmul.f32 %v1498, %v1531
    %v1540 = vmul.f32 %v1500, %v1532
    %v1541 = vpack.c.bf16 %v1534, %v1533
    %v1542 = vpack.c.bf16 %v1536, %v1535
    %v1543 = vpack.c.bf16 %v1538, %v1537
    %v1544 = vpack.c.bf16 %v1540, %v1539
    %1547 = vrot.lane.b32.xlu0 %v1229, 96
    %v1548 = vpop.permute.xlu0 %1547
    %1549 = vrot.lane.b32.xlu0 %v1230, 96
    %v1550 = vpop.permute.xlu0 %1549
    %v1554 = vsel %vm296, %v1541, 0
    %1556 = vmatprep.subr.bf16.mxu0 0
    %1557 = vmatpush1.bf16.msra.mxu0 %v1548
    %1558 = vmatprep.subr.bf16.mxu0 0
    %1559 = vmatpush1.bf16.msra.mxu0 %v1550
    %1560 = vmatprep.subr.bf16.mxu0 0
    %1561 = vmatpush1.bf16.msra.mxu0 0
    %1562 = vmatprep.subr.bf16.mxu0 0
    %1563 = vmatpush1.bf16.msra.mxu0 0
    %1564 = vmatprep.subr.bf16.mxu0 0
    %1565 = vmatpush1.bf16.msra.mxu0 0
    %1566 = vmatprep.subr.bf16.mxu0 0
    %1567 = vmatpush1.bf16.msra.mxu0 0
    %1568 = vmatprep.subr.bf16.mxu0 0
    %1569 = vmatpush1.bf16.msra.mxu0 0
    %1570 = vmatprep.subr.bf16.mxu0 0
    %1571 = vmatpush1.bf16.msra.mxu0 0
    %1572 = vmatprep.subr.bf16.mxu0 0
    %1573 = vmatpush1.bf16.msra.mxu0 0
    %1574 = vmatprep.subr.bf16.mxu0 0
    %1575 = vmatpush1.bf16.msra.mxu0 0
    %1576 = vmatprep.subr.bf16.mxu0 0
    %1577 = vmatpush1.bf16.msra.mxu0 0
    %1578 = vmatprep.subr.bf16.mxu0 0
    %1579 = vmatpush1.bf16.msra.mxu0 0
    %1580 = vmatprep.subr.bf16.mxu0 0
    %1581 = vmatpush1.bf16.msra.mxu0 0
    %1582 = vmatprep.subr.bf16.mxu0 0
    %1583 = vmatpush1.bf16.msra.mxu0 0
    %1584 = vmatprep.subr.bf16.mxu0 0
    %1585 = vmatpush1.bf16.msra.mxu0 0
    %1586 = vmatprep.subr.bf16.mxu0 0
    %1587 = vmatpush1.bf16.msra.mxu0 0
    %1588 = vmatprep.mubr.bf16.mxu0 0
    %1589 = vmatmul.mubr.bf16.gmra.mrb[0].mxu0 %v1554
    %v1590 = vpop.f32.mrb[0].mxu0
    %v1591 = vadd.f32 0.0, %v1590
    %v1592 = vpop.f32.mrb[0].mxu0
    %v1593 = vpop.f32.mrb[0].mxu0
    %v1594 = vadd.f32 0.0, %v1593
    %v1595 = vpop.f32.mrb[0].mxu0
    %1596 = vdwg.mxu0
    %1599 = vrot.lane.b32.xlu0 %v1231, 96
    %v1600 = vpop.permute.xlu0 %1599
    %1601 = vrot.lane.b32.xlu0 %v1232, 96
    %v1602 = vpop.permute.xlu0 %1601
    %v1606 = vsel %vm296, %v1542, 0
    %1608 = vmatprep.subr.bf16.mxu0 0
    %1609 = vmatpush1.bf16.msra.mxu0 %v1600
    %1610 = vmatprep.subr.bf16.mxu0 0
    %1611 = vmatpush1.bf16.msra.mxu0 %v1602
    %1612 = vmatprep.subr.bf16.mxu0 0
    %1613 = vmatpush1.bf16.msra.mxu0 0
    %1614 = vmatprep.subr.bf16.mxu0 0
    %1615 = vmatpush1.bf16.msra.mxu0 0
    %1616 = vmatprep.subr.bf16.mxu0 0
    %1617 = vmatpush1.bf16.msra.mxu0 0
    %1618 = vmatprep.subr.bf16.mxu0 0
    %1619 = vmatpush1.bf16.msra.mxu0 0
    %1620 = vmatprep.subr.bf16.mxu0 0
    %1621 = vmatpush1.bf16.msra.mxu0 0
    %1622 = vmatprep.subr.bf16.mxu0 0
    %1623 = vmatpush1.bf16.msra.mxu0 0
    %1624 = vmatprep.subr.bf16.mxu0 0
    %1625 = vmatpush1.bf16.msra.mxu0 0
    %1626 = vmatprep.subr.bf16.mxu0 0
    %1627 = vmatpush1.bf16.msra.mxu0 0
    %1628 = vmatprep.subr.bf16.mxu0 0
    %1629 = vmatpush1.bf16.msra.mxu0 0
    %1630 = vmatprep.subr.bf16.mxu0 0
    %1631 = vmatpush1.bf16.msra.mxu0 0
    %1632 = vmatprep.subr.bf16.mxu0 0
    %1633 = vmatpush1.bf16.msra.mxu0 0
    %1634 = vmatprep.subr.bf16.mxu0 0
    %1635 = vmatpush1.bf16.msra.mxu0 0
    %1636 = vmatprep.subr.bf16.mxu0 0
    %1637 = vmatpush1.bf16.msra.mxu0 0
    %1638 = vmatprep.subr.bf16.mxu0 0
    %1639 = vmatpush1.bf16.msra.mxu0 0
    %1640 = vmatprep.mubr.bf16.mxu0 0
    %1641 = vmatmul.mubr.bf16.gmra.mrb[0].mxu0 %v1606
    %v1642 = vpop.f32.mrb[0].mxu0
    %v1643 = vadd.f32 0.0, %v1642
    %v1644 = vpop.f32.mrb[0].mxu0
    %v1645 = vpop.f32.mrb[0].mxu0
    %v1646 = vadd.f32 0.0, %v1645
    %v1647 = vpop.f32.mrb[0].mxu0
    %1648 = vdwg.mxu0
    %1651 = vrot.lane.b32.xlu0 %v1233, 96
    %v1652 = vpop.permute.xlu0 %1651
    %1653 = vrot.lane.b32.xlu0 %v1234, 96
    %v1654 = vpop.permute.xlu0 %1653
    %v1658 = vsel %vm296, %v1543, 0
    %1660 = vmatprep.subr.bf16.mxu0 0
    %1661 = vmatpush1.bf16.msra.mxu0 %v1652
    %1662 = vmatprep.subr.bf16.mxu0 0
    %1663 = vmatpush1.bf16.msra.mxu0 %v1654
    %1664 = vmatprep.subr.bf16.mxu0 0
    %1665 = vmatpush1.bf16.msra.mxu0 0
    %1666 = vmatprep.subr.bf16.mxu0 0
    %1667 = vmatpush1.bf16.msra.mxu0 0
    %1668 = vmatprep.subr.bf16.mxu0 0
    %1669 = vmatpush1.bf16.msra.mxu0 0
    %1670 = vmatprep.subr.bf16.mxu0 0
    %1671 = vmatpush1.bf16.msra.mxu0 0
    %1672 = vmatprep.subr.bf16.mxu0 0
    %1673 = vmatpush1.bf16.msra.mxu0 0
    %1674 = vmatprep.subr.bf16.mxu0 0
    %1675 = vmatpush1.bf16.msra.mxu0 0
    %1676 = vmatprep.subr.bf16.mxu0 0
    %1677 = vmatpush1.bf16.msra.mxu0 0
    %1678 = vmatprep.subr.bf16.mxu0 0
    %1679 = vmatpush1.bf16.msra.mxu0 0
    %1680 = vmatprep.subr.bf16.mxu0 0
    %1681 = vmatpush1.bf16.msra.mxu0 0
    %1682 = vmatprep.subr.bf16.mxu0 0
    %1683 = vmatpush1.bf16.msra.mxu0 0
    %1684 = vmatprep.subr.bf16.mxu0 0
    %1685 = vmatpush1.bf16.msra.mxu0 0
    %1686 = vmatprep.subr.bf16.mxu0 0
    %1687 = vmatpush1.bf16.msra.mxu0 0
    %1688 = vmatprep.subr.bf16.mxu0 0
    %1689 = vmatpush1.bf16.msra.mxu0 0
    %1690 = vmatprep.subr.bf16.mxu0 0
    %1691 = vmatpush1.bf16.msra.mxu0 0
    %1692 = vmatprep.mubr.bf16.mxu0 0
    %1693 = vmatmul.mubr.bf16.gmra.mrb[0].mxu0 %v1658
    %v1694 = vpop.f32.mrb[0].mxu0
    %v1695 = vadd.f32 0.0, %v1694
    %v1696 = vpop.f32.mrb[0].mxu0
    %v1697 = vpop.f32.mrb[0].mxu0
    %v1698 = vadd.f32 0.0, %v1697
    %v1699 = vpop.f32.mrb[0].mxu0
    %1700 = vdwg.mxu0
    %1703 = vrot.lane.b32.xlu0 %v1235, 96
    %v1704 = vpop.permute.xlu0 %1703
    %1705 = vrot.lane.b32.xlu0 %v1236, 96
    %v1706 = vpop.permute.xlu0 %1705
    %v1710 = vsel %vm296, %v1544, 0
    %1712 = vmatprep.subr.bf16.mxu0 0
    %1713 = vmatpush1.bf16.msra.mxu0 %v1704
    %1714 = vmatprep.subr.bf16.mxu0 0
    %1715 = vmatpush1.bf16.msra.mxu0 %v1706
    %1716 = vmatprep.subr.bf16.mxu0 0
    %1717 = vmatpush1.bf16.msra.mxu0 0
    %1718 = vmatprep.subr.bf16.mxu0 0
    %1719 = vmatpush1.bf16.msra.mxu0 0
    %1720 = vmatprep.subr.bf16.mxu0 0
    %1721 = vmatpush1.bf16.msra.mxu0 0
    %1722 = vmatprep.subr.bf16.mxu0 0
    %1723 = vmatpush1.bf16.msra.mxu0 0
    %1724 = vmatprep.subr.bf16.mxu0 0
    %1725 = vmatpush1.bf16.msra.mxu0 0
    %1726 = vmatprep.subr.bf16.mxu0 0
    %1727 = vmatpush1.bf16.msra.mxu0 0
    %1728 = vmatprep.subr.bf16.mxu0 0
    %1729 = vmatpush1.bf16.msra.mxu0 0
    %1730 = vmatprep.subr.bf16.mxu0 0
    %1731 = vmatpush1.bf16.msra.mxu0 0
    %1732 = vmatprep.subr.bf16.mxu0 0
    %1733 = vmatpush1.bf16.msra.mxu0 0
    %1734 = vmatprep.subr.bf16.mxu0 0
    %1735 = vmatpush1.bf16.msra.mxu0 0
    %1736 = vmatprep.subr.bf16.mxu0 0
    %1737 = vmatpush1.bf16.msra.mxu0 0
    %1738 = vmatprep.subr.bf16.mxu0 0
    %1739 = vmatpush1.bf16.msra.mxu0 0
    %1740 = vmatprep.subr.bf16.mxu0 0
    %1741 = vmatpush1.bf16.msra.mxu0 0
    %1742 = vmatprep.subr.bf16.mxu0 0
    %1743 = vmatpush1.bf16.msra.mxu0 0
    %1744 = vmatprep.mubr.bf16.mxu0 0
    %1745 = vmatmul.mubr.bf16.gmra.mrb[0].mxu0 %v1710
    %v1746 = vpop.f32.mrb[0].mxu0
    %v1747 = vadd.f32 0.0, %v1746
    %v1748 = vpop.f32.mrb[0].mxu0
    %v1749 = vpop.f32.mrb[0].mxu0
    %v1750 = vadd.f32 0.0, %v1749
    %v1751 = vpop.f32.mrb[0].mxu0
    %1752 = vdwg.mxu0
    %1755 = vrot.lane.b32.xlu0 %v1643, 8
    %v1756 = vpop.permute.xlu0 %1755
    %1757 = vrot.lane.b32.xlu0 %v1646, 8
    %v1758 = vpop.permute.xlu0 %1757
    %1763 = vrot.lane.b32.xlu0 %v1695, 16
    %v1764 = vpop.permute.xlu0 %1763
    %1765 = vrot.lane.b32.xlu0 %v1698, 16
    %v1766 = vpop.permute.xlu0 %1765
    %1771 = vrot.lane.b32.xlu0 %v1747, 24
    %v1772 = vpop.permute.xlu0 %1771
    %1773 = vrot.lane.b32.xlu0 %v1750, 24
    %v1774 = vpop.permute.xlu0 %1773
    %v1777 = vsel %vm452, %v1591, %v1756
    %v1778 = vsel %vm452, %v1594, %v1758
    %v1779 = vsel %vm666, %v1777, %v1764
    %v1780 = vsel %vm666, %v1778, %v1766
    %v1781 = vsel %vm975, %v1779, %v1772
    %v1782 = vsel %vm975, %v1780, %v1774
    %v1783 = vpack.c.bf16 %v1782, %v1781
    %v1785 = vlaneseq
    %v1786 = vshrl.u32 %v1785, 7
    %v1787 = vsub.s32 0, %v1786
    %v1788 = vrot.slane %v1164, %v1787
    %v1794 = vunpack.c.l.b16 %v1160
    %v1795 = vunpack.c.l.b16 %v1161
    %v1796 = vunpack.c.l.b16 %v1162
    %v1797 = vunpack.c.l.b16 %v1163
    %v1798 = vpack.c.b16 %v1795, %v1794
    %v1799 = vpack.c.b16 %v1797, %v1796
    %v1803 = vsel %vm296, %v1783, 0
    %1805 = vmatprep.subr.bf16.mxu0 0
    %1806 = vmatpush1.bf16.msra.mxu0 %v1798
    %1807 = vmatprep.subr.bf16.mxu0 0
    %1808 = vmatpush1.bf16.msra.mxu0 %v1799
    %1809 = vmatprep.subr.bf16.mxu0 0
    %1810 = vmatpush1.bf16.msra.mxu0 0
    %1811 = vmatprep.subr.bf16.mxu0 0
    %1812 = vmatpush1.bf16.msra.mxu0 0
    %1813 = vmatprep.subr.bf16.mxu0 0
    %1814 = vmatpush1.bf16.msra.mxu0 0
    %1815 = vmatprep.subr.bf16.mxu0 0
    %1816 = vmatpush1.bf16.msra.mxu0 0
    %1817 = vmatprep.subr.bf16.mxu0 0
    %1818 = vmatpush1.bf16.msra.mxu0 0
    %1819 = vmatprep.subr.bf16.mxu0 0
    %1820 = vmatpush1.bf16.msra.mxu0 0
    %1821 = vmatprep.subr.bf16.mxu0 0
    %1822 = vmatpush1.bf16.msra.mxu0 0
    %1823 = vmatprep.subr.bf16.mxu0 0
    %1824 = vmatpush1.bf16.msra.mxu0 0
    %1825 = vmatprep.subr.bf16.mxu0 0
    %1826 = vmatpush1.bf16.msra.mxu0 0
    %1827 = vmatprep.subr.bf16.mxu0 0
    %1828 = vmatpush1.bf16.msra.mxu0 0
    %1829 = vmatprep.subr.bf16.mxu0 0
    %1830 = vmatpush1.bf16.msra.mxu0 0
    %1831 = vmatprep.subr.bf16.mxu0 0
    %1832 = vmatpush1.bf16.msra.mxu0 0
    %1833 = vmatprep.subr.bf16.mxu0 0
    %1834 = vmatpush1.bf16.msra.mxu0 0
    %1835 = vmatprep.subr.bf16.mxu0 0
    %1836 = vmatpush1.bf16.msra.mxu0 0
    %1837 = vmatprep.mubr.bf16.mxu0 0
    %1838 = vmatmul.mubr.bf16.gmra.mrb[0].mxu0 %v1803
    %v1839 = vpop.f32.mrb[0].mxu0
    %v1840 = vadd.f32 %v1788, %v1839
    %v1841 = vpop.f32.mrb[0].mxu0
    %v1842 = vpop.f32.mrb[0].mxu0
    %v1843 = vadd.f32 %v1788, %v1842
    %v1844 = vpop.f32.mrb[0].mxu0
    %1845 = vdwg.mxu0
    %v1846 = vadd.f32 %v1090, %v1840
    %v1847 = vadd.f32 %v1091, %v1843
    %v1848 = vld [vmem:[#allocation13] sm:$0x1]
    %v1849 = vld [vmem:[#allocation14] sm:$0x1]
    %v1850 = vsel %vm296, %v1846, 0.0
    %1851 = vadd.xlane.f32.xlu0 %v1850
    %v1852 = vpop.xlane.xlu0 %1851
    %v1853 = vsel %vm296, %v1847, 0.0
    %1854 = vadd.xlane.f32.xlu0 %v1853
    %v1855 = vpop.xlane.xlu0 %1854
    %v1856 = vmul.f32 %v1852, %v1051
    %v1857 = vmul.f32 %v1855, %v1051
    %v1858 = vmul.f32 %v1846, %v1846
    %v1859 = vmul.f32 %v1847, %v1847
    %v1860 = vsel %vm296, %v1858, 0.0
    %1861 = vadd.xlane.f32.xlu0 %v1860
    %v1862 = vpop.xlane.xlu0 %1861
    %v1863 = vsel %vm296, %v1859, 0.0
    %1864 = vadd.xlane.f32.xlu0 %v1863
    %v1865 = vpop.xlane.xlu0 %1864
    %v1866 = vmul.f32 %v1862, %v1051
    %v1867 = vmul.f32 %v1865, %v1051
    %v1868 = vmul.f32 %v1856, %v1856
    %v1869 = vmul.f32 %v1857, %v1857
    %v1870 = vsub.f32 %v1866, %v1868
    %v1871 = vsub.f32 %v1867, %v1869
    %v1872 = vsub.f32 %v1846, %v1856
    %v1873 = vsub.f32 %v1847, %v1857
    %v1874 = vadd.f32 %v1870, 1e-05
    %v1875 = vadd.f32 %v1871, 1e-05
    %v1876 = vrsqrt.pop %v1874
    %v1877 = vrsqrt.pop %v1875
    %v1878 = vmul.f32 %v1872, %v1876
    %v1879 = vmul.f32 %v1873, %v1877
    %v1881 = vlaneseq
    %v1882 = vshrl.u32 %v1881, 7
    %v1883 = vsub.s32 0, %v1882
    %v1884 = vrot.slane %v1848, %v1883
    %v1886 = vmul.f32 %v1878, %v1884
    %v1887 = vmul.f32 %v1879, %v1884
    %v1889 = vlaneseq
    %v1890 = vshrl.u32 %v1889, 7
    %v1891 = vsub.s32 0, %v1890
    %v1892 = vrot.slane %v1849, %v1891
    %v1894 = vadd.f32 %v1886, %v1892
    %v1895 = vadd.f32 %v1887, %v1892
    %v1896 = vpack.c.bf16 %v1895, %v1894
    %v1897 = vld [vmem:[%s21] sm:$0xf]
    %v1898 = vld [vmem:[%s21 + $0x4] sm:$0xf]
    %v1899 = vld [vmem:[%s21 + $0x8] sm:$0xf]
    %v1900 = vld [vmem:[%s21 + $0xc] sm:$0xf]
    %v1901 = vld [vmem:[#allocation19] sm:$0x1]
    %v1903 = vlaneseq
    %v1904 = vshrl.u32 %v1903, 7
    %v1905 = vsub.s32 0, %v1904
    %v1906 = vrot.slane %v1901, %v1905
    %v1912 = vunpack.c.l.b16 %v1897
    %v1913 = vunpack.c.l.b16 %v1898
    %v1914 = vunpack.c.l.b16 %v1899
    %v1915 = vunpack.c.l.b16 %v1900
    %v1916 = vpack.c.b16 %v1913, %v1912
    %v1917 = vpack.c.b16 %v1915, %v1914
    %v1921 = vsel %vm296, %v1896, 0
    %1923 = vmatprep.subr.bf16.mxu0 0
    %1924 = vmatpush1.bf16.msra.mxu0 %v1916
    %1925 = vmatprep.subr.bf16.mxu0 0
    %1926 = vmatpush1.bf16.msra.mxu0 %v1917
    %1927 = vmatprep.subr.bf16.mxu0 0
    %1928 = vmatpush1.bf16.msra.mxu0 0
    %1929 = vmatprep.subr.bf16.mxu0 0
    %1930 = vmatpush1.bf16.msra.mxu0 0
    %1931 = vmatprep.subr.bf16.mxu0 0
    %1932 = vmatpush1.bf16.msra.mxu0 0
    %1933 = vmatprep.subr.bf16.mxu0 0
    %1934 = vmatpush1.bf16.msra.mxu0 0
    %1935 = vmatprep.subr.bf16.mxu0 0
    %1936 = vmatpush1.bf16.msra.mxu0 0
    %1937 = vmatprep.subr.bf16.mxu0 0
    %1938 = vmatpush1.bf16.msra.mxu0 0
    %1939 = vmatprep.subr.bf16.mxu0 0
    %1940 = vmatpush1.bf16.msra.mxu0 0
    %1941 = vmatprep.subr.bf16.mxu0 0
    %1942 = vmatpush1.bf16.msra.mxu0 0
    %1943 = vmatprep.subr.bf16.mxu0 0
    %1944 = vmatpush1.bf16.msra.mxu0 0
    %1945 = vmatprep.subr.bf16.mxu0 0
    %1946 = vmatpush1.bf16.msra.mxu0 0
    %1947 = vmatprep.subr.bf16.mxu0 0
    %1948 = vmatpush1.bf16.msra.mxu0 0
    %1949 = vmatprep.subr.bf16.mxu0 0
    %1950 = vmatpush1.bf16.msra.mxu0 0
    %1951 = vmatprep.subr.bf16.mxu0 0
    %1952 = vmatpush1.bf16.msra.mxu0 0
    %1953 = vmatprep.subr.bf16.mxu0 0
    %1954 = vmatpush1.bf16.msra.mxu0 0
    %1955 = vmatprep.mubr.bf16.mxu0 0
    %1956 = vmatmul.mubr.bf16.gmra.mrb[0].mxu0 %v1921
    %v1957 = vpop.f32.mrb[0].mxu0
    %v1958 = vadd.f32 %v1906, %v1957
    %v1959 = vpop.f32.mrb[0].mxu0
    %v1960 = vpop.f32.mrb[0].mxu0
    %v1961 = vadd.f32 %v1906, %v1960
    %v1962 = vpop.f32.mrb[0].mxu0
    %1963 = vdwg.mxu0
    %v1964 = vmax.f32 %v1958, 0.0
    %v1965 = vmax.f32 %v1961, 0.0
    %v1966 = vpack.c.bf16 %v1965, %v1964
    %v1967 = vld [vmem:[%s23] sm:$0xf]
    %v1968 = vld [vmem:[%s23 + $0x4] sm:$0xf]
    %v1969 = vld [vmem:[%s23 + $0x8] sm:$0xf]
    %v1970 = vld [vmem:[%s23 + $0xc] sm:$0xf]
    %v1971 = vld [vmem:[%s23 + $0x10] sm:$0xf]
    %v1972 = vld [vmem:[%s23 + $0x14] sm:$0xf]
    %v1973 = vld [vmem:[%s23 + $0x18] sm:$0xf]
    %v1974 = vld [vmem:[%s23 + $0x1c] sm:$0xf]
    %v1975 = vld [vmem:[#allocation20] sm:$0x1]
    %v1977 = vlaneseq
    %v1978 = vshrl.u32 %v1977, 7
    %v1979 = vsub.s32 0, %v1978
    %v1980 = vrot.slane %v1975, %v1979
    %v1990 = vunpack.c.l.b16 %v1967
    %v1991 = vunpack.c.l.b16 %v1968
    %v1992 = vunpack.c.l.b16 %v1969
    %v1993 = vunpack.c.l.b16 %v1970
    %v1994 = vunpack.c.l.b16 %v1971
    %v1995 = vunpack.c.l.b16 %v1972
    %v1996 = vunpack.c.l.b16 %v1973
    %v1997 = vunpack.c.l.b16 %v1974
    %v1998 = vpack.c.b16 %v1991, %v1990
    %v1999 = vpack.c.b16 %v1993, %v1992
    %v2000 = vpack.c.b16 %v1995, %v1994
    %v2001 = vpack.c.b16 %v1997, %v1996
    %vm2006 = vcmask 523264
    %v2008 = vsel %vm2006, %v1966, 0
    %2010 = vmatprep.subr.bf16.mxu0 0
    %2011 = vmatpush1.bf16.msra.mxu0 %v1998
    %2012 = vmatprep.subr.bf16.mxu0 0
    %2013 = vmatpush1.bf16.msra.mxu0 %v1999
    %2014 = vmatprep.subr.bf16.mxu0 0
    %2015 = vmatpush1.bf16.msra.mxu0 %v2000
    %2016 = vmatprep.subr.bf16.mxu0 0
    %2017 = vmatpush1.bf16.msra.mxu0 %v2001
    %2018 = vmatprep.subr.bf16.mxu0 0
    %2019 = vmatpush1.bf16.msra.mxu0 0
    %2020 = vmatprep.subr.bf16.mxu0 0
    %2021 = vmatpush1.bf16.msra.mxu0 0
    %2022 = vmatprep.subr.bf16.mxu0 0
    %2023 = vmatpush1.bf16.msra.mxu0 0
    %2024 = vmatprep.subr.bf16.mxu0 0
    %2025 = vmatpush1.bf16.msra.mxu0 0
    %2026 = vmatprep.subr.bf16.mxu0 0
    %2027 = vmatpush1.bf16.msra.mxu0 0
    %2028 = vmatprep.subr.bf16.mxu0 0
    %2029 = vmatpush1.bf16.msra.mxu0 0
    %2030 = vmatprep.subr.bf16.mxu0 0
    %2031 = vmatpush1.bf16.msra.mxu0 0
    %2032 = vmatprep.subr.bf16.mxu0 0
    %2033 = vmatpush1.bf16.msra.mxu0 0
    %2034 = vmatprep.subr.bf16.mxu0 0
    %2035 = vmatpush1.bf16.msra.mxu0 0
    %2036 = vmatprep.subr.bf16.mxu0 0
    %2037 = vmatpush1.bf16.msra.mxu0 0
    %2038 = vmatprep.subr.bf16.mxu0 0
    %2039 = vmatpush1.bf16.msra.mxu0 0
    %2040 = vmatprep.subr.bf16.mxu0 0
    %2041 = vmatpush1.bf16.msra.mxu0 0
    %2042 = vmatprep.mubr.bf16.mxu0 0
    %2043 = vmatmul.mubr.bf16.gmra.mrb[0].mxu0 %v2008
    %v2044 = vpop.f32.mrb[0].mxu0
    %v2045 = vadd.f32 %v1980, %v2044
    %v2046 = vpop.f32.mrb[0].mxu0
    %v2047 = vpop.f32.mrb[0].mxu0
    %v2048 = vadd.f32 %v1980, %v2047
    %v2049 = vpop.f32.mrb[0].mxu0
    %2050 = vdwg.mxu0
    %v2051 = vadd.f32 %v1894, %v2045
    %v2052 = vadd.f32 %v1895, %v2048
    %v2053 = vld [vmem:[#allocation16] sm:$0x1]
    %v2054 = vld [vmem:[#allocation17] sm:$0x1]
    %v2055 = vsel %vm296, %v2051, 0.0
    %2056 = vadd.xlane.f32.xlu0 %v2055
    %v2057 = vpop.xlane.xlu0 %2056
    %v2058 = vsel %vm296, %v2052, 0.0
    %2059 = vadd.xlane.f32.xlu0 %v2058
    %v2060 = vpop.xlane.xlu0 %2059
    %v2061 = vmul.f32 %v2057, %v1051
    %v2062 = vmul.f32 %v2060, %v1051
    %v2063 = vmul.f32 %v2051, %v2051
    %v2064 = vmul.f32 %v2052, %v2052
    %v2065 = vsel %vm296, %v2063, 0.0
    %2066 = vadd.xlane.f32.xlu0 %v2065
    %v2067 = vpop.xlane.xlu0 %2066
    %v2068 = vsel %vm296, %v2064, 0.0
    %2069 = vadd.xlane.f32.xlu0 %v2068
    %v2070 = vpop.xlane.xlu0 %2069
    %v2071 = vmul.f32 %v2067, %v1051
    %v2072 = vmul.f32 %v2070, %v1051
    %v2073 = vmul.f32 %v2061, %v2061
    %v2074 = vmul.f32 %v2062, %v2062
    %v2075 = vsub.f32 %v2071, %v2073
    %v2076 = vsub.f32 %v2072, %v2074
    %v2077 = vsub.f32 %v2051, %v2061
    %v2078 = vsub.f32 %v2052, %v2062
    %v2079 = vadd.f32 %v2075, 1e-05
    %v2080 = vadd.f32 %v2076, 1e-05
    %v2081 = vrsqrt.pop %v2079
    %v2082 = vrsqrt.pop %v2080
    %v2083 = vmul.f32 %v2077, %v2081
    %v2084 = vmul.f32 %v2078, %v2082
    %v2086 = vlaneseq
    %v2087 = vshrl.u32 %v2086, 7
    %v2088 = vsub.s32 0, %v2087
    %v2089 = vrot.slane %v2053, %v2088
    %v2091 = vmul.f32 %v2083, %v2089
    %v2092 = vmul.f32 %v2084, %v2089
    %v2094 = vlaneseq
    %v2095 = vshrl.u32 %v2094, 7
    %v2096 = vsub.s32 0, %v2095
    %v2097 = vrot.slane %v2054, %v2096
    %v2099 = vadd.f32 %v2091, %v2097
    %v2100 = vadd.f32 %v2092, %v2097
    %v2101 = vpack.c.bf16 %v2100, %v2099
    %s2102 = scalar_lea.vmem %s5, 16
    %v2103 = vld [vmem:[%s2102] sm:$0xf]
    %v2104 = vld [vmem:[%s2102 + $0x4] sm:$0xf]
    %v2105 = vld [vmem:[%s2102 + $0x8] sm:$0xf]
    %v2106 = vld [vmem:[%s2102 + $0xc] sm:$0xf]
    %s2107 = scalar_lea.vmem %s6, 1
    %v2108 = vld [vmem:[%s2107] sm:$0x1]
    %v2110 = vlaneseq
    %v2111 = vshrl.u32 %v2110, 7
    %v2112 = vsub.s32 0, %v2111
    %v2113 = vrot.slane %v2108, %v2112
    %v2119 = vunpack.c.l.b16 %v2103
    %v2120 = vunpack.c.l.b16 %v2104
    %v2121 = vunpack.c.l.b16 %v2105
    %v2122 = vunpack.c.l.b16 %v2106
    %v2123 = vpack.c.b16 %v2120, %v2119
    %v2124 = vpack.c.b16 %v2122, %v2121
    %v2128 = vsel %vm296, %v2101, 0
    %2130 = vmatprep.subr.bf16.mxu0 0
    %2131 = vmatpush1.bf16.msra.mxu0 %v2123
    %2132 = vmatprep.subr.bf16.mxu0 0
    %2133 = vmatpush1.bf16.msra.mxu0 %v2124
    %2134 = vmatprep.subr.bf16.mxu0 0
    %2135 = vmatpush1.bf16.msra.mxu0 0
    %2136 = vmatprep.subr.bf16.mxu0 0
    %2137 = vmatpush1.bf16.msra.mxu0 0
    %2138 = vmatprep.subr.bf16.mxu0 0
    %2139 = vmatpush1.bf16.msra.mxu0 0
    %2140 = vmatprep.subr.bf16.mxu0 0
    %2141 = vmatpush1.bf16.msra.mxu0 0
    %2142 = vmatprep.subr.bf16.mxu0 0
    %2143 = vmatpush1.bf16.msra.mxu0 0
    %2144 = vmatprep.subr.bf16.mxu0 0
    %2145 = vmatpush1.bf16.msra.mxu0 0
    %2146 = vmatprep.subr.bf16.mxu0 0
    %2147 = vmatpush1.bf16.msra.mxu0 0
    %2148 = vmatprep.subr.bf16.mxu0 0
    %2149 = vmatpush1.bf16.msra.mxu0 0
    %2150 = vmatprep.subr.bf16.mxu0 0
    %2151 = vmatpush1.bf16.msra.mxu0 0
    %2152 = vmatprep.subr.bf16.mxu0 0
    %2153 = vmatpush1.bf16.msra.mxu0 0
    %2154 = vmatprep.subr.bf16.mxu0 0
    %2155 = vmatpush1.bf16.msra.mxu0 0
    %2156 = vmatprep.subr.bf16.mxu0 0
    %2157 = vmatpush1.bf16.msra.mxu0 0
    %2158 = vmatprep.subr.bf16.mxu0 0
    %2159 = vmatpush1.bf16.msra.mxu0 0
    %2160 = vmatprep.subr.bf16.mxu0 0
    %2161 = vmatpush1.bf16.msra.mxu0 0
    %2162 = vmatprep.mubr.bf16.mxu0 0
    %2163 = vmatmul.mubr.bf16.gmra.mrb[0].mxu0 %v2128
    %v2164 = vpop.f32.mrb[0].mxu0
    %v2165 = vadd.f32 %v2113, %v2164
    %v2166 = vpop.f32.mrb[0].mxu0
    %v2167 = vpop.f32.mrb[0].mxu0
    %v2168 = vadd.f32 %v2113, %v2167
    %v2169 = vpop.f32.mrb[0].mxu0
    %2170 = vdwg.mxu0
    %s2171 = scalar_lea.vmem %s7, 16
    %v2172 = vld [vmem:[%s2171] sm:$0xf]
    %v2173 = vld [vmem:[%s2171 + $0x4] sm:$0xf]
    %v2174 = vld [vmem:[%s2171 + $0x8] sm:$0xf]
    %v2175 = vld [vmem:[%s2171 + $0xc] sm:$0xf]
    %s2176 = scalar_lea.vmem %s8, 1
    %v2177 = vld [vmem:[%s2176] sm:$0x1]
    %2180 = vrot.lane.b32.xlu0 %v2165, 120
    %v2181 = vpop.permute.xlu0 %2180
    %2182 = vrot.lane.b32.xlu0 %v2168, 120
    %v2183 = vpop.permute.xlu0 %2182
    %2186 = vrot.lane.b32.xlu0 %v2165, 112
    %v2187 = vpop.permute.xlu0 %2186
    %2188 = vrot.lane.b32.xlu0 %v2168, 112
    %v2189 = vpop.permute.xlu0 %2188
    %2192 = vrot.lane.b32.xlu0 %v2165, 104
    %v2193 = vpop.permute.xlu0 %2192
    %2194 = vrot.lane.b32.xlu0 %v2168, 104
    %v2195 = vpop.permute.xlu0 %2194
    %v2198 = vpack.c.bf16 %v2168, %v2165
    %v2199 = vpack.c.bf16 %v2183, %v2181
    %v2200 = vpack.c.bf16 %v2189, %v2187
    %v2201 = vpack.c.bf16 %v2195, %v2193
    %2203 = vrot.lane.b32.xlu0 %v2198, 96
    %v2204 = vpop.permute.xlu0 %2203
    %v2206 = vsel %vm452, %v2198, 0
    %v2209 = vsel %vm452, %v2204, 0
    %2211 = vmatprep.subr.bf16.mxu0 0
    %2212 = vmatpush1.bf16.xpose.msra.mxu0 %v2209
    %2213 = vmatprep.subr.bf16.mxu0 0
    %2214 = vmatpush1.bf16.xpose.msra.mxu0 0
    %2215 = vmatprep.subr.bf16.mxu0 0
    %2216 = vmatpush1.bf16.xpose.msra.mxu0 0
    %2217 = vmatprep.subr.bf16.mxu0 0
    %2218 = vmatpush1.bf16.xpose.msra.mxu0 0
    %2219 = vmatprep.subr.bf16.mxu0 0
    %2220 = vmatpush1.bf16.xpose.msra.mxu0 0
    %2221 = vmatprep.subr.bf16.mxu0 0
    %2222 = vmatpush1.bf16.xpose.msra.mxu0 0
    %2223 = vmatprep.subr.bf16.mxu0 0
    %2224 = vmatpush1.bf16.xpose.msra.mxu0 0
    %2225 = vmatprep.subr.bf16.mxu0 0
    %2226 = vmatpush1.bf16.xpose.msra.mxu0 0
    %2227 = vmatprep.subr.bf16.mxu0 0
    %2228 = vmatpush1.bf16.xpose.msra.mxu0 0
    %2229 = vmatprep.subr.bf16.mxu0 0
    %2230 = vmatpush1.bf16.xpose.msra.mxu0 0
    %2231 = vmatprep.subr.bf16.mxu0 0
    %2232 = vmatpush1.bf16.xpose.msra.mxu0 0
    %2233 = vmatprep.subr.bf16.mxu0 0
    %2234 = vmatpush1.bf16.xpose.msra.mxu0 0
    %2235 = vmatprep.subr.bf16.mxu0 0
    %2236 = vmatpush1.bf16.xpose.msra.mxu0 0
    %2237 = vmatprep.subr.bf16.mxu0 0
    %2238 = vmatpush1.bf16.xpose.msra.mxu0 0
    %2239 = vmatprep.subr.bf16.mxu0 0
    %2240 = vmatpush1.bf16.xpose.msra.mxu0 0
    %2241 = vmatprep.subr.bf16.mxu0 0
    %2242 = vmatpush1.bf16.xpose.msra.mxu0 0
    %2243 = vmatprep.mubr.bf16.mxu0 0
    %2244 = vmatmul.mubr.bf16.gmra.mrb[0].mxu0 %v2206
    %v2245 = vpop.f32.mrb[0].mxu0
    %v2246 = vadd.f32 0.0, %v2245
    %v2247 = vpop.f32.mrb[0].mxu0
    %v2248 = vpop.f32.mrb[0].mxu0
    %v2249 = vadd.f32 0.0, %v2248
    %v2250 = vpop.f32.mrb[0].mxu0
    %2251 = vdwg.mxu0
    %2253 = vrot.lane.b32.xlu0 %v2199, 96
    %v2254 = vpop.permute.xlu0 %2253
    %v2256 = vsel %vm452, %v2199, 0
    %v2259 = vsel %vm452, %v2254, 0
    %2261 = vmatprep.subr.bf16.mxu0 0
    %2262 = vmatpush1.bf16.xpose.msra.mxu0 %v2259
    %2263 = vmatprep.subr.bf16.mxu0 0
    %2264 = vmatpush1.bf16.xpose.msra.mxu0 0
    %2265 = vmatprep.subr.bf16.mxu0 0
    %2266 = vmatpush1.bf16.xpose.msra.mxu0 0
    %2267 = vmatprep.subr.bf16.mxu0 0
    %2268 = vmatpush1.bf16.xpose.msra.mxu0 0
    %2269 = vmatprep.subr.bf16.mxu0 0
    %2270 = vmatpush1.bf16.xpose.msra.mxu0 0
    %2271 = vmatprep.subr.bf16.mxu0 0
    %2272 = vmatpush1.bf16.xpose.msra.mxu0 0
    %2273 = vmatprep.subr.bf16.mxu0 0
    %2274 = vmatpush1.bf16.xpose.msra.mxu0 0
    %2275 = vmatprep.subr.bf16.mxu0 0
    %2276 = vmatpush1.bf16.xpose.msra.mxu0 0
    %2277 = vmatprep.subr.bf16.mxu0 0
    %2278 = vmatpush1.bf16.xpose.msra.mxu0 0
    %2279 = vmatprep.subr.bf16.mxu0 0
    %2280 = vmatpush1.bf16.xpose.msra.mxu0 0
    %2281 = vmatprep.subr.bf16.mxu0 0
    %2282 = vmatpush1.bf16.xpose.msra.mxu0 0
    %2283 = vmatprep.subr.bf16.mxu0 0
    %2284 = vmatpush1.bf16.xpose.msra.mxu0 0
    %2285 = vmatprep.subr.bf16.mxu0 0
    %2286 = vmatpush1.bf16.xpose.msra.mxu0 0
    %2287 = vmatprep.subr.bf16.mxu0 0
    %2288 = vmatpush1.bf16.xpose.msra.mxu0 0
    %2289 = vmatprep.subr.bf16.mxu0 0
    %2290 = vmatpush1.bf16.xpose.msra.mxu0 0
    %2291 = vmatprep.subr.bf16.mxu0 0
    %2292 = vmatpush1.bf16.xpose.msra.mxu0 0
    %2293 = vmatprep.mubr.bf16.mxu0 0
    %2294 = vmatmul.mubr.bf16.gmra.mrb[0].mxu0 %v2256
    %v2295 = vpop.f32.mrb[0].mxu0
    %v2296 = vadd.f32 0.0, %v2295
    %v2297 = vpop.f32.mrb[0].mxu0
    %v2298 = vpop.f32.mrb[0].mxu0
    %v2299 = vadd.f32 0.0, %v2298
    %v2300 = vpop.f32.mrb[0].mxu0
    %2301 = vdwg.mxu0
    %2303 = vrot.lane.b32.xlu0 %v2200, 96
    %v2304 = vpop.permute.xlu0 %2303
    %v2306 = vsel %vm452, %v2200, 0
    %v2309 = vsel %vm452, %v2304, 0
    %2311 = vmatprep.subr.bf16.mxu0 0
    %2312 = vmatpush1.bf16.xpose.msra.mxu0 %v2309
    %2313 = vmatprep.subr.bf16.mxu0 0
    %2314 = vmatpush1.bf16.xpose.msra.mxu0 0
    %2315 = vmatprep.subr.bf16.mxu0 0
    %2316 = vmatpush1.bf16.xpose.msra.mxu0 0
    %2317 = vmatprep.subr.bf16.mxu0 0
    %2318 = vmatpush1.bf16.xpose.msra.mxu0 0
    %2319 = vmatprep.subr.bf16.mxu0 0
    %2320 = vmatpush1.bf16.xpose.msra.mxu0 0
    %2321 = vmatprep.subr.bf16.mxu0 0
    %2322 = vmatpush1.bf16.xpose.msra.mxu0 0
    %2323 = vmatprep.subr.bf16.mxu0 0
    %2324 = vmatpush1.bf16.xpose.msra.mxu0 0
    %2325 = vmatprep.subr.bf16.mxu0 0
    %2326 = vmatpush1.bf16.xpose.msra.mxu0 0
    %2327 = vmatprep.subr.bf16.mxu0 0
    %2328 = vmatpush1.bf16.xpose.msra.mxu0 0
    %2329 = vmatprep.subr.bf16.mxu0 0
    %2330 = vmatpush1.bf16.xpose.msra.mxu0 0
    %2331 = vmatprep.subr.bf16.mxu0 0
    %2332 = vmatpush1.bf16.xpose.msra.mxu0 0
    %2333 = vmatprep.subr.bf16.mxu0 0
    %2334 = vmatpush1.bf16.xpose.msra.mxu0 0
    %2335 = vmatprep.subr.bf16.mxu0 0
    %2336 = vmatpush1.bf16.xpose.msra.mxu0 0
    %2337 = vmatprep.subr.bf16.mxu0 0
    %2338 = vmatpush1.bf16.xpose.msra.mxu0 0
    %2339 = vmatprep.subr.bf16.mxu0 0
    %2340 = vmatpush1.bf16.xpose.msra.mxu0 0
    %2341 = vmatprep.subr.bf16.mxu0 0
    %2342 = vmatpush1.bf16.xpose.msra.mxu0 0
    %2343 = vmatprep.mubr.bf16.mxu0 0
    %2344 = vmatmul.mubr.bf16.gmra.mrb[0].mxu0 %v2306
    %v2345 = vpop.f32.mrb[0].mxu0
    %v2346 = vadd.f32 0.0, %v2345
    %v2347 = vpop.f32.mrb[0].mxu0
    %v2348 = vpop.f32.mrb[0].mxu0
    %v2349 = vadd.f32 0.0, %v2348
    %v2350 = vpop.f32.mrb[0].mxu0
    %2351 = vdwg.mxu0
    %2353 = vrot.lane.b32.xlu0 %v2201, 96
    %v2354 = vpop.permute.xlu0 %2353
    %v2356 = vsel %vm452, %v2201, 0
    %v2359 = vsel %vm452, %v2354, 0
    %2361 = vmatprep.subr.bf16.mxu0 0
    %2362 = vmatpush1.bf16.xpose.msra.mxu0 %v2359
    %2363 = vmatprep.subr.bf16.mxu0 0
    %2364 = vmatpush1.bf16.xpose.msra.mxu0 0
    %2365 = vmatprep.subr.bf16.mxu0 0
    %2366 = vmatpush1.bf16.xpose.msra.mxu0 0
    %2367 = vmatprep.subr.bf16.mxu0 0
    %2368 = vmatpush1.bf16.xpose.msra.mxu0 0
    %2369 = vmatprep.subr.bf16.mxu0 0
    %2370 = vmatpush1.bf16.xpose.msra.mxu0 0
    %2371 = vmatprep.subr.bf16.mxu0 0
    %2372 = vmatpush1.bf16.xpose.msra.mxu0 0
    %2373 = vmatprep.subr.bf16.mxu0 0
    %2374 = vmatpush1.bf16.xpose.msra.mxu0 0
    %2375 = vmatprep.subr.bf16.mxu0 0
    %2376 = vmatpush1.bf16.xpose.msra.mxu0 0
    %2377 = vmatprep.subr.bf16.mxu0 0
    %2378 = vmatpush1.bf16.xpose.msra.mxu0 0
    %2379 = vmatprep.subr.bf16.mxu0 0
    %2380 = vmatpush1.bf16.xpose.msra.mxu0 0
    %2381 = vmatprep.subr.bf16.mxu0 0
    %2382 = vmatpush1.bf16.xpose.msra.mxu0 0
    %2383 = vmatprep.subr.bf16.mxu0 0
    %2384 = vmatpush1.bf16.xpose.msra.mxu0 0
    %2385 = vmatprep.subr.bf16.mxu0 0
    %2386 = vmatpush1.bf16.xpose.msra.mxu0 0
    %2387 = vmatprep.subr.bf16.mxu0 0
    %2388 = vmatpush1.bf16.xpose.msra.mxu0 0
    %2389 = vmatprep.subr.bf16.mxu0 0
    %2390 = vmatpush1.bf16.xpose.msra.mxu0 0
    %2391 = vmatprep.subr.bf16.mxu0 0
    %2392 = vmatpush1.bf16.xpose.msra.mxu0 0
    %2393 = vmatprep.mubr.bf16.mxu0 0
    %2394 = vmatmul.mubr.bf16.gmra.mrb[0].mxu0 %v2356
    %v2395 = vpop.f32.mrb[0].mxu0
    %v2396 = vadd.f32 0.0, %v2395
    %v2397 = vpop.f32.mrb[0].mxu0
    %v2398 = vpop.f32.mrb[0].mxu0
    %v2399 = vadd.f32 0.0, %v2398
    %v2400 = vpop.f32.mrb[0].mxu0
    %2401 = vdwg.mxu0
    %v2402 = vmul.f32 %v2246, 0.35355338
    %v2403 = vmul.f32 %v2249, 0.35355338
    %v2404 = vmul.f32 %v2296, 0.35355338
    %v2405 = vmul.f32 %v2299, 0.35355338
    %v2406 = vmul.f32 %v2346, 0.35355338
    %v2407 = vmul.f32 %v2349, 0.35355338
    %v2408 = vmul.f32 %v2396, 0.35355338
    %v2409 = vmul.f32 %v2399, 0.35355338
    %v2410 = vadd.f32 %v2402, %v267
    %v2411 = vadd.f32 %v2403, %v268
    %v2412 = vadd.f32 %v2404, %v267
    %v2413 = vadd.f32 %v2405, %v268
    %v2414 = vadd.f32 %v2406, %v267
    %v2415 = vadd.f32 %v2407, %v268
    %v2416 = vadd.f32 %v2408, %v267
    %v2417 = vadd.f32 %v2409, %v268
    %v2418 = vsel %vm666, %v2410, -inf
    %2419 = vmax.xlane.f32.xlu0 %v2418
    %v2420 = vpop.xlane.xlu0 %2419
    %v2421 = vsel %vm666, %v2411, -inf
    %2422 = vmax.xlane.f32.xlu0 %v2421
    %v2423 = vpop.xlane.xlu0 %2422
    %v2424 = vsel %vm666, %v2412, -inf
    %2425 = vmax.xlane.f32.xlu0 %v2424
    %v2426 = vpop.xlane.xlu0 %2425
    %v2427 = vsel %vm666, %v2413, -inf
    %2428 = vmax.xlane.f32.xlu0 %v2427
    %v2429 = vpop.xlane.xlu0 %2428
    %v2430 = vsel %vm666, %v2414, -inf
    %2431 = vmax.xlane.f32.xlu0 %v2430
    %v2432 = vpop.xlane.xlu0 %2431
    %v2433 = vsel %vm666, %v2415, -inf
    %2434 = vmax.xlane.f32.xlu0 %v2433
    %v2435 = vpop.xlane.xlu0 %2434
    %v2436 = vsel %vm666, %v2416, -inf
    %2437 = vmax.xlane.f32.xlu0 %v2436
    %v2438 = vpop.xlane.xlu0 %2437
    %v2439 = vsel %vm666, %v2417, -inf
    %2440 = vmax.xlane.f32.xlu0 %v2439
    %v2441 = vpop.xlane.xlu0 %2440
    %v2442 = vsub.f32 %v2410, %v2420
    %v2443 = vsub.f32 %v2411, %v2423
    %v2444 = vsub.f32 %v2412, %v2426
    %v2445 = vsub.f32 %v2413, %v2429
    %v2446 = vsub.f32 %v2414, %v2432
    %v2447 = vsub.f32 %v2415, %v2435
    %v2448 = vsub.f32 %v2416, %v2438
    %v2449 = vsub.f32 %v2417, %v2441
    %v2450 = vmul.f32 %v2442, 1.442695
    %v2451 = vpow.pop %v2450
    %v2452 = vmul.f32 %v2443, 1.442695
    %v2453 = vpow.pop %v2452
    %v2454 = vmul.f32 %v2444, 1.442695
    %v2455 = vpow.pop %v2454
    %v2456 = vmul.f32 %v2445, 1.442695
    %v2457 = vpow.pop %v2456
    %v2458 = vmul.f32 %v2446, 1.442695
    %v2459 = vpow.pop %v2458
    %v2460 = vmul.f32 %v2447, 1.442695
    %v2461 = vpow.pop %v2460
    %v2462 = vmul.f32 %v2448, 1.442695
    %v2463 = vpow.pop %v2462
    %v2464 = vmul.f32 %v2449, 1.442695
    %v2465 = vpow.pop %v2464
    %v2466 = vsel %vm666, %v2451, 0.0
    %2467 = vadd.xlane.f32.xlu0 %v2466
    %v2468 = vpop.xlane.xlu0 %2467
    %v2469 = vsel %vm666, %v2453, 0.0
    %2470 = vadd.xlane.f32.xlu0 %v2469
    %v2471 = vpop.xlane.xlu0 %2470
    %v2472 = vsel %vm666, %v2455, 0.0
    %2473 = vadd.xlane.f32.xlu0 %v2472
    %v2474 = vpop.xlane.xlu0 %2473
    %v2475 = vsel %vm666, %v2457, 0.0
    %2476 = vadd.xlane.f32.xlu0 %v2475
    %v2477 = vpop.xlane.xlu0 %2476
    %v2478 = vsel %vm666, %v2459, 0.0
    %2479 = vadd.xlane.f32.xlu0 %v2478
    %v2480 = vpop.xlane.xlu0 %2479
    %v2481 = vsel %vm666, %v2461, 0.0
    %2482 = vadd.xlane.f32.xlu0 %v2481
    %v2483 = vpop.xlane.xlu0 %2482
    %v2484 = vsel %vm666, %v2463, 0.0
    %2485 = vadd.xlane.f32.xlu0 %v2484
    %v2486 = vpop.xlane.xlu0 %2485
    %v2487 = vsel %vm666, %v2465, 0.0
    %2488 = vadd.xlane.f32.xlu0 %v2487
    %v2489 = vpop.xlane.xlu0 %2488
    %v2490 = vrcp.pop %v2468
    %v2491 = vrcp.pop %v2471
    %v2492 = vrcp.pop %v2474
    %v2493 = vrcp.pop %v2477
    %v2494 = vrcp.pop %v2480
    %v2495 = vrcp.pop %v2483
    %v2496 = vrcp.pop %v2486
    %v2497 = vrcp.pop %v2489
    %v2498 = vmul.f32 %v2451, %v2490
    %v2499 = vmul.f32 %v2453, %v2491
    %v2500 = vmul.f32 %v2455, %v2492
    %v2501 = vmul.f32 %v2457, %v2493
    %v2502 = vmul.f32 %v2459, %v2494
    %v2503 = vmul.f32 %v2461, %v2495
    %v2504 = vmul.f32 %v2463, %v2496
    %v2505 = vmul.f32 %v2465, %v2497
    %v2506 = vpack.c.bf16 %v2499, %v2498
    %v2507 = vpack.c.bf16 %v2501, %v2500
    %v2508 = vpack.c.bf16 %v2503, %v2502
    %v2509 = vpack.c.bf16 %v2505, %v2504
    %2510 = vrot.lane.b32.xlu0 %v2198, 64
    %v2511 = vpop.permute.xlu0 %2510
    %v2514 = vsel %vm666, %v2506, 0
    %2516 = vmatprep.subr.bf16.mxu0 0
    %2517 = vmatpush1.bf16.msra.mxu0 %v2511
    %2518 = vmatprep.subr.bf16.mxu0 0
    %2519 = vmatpush1.bf16.msra.mxu0 0
    %2520 = vmatprep.subr.bf16.mxu0 0
    %2521 = vmatpush1.bf16.msra.mxu0 0
    %2522 = vmatprep.subr.bf16.mxu0 0
    %2523 = vmatpush1.bf16.msra.mxu0 0
    %2524 = vmatprep.subr.bf16.mxu0 0
    %2525 = vmatpush1.bf16.msra.mxu0 0
    %2526 = vmatprep.subr.bf16.mxu0 0
    %2527 = vmatpush1.bf16.msra.mxu0 0
    %2528 = vmatprep.subr.bf16.mxu0 0
    %2529 = vmatpush1.bf16.msra.mxu0 0
    %2530 = vmatprep.subr.bf16.mxu0 0
    %2531 = vmatpush1.bf16.msra.mxu0 0
    %2532 = vmatprep.subr.bf16.mxu0 0
    %2533 = vmatpush1.bf16.msra.mxu0 0
    %2534 = vmatprep.subr.bf16.mxu0 0
    %2535 = vmatpush1.bf16.msra.mxu0 0
    %2536 = vmatprep.subr.bf16.mxu0 0
    %2537 = vmatpush1.bf16.msra.mxu0 0
    %2538 = vmatprep.subr.bf16.mxu0 0
    %2539 = vmatpush1.bf16.msra.mxu0 0
    %2540 = vmatprep.subr.bf16.mxu0 0
    %2541 = vmatpush1.bf16.msra.mxu0 0
    %2542 = vmatprep.subr.bf16.mxu0 0
    %2543 = vmatpush1.bf16.msra.mxu0 0
    %2544 = vmatprep.subr.bf16.mxu0 0
    %2545 = vmatpush1.bf16.msra.mxu0 0
    %2546 = vmatprep.subr.bf16.mxu0 0
    %2547 = vmatpush1.bf16.msra.mxu0 0
    %2548 = vmatprep.mubr.bf16.mxu0 0
    %2549 = vmatmul.mubr.bf16.gmra.mrb[0].mxu0 %v2514
    %v2550 = vpop.f32.mrb[0].mxu0
    %v2551 = vadd.f32 0.0, %v2550
    %v2552 = vpop.f32.mrb[0].mxu0
    %v2553 = vpop.f32.mrb[0].mxu0
    %v2554 = vadd.f32 0.0, %v2553
    %v2555 = vpop.f32.mrb[0].mxu0
    %2556 = vdwg.mxu0
    %2557 = vrot.lane.b32.xlu0 %v2199, 64
    %v2558 = vpop.permute.xlu0 %2557
    %v2561 = vsel %vm666, %v2507, 0
    %2563 = vmatprep.subr.bf16.mxu0 0
    %2564 = vmatpush1.bf16.msra.mxu0 %v2558
    %2565 = vmatprep.subr.bf16.mxu0 0
    %2566 = vmatpush1.bf16.msra.mxu0 0
    %2567 = vmatprep.subr.bf16.mxu0 0
    %2568 = vmatpush1.bf16.msra.mxu0 0
    %2569 = vmatprep.subr.bf16.mxu0 0
    %2570 = vmatpush1.bf16.msra.mxu0 0
    %2571 = vmatprep.subr.bf16.mxu0 0
    %2572 = vmatpush1.bf16.msra.mxu0 0
    %2573 = vmatprep.subr.bf16.mxu0 0
    %2574 = vmatpush1.bf16.msra.mxu0 0
    %2575 = vmatprep.subr.bf16.mxu0 0
    %2576 = vmatpush1.bf16.msra.mxu0 0
    %2577 = vmatprep.subr.bf16.mxu0 0
    %2578 = vmatpush1.bf16.msra.mxu0 0
    %2579 = vmatprep.subr.bf16.mxu0 0
    %2580 = vmatpush1.bf16.msra.mxu0 0
    %2581 = vmatprep.subr.bf16.mxu0 0
    %2582 = vmatpush1.bf16.msra.mxu0 0
    %2583 = vmatprep.subr.bf16.mxu0 0
    %2584 = vmatpush1.bf16.msra.mxu0 0
    %2585 = vmatprep.subr.bf16.mxu0 0
    %2586 = vmatpush1.bf16.msra.mxu0 0
    %2587 = vmatprep.subr.bf16.mxu0 0
    %2588 = vmatpush1.bf16.msra.mxu0 0
    %2589 = vmatprep.subr.bf16.mxu0 0
    %2590 = vmatpush1.bf16.msra.mxu0 0
    %2591 = vmatprep.subr.bf16.mxu0 0
    %2592 = vmatpush1.bf16.msra.mxu0 0
    %2593 = vmatprep.subr.bf16.mxu0 0
    %2594 = vmatpush1.bf16.msra.mxu0 0
    %2595 = vmatprep.mubr.bf16.mxu0 0
    %2596 = vmatmul.mubr.bf16.gmra.mrb[0].mxu0 %v2561
    %v2597 = vpop.f32.mrb[0].mxu0
    %v2598 = vadd.f32 0.0, %v2597
    %v2599 = vpop.f32.mrb[0].mxu0
    %v2600 = vpop.f32.mrb[0].mxu0
    %v2601 = vadd.f32 0.0, %v2600
    %v2602 = vpop.f32.mrb[0].mxu0
    %2603 = vdwg.mxu0
    %2604 = vrot.lane.b32.xlu0 %v2200, 64
    %v2605 = vpop.permute.xlu0 %2604
    %v2608 = vsel %vm666, %v2508, 0
    %2610 = vmatprep.subr.bf16.mxu0 0
    %2611 = vmatpush1.bf16.msra.mxu0 %v2605
    %2612 = vmatprep.subr.bf16.mxu0 0
    %2613 = vmatpush1.bf16.msra.mxu0 0
    %2614 = vmatprep.subr.bf16.mxu0 0
    %2615 = vmatpush1.bf16.msra.mxu0 0
    %2616 = vmatprep.subr.bf16.mxu0 0
    %2617 = vmatpush1.bf16.msra.mxu0 0
    %2618 = vmatprep.subr.bf16.mxu0 0
    %2619 = vmatpush1.bf16.msra.mxu0 0
    %2620 = vmatprep.subr.bf16.mxu0 0
    %2621 = vmatpush1.bf16.msra.mxu0 0
    %2622 = vmatprep.subr.bf16.mxu0 0
    %2623 = vmatpush1.bf16.msra.mxu0 0
    %2624 = vmatprep.subr.bf16.mxu0 0
    %2625 = vmatpush1.bf16.msra.mxu0 0
    %2626 = vmatprep.subr.bf16.mxu0 0
    %2627 = vmatpush1.bf16.msra.mxu0 0
    %2628 = vmatprep.subr.bf16.mxu0 0
    %2629 = vmatpush1.bf16.msra.mxu0 0
    %2630 = vmatprep.subr.bf16.mxu0 0
    %2631 = vmatpush1.bf16.msra.mxu0 0
    %2632 = vmatprep.subr.bf16.mxu0 0
    %2633 = vmatpush1.bf16.msra.mxu0 0
    %2634 = vmatprep.subr.bf16.mxu0 0
    %2635 = vmatpush1.bf16.msra.mxu0 0
    %2636 = vmatprep.subr.bf16.mxu0 0
    %2637 = vmatpush1.bf16.msra.mxu0 0
    %2638 = vmatprep.subr.bf16.mxu0 0
    %2639 = vmatpush1.bf16.msra.mxu0 0
    %2640 = vmatprep.subr.bf16.mxu0 0
    %2641 = vmatpush1.bf16.msra.mxu0 0
    %2642 = vmatprep.mubr.bf16.mxu0 0
    %2643 = vmatmul.mubr.bf16.gmra.mrb[0].mxu0 %v2608
    %v2644 = vpop.f32.mrb[0].mxu0
    %v2645 = vadd.f32 0.0, %v2644
    %v2646 = vpop.f32.mrb[0].mxu0
    %v2647 = vpop.f32.mrb[0].mxu0
    %v2648 = vadd.f32 0.0, %v2647
    %v2649 = vpop.f32.mrb[0].mxu0
    %2650 = vdwg.mxu0
    %2651 = vrot.lane.b32.xlu0 %v2201, 64
    %v2652 = vpop.permute.xlu0 %2651
    %v2655 = vsel %vm666, %v2509, 0
    %2657 = vmatprep.subr.bf16.mxu0 0
    %2658 = vmatpush1.bf16.msra.mxu0 %v2652
    %2659 = vmatprep.subr.bf16.mxu0 0
    %2660 = vmatpush1.bf16.msra.mxu0 0
    %2661 = vmatprep.subr.bf16.mxu0 0
    %2662 = vmatpush1.bf16.msra.mxu0 0
    %2663 = vmatprep.subr.bf16.mxu0 0
    %2664 = vmatpush1.bf16.msra.mxu0 0
    %2665 = vmatprep.subr.bf16.mxu0 0
    %2666 = vmatpush1.bf16.msra.mxu0 0
    %2667 = vmatprep.subr.bf16.mxu0 0
    %2668 = vmatpush1.bf16.msra.mxu0 0
    %2669 = vmatprep.subr.bf16.mxu0 0
    %2670 = vmatpush1.bf16.msra.mxu0 0
    %2671 = vmatprep.subr.bf16.mxu0 0
    %2672 = vmatpush1.bf16.msra.mxu0 0
    %2673 = vmatprep.subr.bf16.mxu0 0
    %2674 = vmatpush1.bf16.msra.mxu0 0
    %2675 = vmatprep.subr.bf16.mxu0 0
    %2676 = vmatpush1.bf16.msra.mxu0 0
    %2677 = vmatprep.subr.bf16.mxu0 0
    %2678 = vmatpush1.bf16.msra.mxu0 0
    %2679 = vmatprep.subr.bf16.mxu0 0
    %2680 = vmatpush1.bf16.msra.mxu0 0
    %2681 = vmatprep.subr.bf16.mxu0 0
    %2682 = vmatpush1.bf16.msra.mxu0 0
    %2683 = vmatprep.subr.bf16.mxu0 0
    %2684 = vmatpush1.bf16.msra.mxu0 0
    %2685 = vmatprep.subr.bf16.mxu0 0
    %2686 = vmatpush1.bf16.msra.mxu0 0
    %2687 = vmatprep.subr.bf16.mxu0 0
    %2688 = vmatpush1.bf16.msra.mxu0 0
    %2689 = vmatprep.mubr.bf16.mxu0 0
    %2690 = vmatmul.mubr.bf16.gmra.mrb[0].mxu0 %v2655
    %v2691 = vpop.f32.mrb[0].mxu0
    %v2692 = vadd.f32 0.0, %v2691
    %v2693 = vpop.f32.mrb[0].mxu0
    %v2694 = vpop.f32.mrb[0].mxu0
    %v2695 = vadd.f32 0.0, %v2694
    %v2696 = vpop.f32.mrb[0].mxu0
    %2697 = vdwg.mxu0
    %2700 = vrot.lane.b32.xlu0 %v2598, 8
    %v2701 = vpop.permute.xlu0 %2700
    %2702 = vrot.lane.b32.xlu0 %v2601, 8
    %v2703 = vpop.permute.xlu0 %2702
    %2708 = vrot.lane.b32.xlu0 %v2645, 16
    %v2709 = vpop.permute.xlu0 %2708
    %2710 = vrot.lane.b32.xlu0 %v2648, 16
    %v2711 = vpop.permute.xlu0 %2710
    %2716 = vrot.lane.b32.xlu0 %v2692, 24
    %v2717 = vpop.permute.xlu0 %2716
    %2718 = vrot.lane.b32.xlu0 %v2695, 24
    %v2719 = vpop.permute.xlu0 %2718
    %v2722 = vsel %vm452, %v2551, %v2701
    %v2723 = vsel %vm452, %v2554, %v2703
    %v2724 = vsel %vm666, %v2722, %v2709
    %v2725 = vsel %vm666, %v2723, %v2711
    %v2726 = vsel %vm975, %v2724, %v2717
    %v2727 = vsel %vm975, %v2725, %v2719
    %v2728 = vpack.c.bf16 %v2727, %v2726
    %v2730 = vlaneseq
    %v2731 = vshrl.u32 %v2730, 7
    %v2732 = vsub.s32 0, %v2731
    %v2733 = vrot.slane %v2177, %v2732
    %v2739 = vunpack.c.l.b16 %v2172
    %v2740 = vunpack.c.l.b16 %v2173
    %v2741 = vunpack.c.l.b16 %v2174
    %v2742 = vunpack.c.l.b16 %v2175
    %v2743 = vpack.c.b16 %v2740, %v2739
    %v2744 = vpack.c.b16 %v2742, %v2741
    %v2748 = vsel %vm296, %v2728, 0
    %2750 = vmatprep.subr.bf16.mxu0 0
    %2751 = vmatpush1.bf16.msra.mxu0 %v2743
    %2752 = vmatprep.subr.bf16.mxu0 0
    %2753 = vmatpush1.bf16.msra.mxu0 %v2744
    %2754 = vmatprep.subr.bf16.mxu0 0
    %2755 = vmatpush1.bf16.msra.mxu0 0
    %2756 = vmatprep.subr.bf16.mxu0 0
    %2757 = vmatpush1.bf16.msra.mxu0 0
    %2758 = vmatprep.subr.bf16.mxu0 0
    %2759 = vmatpush1.bf16.msra.mxu0 0
    %2760 = vmatprep.subr.bf16.mxu0 0
    %2761 = vmatpush1.bf16.msra.mxu0 0
    %2762 = vmatprep.subr.bf16.mxu0 0
    %2763 = vmatpush1.bf16.msra.mxu0 0
    %2764 = vmatprep.subr.bf16.mxu0 0
    %2765 = vmatpush1.bf16.msra.mxu0 0
    %2766 = vmatprep.subr.bf16.mxu0 0
    %2767 = vmatpush1.bf16.msra.mxu0 0
    %2768 = vmatprep.subr.bf16.mxu0 0
    %2769 = vmatpush1.bf16.msra.mxu0 0
    %2770 = vmatprep.subr.bf16.mxu0 0
    %2771 = vmatpush1.bf16.msra.mxu0 0
    %2772 = vmatprep.subr.bf16.mxu0 0
    %2773 = vmatpush1.bf16.msra.mxu0 0
    %2774 = vmatprep.subr.bf16.mxu0 0
    %2775 = vmatpush1.bf16.msra.mxu0 0
    %2776 = vmatprep.subr.bf16.mxu0 0
    %2777 = vmatpush1.bf16.msra.mxu0 0
    %2778 = vmatprep.subr.bf16.mxu0 0
    %2779 = vmatpush1.bf16.msra.mxu0 0
    %2780 = vmatprep.subr.bf16.mxu0 0
    %2781 = vmatpush1.bf16.msra.mxu0 0
    %2782 = vmatprep.mubr.bf16.mxu0 0
    %2783 = vmatmul.mubr.bf16.gmra.mrb[0].mxu0 %v2748
    %v2784 = vpop.f32.mrb[0].mxu0
    %v2785 = vadd.f32 %v2733, %v2784
    %v2786 = vpop.f32.mrb[0].mxu0
    %v2787 = vpop.f32.mrb[0].mxu0
    %v2788 = vadd.f32 %v2733, %v2787
    %v2789 = vpop.f32.mrb[0].mxu0
    %2790 = vdwg.mxu0
    %v2791 = vadd.f32 %v2099, %v2785
    %v2792 = vadd.f32 %v2100, %v2788
    %s2793 = scalar_lea.vmem [#allocation10], 1
    %v2794 = vld [vmem:[%s2793] sm:$0x1]
    %s2795 = scalar_lea.vmem [#allocation11], 1
    %v2796 = vld [vmem:[%s2795] sm:$0x1]
    %v2797 = vsel %vm296, %v2791, 0.0
    %2798 = vadd.xlane.f32.xlu0 %v2797
    %v2799 = vpop.xlane.xlu0 %2798
    %v2800 = vsel %vm296, %v2792, 0.0
    %2801 = vadd.xlane.f32.xlu0 %v2800
    %v2802 = vpop.xlane.xlu0 %2801
    %v2803 = vmul.f32 %v2799, %v1051
    %v2804 = vmul.f32 %v2802, %v1051
    %v2805 = vmul.f32 %v2791, %v2791
    %v2806 = vmul.f32 %v2792, %v2792
    %v2807 = vsel %vm296, %v2805, 0.0
    %2808 = vadd.xlane.f32.xlu0 %v2807
    %v2809 = vpop.xlane.xlu0 %2808
    %v2810 = vsel %vm296, %v2806, 0.0
    %2811 = vadd.xlane.f32.xlu0 %v2810
    %v2812 = vpop.xlane.xlu0 %2811
    %v2813 = vmul.f32 %v2809, %v1051
    %v2814 = vmul.f32 %v2812, %v1051
    %v2815 = vmul.f32 %v2803, %v2803
    %v2816 = vmul.f32 %v2804, %v2804
    %v2817 = vsub.f32 %v2813, %v2815
    %v2818 = vsub.f32 %v2814, %v2816
    %v2819 = vsub.f32 %v2791, %v2803
    %v2820 = vsub.f32 %v2792, %v2804
    %v2821 = vadd.f32 %v2817, 1e-05
    %v2822 = vadd.f32 %v2818, 1e-05
    %v2823 = vrsqrt.pop %v2821
    %v2824 = vrsqrt.pop %v2822
    %v2825 = vmul.f32 %v2819, %v2823
    %v2826 = vmul.f32 %v2820, %v2824
    %v2828 = vlaneseq
    %v2829 = vshrl.u32 %v2828, 7
    %v2830 = vsub.s32 0, %v2829
    %v2831 = vrot.slane %v2794, %v2830
    %v2833 = vmul.f32 %v2825, %v2831
    %v2834 = vmul.f32 %v2826, %v2831
    %v2836 = vlaneseq
    %v2837 = vshrl.u32 %v2836, 7
    %v2838 = vsub.s32 0, %v2837
    %v2839 = vrot.slane %v2796, %v2838
    %v2841 = vadd.f32 %v2833, %v2839
    %v2842 = vadd.f32 %v2834, %v2839
    %v2843 = vpack.c.bf16 %v2842, %v2841
    %s2844 = scalar_lea.vmem %s9, 16
    %v2845 = vld [vmem:[%s2844] sm:$0xf]
    %v2846 = vld [vmem:[%s2844 + $0x4] sm:$0xf]
    %v2847 = vld [vmem:[%s2844 + $0x8] sm:$0xf]
    %v2848 = vld [vmem:[%s2844 + $0xc] sm:$0xf]
    %s2849 = scalar_lea.vmem [#allocation5], 1
    %v2850 = vld [vmem:[%s2849] sm:$0x1]
    %v2852 = vlaneseq
    %v2853 = vshrl.u32 %v2852, 7
    %v2854 = vsub.s32 0, %v2853
    %v2855 = vrot.slane %v2850, %v2854
    %v2861 = vunpack.c.l.b16 %v2845
    %v2862 = vunpack.c.l.b16 %v2846
    %v2863 = vunpack.c.l.b16 %v2847
    %v2864 = vunpack.c.l.b16 %v2848
    %v2865 = vpack.c.b16 %v2862, %v2861
    %v2866 = vpack.c.b16 %v2864, %v2863
    %v2870 = vsel %vm296, %v2843, 0
    %2872 = vmatprep.subr.bf16.mxu0 0
    %2873 = vmatpush1.bf16.msra.mxu0 %v2865
    %2874 = vmatprep.subr.bf16.mxu0 0
    %2875 = vmatpush1.bf16.msra.mxu0 %v2866
    %2876 = vmatprep.subr.bf16.mxu0 0
    %2877 = vmatpush1.bf16.msra.mxu0 0
    %2878 = vmatprep.subr.bf16.mxu0 0
    %2879 = vmatpush1.bf16.msra.mxu0 0
    %2880 = vmatprep.subr.bf16.mxu0 0
    %2881 = vmatpush1.bf16.msra.mxu0 0
    %2882 = vmatprep.subr.bf16.mxu0 0
    %2883 = vmatpush1.bf16.msra.mxu0 0
    %2884 = vmatprep.subr.bf16.mxu0 0
    %2885 = vmatpush1.bf16.msra.mxu0 0
    %2886 = vmatprep.subr.bf16.mxu0 0
    %2887 = vmatpush1.bf16.msra.mxu0 0
    %2888 = vmatprep.subr.bf16.mxu0 0
    %2889 = vmatpush1.bf16.msra.mxu0 0
    %2890 = vmatprep.subr.bf16.mxu0 0
    %2891 = vmatpush1.bf16.msra.mxu0 0
    %2892 = vmatprep.subr.bf16.mxu0 0
    %2893 = vmatpush1.bf16.msra.mxu0 0
    %2894 = vmatprep.subr.bf16.mxu0 0
    %2895 = vmatpush1.bf16.msra.mxu0 0
    %2896 = vmatprep.subr.bf16.mxu0 0
    %2897 = vmatpush1.bf16.msra.mxu0 0
    %2898 = vmatprep.subr.bf16.mxu0 0
    %2899 = vmatpush1.bf16.msra.mxu0 0
    %2900 = vmatprep.subr.bf16.mxu0 0
    %2901 = vmatpush1.bf16.msra.mxu0 0
    %2902 = vmatprep.subr.bf16.mxu0 0
    %2903 = vmatpush1.bf16.msra.mxu0 0
    %2904 = vmatprep.mubr.bf16.mxu0 0
    %2905 = vmatmul.mubr.bf16.gmra.mrb[0].mxu0 %v2870
    %v2906 = vpop.f32.mrb[0].mxu0
    %v2907 = vadd.f32 %v2855, %v2906
    %v2908 = vpop.f32.mrb[0].mxu0
    %v2909 = vpop.f32.mrb[0].mxu0
    %v2910 = vadd.f32 %v2855, %v2909
    %v2911 = vpop.f32.mrb[0].mxu0
    %2912 = vdwg.mxu0
    %s2913 = scalar_lea.vmem %s13, 16
    %v2914 = vld [vmem:[%s2913] sm:$0xf]
    %v2915 = vld [vmem:[%s2913 + $0x4] sm:$0xf]
    %v2916 = vld [vmem:[%s2913 + $0x8] sm:$0xf]
    %v2917 = vld [vmem:[%s2913 + $0xc] sm:$0xf]
    %s2918 = scalar_lea.vmem [#allocation8], 1
    %v2919 = vld [vmem:[%s2918] sm:$0x1]
    %2922 = vrot.lane.b32.xlu0 %v2907, 120
    %v2923 = vpop.permute.xlu0 %2922
    %2924 = vrot.lane.b32.xlu0 %v2910, 120
    %v2925 = vpop.permute.xlu0 %2924
    %2928 = vrot.lane.b32.xlu0 %v2907, 112
    %v2929 = vpop.permute.xlu0 %2928
    %2930 = vrot.lane.b32.xlu0 %v2910, 112
    %v2931 = vpop.permute.xlu0 %2930
    %2934 = vrot.lane.b32.xlu0 %v2907, 104
    %v2935 = vpop.permute.xlu0 %2934
    %2936 = vrot.lane.b32.xlu0 %v2910, 104
    %v2937 = vpop.permute.xlu0 %2936
    %v2940 = vpack.c.bf16 %v2910, %v2907
    %v2941 = vpack.c.bf16 %v2925, %v2923
    %v2942 = vpack.c.bf16 %v2931, %v2929
    %v2943 = vpack.c.bf16 %v2937, %v2935
    %2944 = vrot.lane.b32.xlu0 %v1229, 64
    %v2945 = vpop.permute.xlu0 %2944
    %2946 = vrot.lane.b32.xlu0 %v1230, 64
    %v2947 = vpop.permute.xlu0 %2946
    %v2949 = vsel %vm452, %v2940, 0
    %v2952 = vsel %vm452, %v2945, 0
    %v2955 = vsel %vm452, %v2947, 0
    %2957 = vmatprep.subr.bf16.mxu0 0
    %2958 = vmatpush1.bf16.xpose.msra.mxu0 %v2952
    %2959 = vmatprep.subr.bf16.mxu0 0
    %2960 = vmatpush1.bf16.xpose.msra.mxu0 %v2955
    %2961 = vmatprep.subr.bf16.mxu0 0
    %2962 = vmatpush1.bf16.xpose.msra.mxu0 0
    %2963 = vmatprep.subr.bf16.mxu0 0
    %2964 = vmatpush1.bf16.xpose.msra.mxu0 0
    %2965 = vmatprep.subr.bf16.mxu0 0
    %2966 = vmatpush1.bf16.xpose.msra.mxu0 0
    %2967 = vmatprep.subr.bf16.mxu0 0
    %2968 = vmatpush1.bf16.xpose.msra.mxu0 0
    %2969 = vmatprep.subr.bf16.mxu0 0
    %2970 = vmatpush1.bf16.xpose.msra.mxu0 0
    %2971 = vmatprep.subr.bf16.mxu0 0
    %2972 = vmatpush1.bf16.xpose.msra.mxu0 0
    %2973 = vmatprep.subr.bf16.mxu0 0
    %2974 = vmatpush1.bf16.xpose.msra.mxu0 0
    %2975 = vmatprep.subr.bf16.mxu0 0
    %2976 = vmatpush1.bf16.xpose.msra.mxu0 0
    %2977 = vmatprep.subr.bf16.mxu0 0
    %2978 = vmatpush1.bf16.xpose.msra.mxu0 0
    %2979 = vmatprep.subr.bf16.mxu0 0
    %2980 = vmatpush1.bf16.xpose.msra.mxu0 0
    %2981 = vmatprep.subr.bf16.mxu0 0
    %2982 = vmatpush1.bf16.xpose.msra.mxu0 0
    %2983 = vmatprep.subr.bf16.mxu0 0
    %2984 = vmatpush1.bf16.xpose.msra.mxu0 0
    %2985 = vmatprep.subr.bf16.mxu0 0
    %2986 = vmatpush1.bf16.xpose.msra.mxu0 0
    %2987 = vmatprep.subr.bf16.mxu0 0
    %2988 = vmatpush1.bf16.xpose.msra.mxu0 0
    %2989 = vmatprep.mubr.bf16.mxu0 0
    %2990 = vmatmul.mubr.bf16.gmra.mrb[0].mxu0 %v2949
    %v2991 = vpop.f32.mrb[0].mxu0
    %v2992 = vadd.f32 0.0, %v2991
    %v2993 = vpop.f32.mrb[0].mxu0
    %v2994 = vpop.f32.mrb[0].mxu0
    %v2995 = vadd.f32 0.0, %v2994
    %v2996 = vpop.f32.mrb[0].mxu0
    %2997 = vdwg.mxu0
    %2998 = vrot.lane.b32.xlu0 %v1231, 64
    %v2999 = vpop.permute.xlu0 %2998
    %3000 = vrot.lane.b32.xlu0 %v1232, 64
    %v3001 = vpop.permute.xlu0 %3000
    %v3003 = vsel %vm452, %v2941, 0
    %v3006 = vsel %vm452, %v2999, 0
    %v3009 = vsel %vm452, %v3001, 0
    %3011 = vmatprep.subr.bf16.mxu0 0
    %3012 = vmatpush1.bf16.xpose.msra.mxu0 %v3006
    %3013 = vmatprep.subr.bf16.mxu0 0
    %3014 = vmatpush1.bf16.xpose.msra.mxu0 %v3009
    %3015 = vmatprep.subr.bf16.mxu0 0
    %3016 = vmatpush1.bf16.xpose.msra.mxu0 0
    %3017 = vmatprep.subr.bf16.mxu0 0
    %3018 = vmatpush1.bf16.xpose.msra.mxu0 0
    %3019 = vmatprep.subr.bf16.mxu0 0
    %3020 = vmatpush1.bf16.xpose.msra.mxu0 0
    %3021 = vmatprep.subr.bf16.mxu0 0
    %3022 = vmatpush1.bf16.xpose.msra.mxu0 0
    %3023 = vmatprep.subr.bf16.mxu0 0
    %3024 = vmatpush1.bf16.xpose.msra.mxu0 0
    %3025 = vmatprep.subr.bf16.mxu0 0
    %3026 = vmatpush1.bf16.xpose.msra.mxu0 0
    %3027 = vmatprep.subr.bf16.mxu0 0
    %3028 = vmatpush1.bf16.xpose.msra.mxu0 0
    %3029 = vmatprep.subr.bf16.mxu0 0
    %3030 = vmatpush1.bf16.xpose.msra.mxu0 0
    %3031 = vmatprep.subr.bf16.mxu0 0
    %3032 = vmatpush1.bf16.xpose.msra.mxu0 0
    %3033 = vmatprep.subr.bf16.mxu0 0
    %3034 = vmatpush1.bf16.xpose.msra.mxu0 0
    %3035 = vmatprep.subr.bf16.mxu0 0
    %3036 = vmatpush1.bf16.xpose.msra.mxu0 0
    %3037 = vmatprep.subr.bf16.mxu0 0
    %3038 = vmatpush1.bf16.xpose.msra.mxu0 0
    %3039 = vmatprep.subr.bf16.mxu0 0
    %3040 = vmatpush1.bf16.xpose.msra.mxu0 0
    %3041 = vmatprep.subr.bf16.mxu0 0
    %3042 = vmatpush1.bf16.xpose.msra.mxu0 0
    %3043 = vmatprep.mubr.bf16.mxu0 0
    %3044 = vmatmul.mubr.bf16.gmra.mrb[0].mxu0 %v3003
    %v3045 = vpop.f32.mrb[0].mxu0
    %v3046 = vadd.f32 0.0, %v3045
    %v3047 = vpop.f32.mrb[0].mxu0
    %v3048 = vpop.f32.mrb[0].mxu0
    %v3049 = vadd.f32 0.0, %v3048
    %v3050 = vpop.f32.mrb[0].mxu0
    %3051 = vdwg.mxu0
    %3052 = vrot.lane.b32.xlu0 %v1233, 64
    %v3053 = vpop.permute.xlu0 %3052
    %3054 = vrot.lane.b32.xlu0 %v1234, 64
    %v3055 = vpop.permute.xlu0 %3054
    %v3057 = vsel %vm452, %v2942, 0
    %v3060 = vsel %vm452, %v3053, 0
    %v3063 = vsel %vm452, %v3055, 0
    %3065 = vmatprep.subr.bf16.mxu0 0
    %3066 = vmatpush1.bf16.xpose.msra.mxu0 %v3060
    %3067 = vmatprep.subr.bf16.mxu0 0
    %3068 = vmatpush1.bf16.xpose.msra.mxu0 %v3063
    %3069 = vmatprep.subr.bf16.mxu0 0
    %3070 = vmatpush1.bf16.xpose.msra.mxu0 0
    %3071 = vmatprep.subr.bf16.mxu0 0
    %3072 = vmatpush1.bf16.xpose.msra.mxu0 0
    %3073 = vmatprep.subr.bf16.mxu0 0
    %3074 = vmatpush1.bf16.xpose.msra.mxu0 0
    %3075 = vmatprep.subr.bf16.mxu0 0
    %3076 = vmatpush1.bf16.xpose.msra.mxu0 0
    %3077 = vmatprep.subr.bf16.mxu0 0
    %3078 = vmatpush1.bf16.xpose.msra.mxu0 0
    %3079 = vmatprep.subr.bf16.mxu0 0
    %3080 = vmatpush1.bf16.xpose.msra.mxu0 0
    %3081 = vmatprep.subr.bf16.mxu0 0
    %3082 = vmatpush1.bf16.xpose.msra.mxu0 0
    %3083 = vmatprep.subr.bf16.mxu0 0
    %3084 = vmatpush1.bf16.xpose.msra.mxu0 0
    %3085 = vmatprep.subr.bf16.mxu0 0
    %3086 = vmatpush1.bf16.xpose.msra.mxu0 0
    %3087 = vmatprep.subr.bf16.mxu0 0
    %3088 = vmatpush1.bf16.xpose.msra.mxu0 0
    %3089 = vmatprep.subr.bf16.mxu0 0
    %3090 = vmatpush1.bf16.xpose.msra.mxu0 0
    %3091 = vmatprep.subr.bf16.mxu0 0
    %3092 = vmatpush1.bf16.xpose.msra.mxu0 0
    %3093 = vmatprep.subr.bf16.mxu0 0
    %3094 = vmatpush1.bf16.xpose.msra.mxu0 0
    %3095 = vmatprep.subr.bf16.mxu0 0
    %3096 = vmatpush1.bf16.xpose.msra.mxu0 0
    %3097 = vmatprep.mubr.bf16.mxu0 0
    %3098 = vmatmul.mubr.bf16.gmra.mrb[0].mxu0 %v3057
    %v3099 = vpop.f32.mrb[0].mxu0
    %v3100 = vadd.f32 0.0, %v3099
    %v3101 = vpop.f32.mrb[0].mxu0
    %v3102 = vpop.f32.mrb[0].mxu0
    %v3103 = vadd.f32 0.0, %v3102
    %v3104 = vpop.f32.mrb[0].mxu0
    %3105 = vdwg.mxu0
    %3106 = vrot.lane.b32.xlu0 %v1235, 64
    %v3107 = vpop.permute.xlu0 %3106
    %3108 = vrot.lane.b32.xlu0 %v1236, 64
    %v3109 = vpop.permute.xlu0 %3108
    %v3111 = vsel %vm452, %v2943, 0
    %v3114 = vsel %vm452, %v3107, 0
    %v3117 = vsel %vm452, %v3109, 0
    %3119 = vmatprep.subr.bf16.mxu0 0
    %3120 = vmatpush1.bf16.xpose.msra.mxu0 %v3114
    %3121 = vmatprep.subr.bf16.mxu0 0
    %3122 = vmatpush1.bf16.xpose.msra.mxu0 %v3117
    %3123 = vmatprep.subr.bf16.mxu0 0
    %3124 = vmatpush1.bf16.xpose.msra.mxu0 0
    %3125 = vmatprep.subr.bf16.mxu0 0
    %3126 = vmatpush1.bf16.xpose.msra.mxu0 0
    %3127 = vmatprep.subr.bf16.mxu0 0
    %3128 = vmatpush1.bf16.xpose.msra.mxu0 0
    %3129 = vmatprep.subr.bf16.mxu0 0
    %3130 = vmatpush1.bf16.xpose.msra.mxu0 0
    %3131 = vmatprep.subr.bf16.mxu0 0
    %3132 = vmatpush1.bf16.xpose.msra.mxu0 0
    %3133 = vmatprep.subr.bf16.mxu0 0
    %3134 = vmatpush1.bf16.xpose.msra.mxu0 0
    %3135 = vmatprep.subr.bf16.mxu0 0
    %3136 = vmatpush1.bf16.xpose.msra.mxu0 0
    %3137 = vmatprep.subr.bf16.mxu0 0
    %3138 = vmatpush1.bf16.xpose.msra.mxu0 0
    %3139 = vmatprep.subr.bf16.mxu0 0
    %3140 = vmatpush1.bf16.xpose.msra.mxu0 0
    %3141 = vmatprep.subr.bf16.mxu0 0
    %3142 = vmatpush1.bf16.xpose.msra.mxu0 0
    %3143 = vmatprep.subr.bf16.mxu0 0
    %3144 = vmatpush1.bf16.xpose.msra.mxu0 0
    %3145 = vmatprep.subr.bf16.mxu0 0
    %3146 = vmatpush1.bf16.xpose.msra.mxu0 0
    %3147 = vmatprep.subr.bf16.mxu0 0
    %3148 = vmatpush1.bf16.xpose.msra.mxu0 0
    %3149 = vmatprep.subr.bf16.mxu0 0
    %3150 = vmatpush1.bf16.xpose.msra.mxu0 0
    %3151 = vmatprep.mubr.bf16.mxu0 0
    %3152 = vmatmul.mubr.bf16.gmra.mrb[0].mxu0 %v3111
    %v3153 = vpop.f32.mrb[0].mxu0
    %v3154 = vadd.f32 0.0, %v3153
    %v3155 = vpop.f32.mrb[0].mxu0
    %v3156 = vpop.f32.mrb[0].mxu0
    %v3157 = vadd.f32 0.0, %v3156
    %v3158 = vpop.f32.mrb[0].mxu0
    %3159 = vdwg.mxu0
    %v3160 = vmul.f32 %v2992, 0.35355338
    %v3161 = vmul.f32 %v2995, 0.35355338
    %v3162 = vmul.f32 %v3046, 0.35355338
    %v3163 = vmul.f32 %v3049, 0.35355338
    %v3164 = vmul.f32 %v3100, 0.35355338
    %v3165 = vmul.f32 %v3103, 0.35355338
    %v3166 = vmul.f32 %v3154, 0.35355338
    %v3167 = vmul.f32 %v3157, 0.35355338
    %v3168 = vadd.f32 %v3160, %v269
    %v3169 = vadd.f32 %v3161, %v270
    %v3170 = vadd.f32 %v3162, %v269
    %v3171 = vadd.f32 %v3163, %v270
    %v3172 = vadd.f32 %v3164, %v269
    %v3173 = vadd.f32 %v3165, %v270
    %v3174 = vadd.f32 %v3166, %v269
    %v3175 = vadd.f32 %v3167, %v270
    %v3176 = vsel %vm296, %v3168, -inf
    %3177 = vmax.xlane.f32.xlu0 %v3176
    %v3178 = vpop.xlane.xlu0 %3177
    %v3179 = vsel %vm296, %v3169, -inf
    %3180 = vmax.xlane.f32.xlu0 %v3179
    %v3181 = vpop.xlane.xlu0 %3180
    %v3182 = vsel %vm296, %v3170, -inf
    %3183 = vmax.xlane.f32.xlu0 %v3182
    %v3184 = vpop.xlane.xlu0 %3183
    %v3185 = vsel %vm296, %v3171, -inf
    %3186 = vmax.xlane.f32.xlu0 %v3185
    %v3187 = vpop.xlane.xlu0 %3186
    %v3188 = vsel %vm296, %v3172, -inf
    %3189 = vmax.xlane.f32.xlu0 %v3188
    %v3190 = vpop.xlane.xlu0 %3189
    %v3191 = vsel %vm296, %v3173, -inf
    %3192 = vmax.xlane.f32.xlu0 %v3191
    %v3193 = vpop.xlane.xlu0 %3192
    %v3194 = vsel %vm296, %v3174, -inf
    %3195 = vmax.xlane.f32.xlu0 %v3194
    %v3196 = vpop.xlane.xlu0 %3195
    %v3197 = vsel %vm296, %v3175, -inf
    %3198 = vmax.xlane.f32.xlu0 %v3197
    %v3199 = vpop.xlane.xlu0 %3198
    %v3200 = vsub.f32 %v3168, %v3178
    %v3201 = vsub.f32 %v3169, %v3181
    %v3202 = vsub.f32 %v3170, %v3184
    %v3203 = vsub.f32 %v3171, %v3187
    %v3204 = vsub.f32 %v3172, %v3190
    %v3205 = vsub.f32 %v3173, %v3193
    %v3206 = vsub.f32 %v3174, %v3196
    %v3207 = vsub.f32 %v3175, %v3199
    %v3208 = vmul.f32 %v3200, 1.442695
    %v3209 = vpow.pop %v3208
    %v3210 = vmul.f32 %v3201, 1.442695
    %v3211 = vpow.pop %v3210
    %v3212 = vmul.f32 %v3202, 1.442695
    %v3213 = vpow.pop %v3212
    %v3214 = vmul.f32 %v3203, 1.442695
    %v3215 = vpow.pop %v3214
    %v3216 = vmul.f32 %v3204, 1.442695
    %v3217 = vpow.pop %v3216
    %v3218 = vmul.f32 %v3205, 1.442695
    %v3219 = vpow.pop %v3218
    %v3220 = vmul.f32 %v3206, 1.442695
    %v3221 = vpow.pop %v3220
    %v3222 = vmul.f32 %v3207, 1.442695
    %v3223 = vpow.pop %v3222
    %v3224 = vsel %vm296, %v3209, 0.0
    %3225 = vadd.xlane.f32.xlu0 %v3224
    %v3226 = vpop.xlane.xlu0 %3225
    %v3227 = vsel %vm296, %v3211, 0.0
    %3228 = vadd.xlane.f32.xlu0 %v3227
    %v3229 = vpop.xlane.xlu0 %3228
    %v3230 = vsel %vm296, %v3213, 0.0
    %3231 = vadd.xlane.f32.xlu0 %v3230
    %v3232 = vpop.xlane.xlu0 %3231
    %v3233 = vsel %vm296, %v3215, 0.0
    %3234 = vadd.xlane.f32.xlu0 %v3233
    %v3235 = vpop.xlane.xlu0 %3234
    %v3236 = vsel %vm296, %v3217, 0.0
    %3237 = vadd.xlane.f32.xlu0 %v3236
    %v3238 = vpop.xlane.xlu0 %3237
    %v3239 = vsel %vm296, %v3219, 0.0
    %3240 = vadd.xlane.f32.xlu0 %v3239
    %v3241 = vpop.xlane.xlu0 %3240
    %v3242 = vsel %vm296, %v3221, 0.0
    %3243 = vadd.xlane.f32.xlu0 %v3242
    %v3244 = vpop.xlane.xlu0 %3243
    %v3245 = vsel %vm296, %v3223, 0.0
    %3246 = vadd.xlane.f32.xlu0 %v3245
    %v3247 = vpop.xlane.xlu0 %3246
    %v3248 = vrcp.pop %v3226
    %v3249 = vrcp.pop %v3229
    %v3250 = vrcp.pop %v3232
    %v3251 = vrcp.pop %v3235
    %v3252 = vrcp.pop %v3238
    %v3253 = vrcp.pop %v3241
    %v3254 = vrcp.pop %v3244
    %v3255 = vrcp.pop %v3247
    %v3256 = vmul.f32 %v3209, %v3248
    %v3257 = vmul.f32 %v3211, %v3249
    %v3258 = vmul.f32 %v3213, %v3250
    %v3259 = vmul.f32 %v3215, %v3251
    %v3260 = vmul.f32 %v3217, %v3252
    %v3261 = vmul.f32 %v3219, %v3253
    %v3262 = vmul.f32 %v3221, %v3254
    %v3263 = vmul.f32 %v3223, %v3255
    %v3264 = vpack.c.bf16 %v3257, %v3256
    %v3265 = vpack.c.bf16 %v3259, %v3258
    %v3266 = vpack.c.bf16 %v3261, %v3260
    %v3267 = vpack.c.bf16 %v3263, %v3262
    %3268 = vrot.lane.b32.xlu0 %v1229, 32
    %v3269 = vpop.permute.xlu0 %3268
    %3270 = vrot.lane.b32.xlu0 %v1230, 32
    %v3271 = vpop.permute.xlu0 %3270
    %v3275 = vsel %vm296, %v3264, 0
    %3277 = vmatprep.subr.bf16.mxu0 0
    %3278 = vmatpush1.bf16.msra.mxu0 %v3269
    %3279 = vmatprep.subr.bf16.mxu0 0
    %3280 = vmatpush1.bf16.msra.mxu0 %v3271
    %3281 = vmatprep.subr.bf16.mxu0 0
    %3282 = vmatpush1.bf16.msra.mxu0 0
    %3283 = vmatprep.subr.bf16.mxu0 0
    %3284 = vmatpush1.bf16.msra.mxu0 0
    %3285 = vmatprep.subr.bf16.mxu0 0
    %3286 = vmatpush1.bf16.msra.mxu0 0
    %3287 = vmatprep.subr.bf16.mxu0 0
    %3288 = vmatpush1.bf16.msra.mxu0 0
    %3289 = vmatprep.subr.bf16.mxu0 0
    %3290 = vmatpush1.bf16.msra.mxu0 0
    %3291 = vmatprep.subr.bf16.mxu0 0
    %3292 = vmatpush1.bf16.msra.mxu0 0
    %3293 = vmatprep.subr.bf16.mxu0 0
    %3294 = vmatpush1.bf16.msra.mxu0 0
    %3295 = vmatprep.subr.bf16.mxu0 0
    %3296 = vmatpush1.bf16.msra.mxu0 0
    %3297 = vmatprep.subr.bf16.mxu0 0
    %3298 = vmatpush1.bf16.msra.mxu0 0
    %3299 = vmatprep.subr.bf16.mxu0 0
    %3300 = vmatpush1.bf16.msra.mxu0 0
    %3301 = vmatprep.subr.bf16.mxu0 0
    %3302 = vmatpush1.bf16.msra.mxu0 0
    %3303 = vmatprep.subr.bf16.mxu0 0
    %3304 = vmatpush1.bf16.msra.mxu0 0
    %3305 = vmatprep.subr.bf16.mxu0 0
    %3306 = vmatpush1.bf16.msra.mxu0 0
    %3307 = vmatprep.subr.bf16.mxu0 0
    %3308 = vmatpush1.bf16.msra.mxu0 0
    %3309 = vmatprep.mubr.bf16.mxu0 0
    %3310 = vmatmul.mubr.bf16.gmra.mrb[0].mxu0 %v3275
    %v3311 = vpop.f32.mrb[0].mxu0
    %v3312 = vadd.f32 0.0, %v3311
    %v3313 = vpop.f32.mrb[0].mxu0
    %v3314 = vpop.f32.mrb[0].mxu0
    %v3315 = vadd.f32 0.0, %v3314
    %v3316 = vpop.f32.mrb[0].mxu0
    %3317 = vdwg.mxu0
    %3318 = vrot.lane.b32.xlu0 %v1231, 32
    %v3319 = vpop.permute.xlu0 %3318
    %3320 = vrot.lane.b32.xlu0 %v1232, 32
    %v3321 = vpop.permute.xlu0 %3320
    %v3325 = vsel %vm296, %v3265, 0
    %3327 = vmatprep.subr.bf16.mxu0 0
    %3328 = vmatpush1.bf16.msra.mxu0 %v3319
    %3329 = vmatprep.subr.bf16.mxu0 0
    %3330 = vmatpush1.bf16.msra.mxu0 %v3321
    %3331 = vmatprep.subr.bf16.mxu0 0
    %3332 = vmatpush1.bf16.msra.mxu0 0
    %3333 = vmatprep.subr.bf16.mxu0 0
    %3334 = vmatpush1.bf16.msra.mxu0 0
    %3335 = vmatprep.subr.bf16.mxu0 0
    %3336 = vmatpush1.bf16.msra.mxu0 0
    %3337 = vmatprep.subr.bf16.mxu0 0
    %3338 = vmatpush1.bf16.msra.mxu0 0
    %3339 = vmatprep.subr.bf16.mxu0 0
    %3340 = vmatpush1.bf16.msra.mxu0 0
    %3341 = vmatprep.subr.bf16.mxu0 0
    %3342 = vmatpush1.bf16.msra.mxu0 0
    %3343 = vmatprep.subr.bf16.mxu0 0
    %3344 = vmatpush1.bf16.msra.mxu0 0
    %3345 = vmatprep.subr.bf16.mxu0 0
    %3346 = vmatpush1.bf16.msra.mxu0 0
    %3347 = vmatprep.subr.bf16.mxu0 0
    %3348 = vmatpush1.bf16.msra.mxu0 0
    %3349 = vmatprep.subr.bf16.mxu0 0
    %3350 = vmatpush1.bf16.msra.mxu0 0
    %3351 = vmatprep.subr.bf16.mxu0 0
    %3352 = vmatpush1.bf16.msra.mxu0 0
    %3353 = vmatprep.subr.bf16.mxu0 0
    %3354 = vmatpush1.bf16.msra.mxu0 0
    %3355 = vmatprep.subr.bf16.mxu0 0
    %3356 = vmatpush1.bf16.msra.mxu0 0
    %3357 = vmatprep.subr.bf16.mxu0 0
    %3358 = vmatpush1.bf16.msra.mxu0 0
    %3359 = vmatprep.mubr.bf16.mxu0 0
    %3360 = vmatmul.mubr.bf16.gmra.mrb[0].mxu0 %v3325
    %v3361 = vpop.f32.mrb[0].mxu0
    %v3362 = vadd.f32 0.0, %v3361
    %v3363 = vpop.f32.mrb[0].mxu0
    %v3364 = vpop.f32.mrb[0].mxu0
    %v3365 = vadd.f32 0.0, %v3364
    %v3366 = vpop.f32.mrb[0].mxu0
    %3367 = vdwg.mxu0
    %3368 = vrot.lane.b32.xlu0 %v1233, 32
    %v3369 = vpop.permute.xlu0 %3368
    %3370 = vrot.lane.b32.xlu0 %v1234, 32
    %v3371 = vpop.permute.xlu0 %3370
    %v3375 = vsel %vm296, %v3266, 0
    %3377 = vmatprep.subr.bf16.mxu0 0
    %3378 = vmatpush1.bf16.msra.mxu0 %v3369
    %3379 = vmatprep.subr.bf16.mxu0 0
    %3380 = vmatpush1.bf16.msra.mxu0 %v3371
    %3381 = vmatprep.subr.bf16.mxu0 0
    %3382 = vmatpush1.bf16.msra.mxu0 0
    %3383 = vmatprep.subr.bf16.mxu0 0
    %3384 = vmatpush1.bf16.msra.mxu0 0
    %3385 = vmatprep.subr.bf16.mxu0 0
    %3386 = vmatpush1.bf16.msra.mxu0 0
    %3387 = vmatprep.subr.bf16.mxu0 0
    %3388 = vmatpush1.bf16.msra.mxu0 0
    %3389 = vmatprep.subr.bf16.mxu0 0
    %3390 = vmatpush1.bf16.msra.mxu0 0
    %3391 = vmatprep.subr.bf16.mxu0 0
    %3392 = vmatpush1.bf16.msra.mxu0 0
    %3393 = vmatprep.subr.bf16.mxu0 0
    %3394 = vmatpush1.bf16.msra.mxu0 0
    %3395 = vmatprep.subr.bf16.mxu0 0
    %3396 = vmatpush1.bf16.msra.mxu0 0
    %3397 = vmatprep.subr.bf16.mxu0 0
    %3398 = vmatpush1.bf16.msra.mxu0 0
    %3399 = vmatprep.subr.bf16.mxu0 0
    %3400 = vmatpush1.bf16.msra.mxu0 0
    %3401 = vmatprep.subr.bf16.mxu0 0
    %3402 = vmatpush1.bf16.msra.mxu0 0
    %3403 = vmatprep.subr.bf16.mxu0 0
    %3404 = vmatpush1.bf16.msra.mxu0 0
    %3405 = vmatprep.subr.bf16.mxu0 0
    %3406 = vmatpush1.bf16.msra.mxu0 0
    %3407 = vmatprep.subr.bf16.mxu0 0
    %3408 = vmatpush1.bf16.msra.mxu0 0
    %3409 = vmatprep.mubr.bf16.mxu0 0
    %3410 = vmatmul.mubr.bf16.gmra.mrb[0].mxu0 %v3375
    %v3411 = vpop.f32.mrb[0].mxu0
    %v3412 = vadd.f32 0.0, %v3411
    %v3413 = vpop.f32.mrb[0].mxu0
    %v3414 = vpop.f32.mrb[0].mxu0
    %v3415 = vadd.f32 0.0, %v3414
    %v3416 = vpop.f32.mrb[0].mxu0
    %3417 = vdwg.mxu0
    %3418 = vrot.lane.b32.xlu0 %v1235, 32
    %v3419 = vpop.permute.xlu0 %3418
    %3420 = vrot.lane.b32.xlu0 %v1236, 32
    %v3421 = vpop.permute.xlu0 %3420
    %v3425 = vsel %vm296, %v3267, 0
    %3427 = vmatprep.subr.bf16.mxu0 0
    %3428 = vmatpush1.bf16.msra.mxu0 %v3419
    %3429 = vmatprep.subr.bf16.mxu0 0
    %3430 = vmatpush1.bf16.msra.mxu0 %v3421
    %3431 = vmatprep.subr.bf16.mxu0 0
    %3432 = vmatpush1.bf16.msra.mxu0 0
    %3433 = vmatprep.subr.bf16.mxu0 0
    %3434 = vmatpush1.bf16.msra.mxu0 0
    %3435 = vmatprep.subr.bf16.mxu0 0
    %3436 = vmatpush1.bf16.msra.mxu0 0
    %3437 = vmatprep.subr.bf16.mxu0 0
    %3438 = vmatpush1.bf16.msra.mxu0 0
    %3439 = vmatprep.subr.bf16.mxu0 0
    %3440 = vmatpush1.bf16.msra.mxu0 0
    %3441 = vmatprep.subr.bf16.mxu0 0
    %3442 = vmatpush1.bf16.msra.mxu0 0
    %3443 = vmatprep.subr.bf16.mxu0 0
    %3444 = vmatpush1.bf16.msra.mxu0 0
    %3445 = vmatprep.subr.bf16.mxu0 0
    %3446 = vmatpush1.bf16.msra.mxu0 0
    %3447 = vmatprep.subr.bf16.mxu0 0
    %3448 = vmatpush1.bf16.msra.mxu0 0
    %3449 = vmatprep.subr.bf16.mxu0 0
    %3450 = vmatpush1.bf16.msra.mxu0 0
    %3451 = vmatprep.subr.bf16.mxu0 0
    %3452 = vmatpush1.bf16.msra.mxu0 0
    %3453 = vmatprep.subr.bf16.mxu0 0
    %3454 = vmatpush1.bf16.msra.mxu0 0
    %3455 = vmatprep.subr.bf16.mxu0 0
    %3456 = vmatpush1.bf16.msra.mxu0 0
    %3457 = vmatprep.subr.bf16.mxu0 0
    %3458 = vmatpush1.bf16.msra.mxu0 0
    %3459 = vmatprep.mubr.bf16.mxu0 0
    %3460 = vmatmul.mubr.bf16.gmra.mrb[0].mxu0 %v3425
    %v3461 = vpop.f32.mrb[0].mxu0
    %v3462 = vadd.f32 0.0, %v3461
    %v3463 = vpop.f32.mrb[0].mxu0
    %v3464 = vpop.f32.mrb[0].mxu0
    %v3465 = vadd.f32 0.0, %v3464
    %v3466 = vpop.f32.mrb[0].mxu0
    %3467 = vdwg.mxu0
    %3470 = vrot.lane.b32.xlu0 %v3362, 8
    %v3471 = vpop.permute.xlu0 %3470
    %3472 = vrot.lane.b32.xlu0 %v3365, 8
    %v3473 = vpop.permute.xlu0 %3472
    %3478 = vrot.lane.b32.xlu0 %v3412, 16
    %v3479 = vpop.permute.xlu0 %3478
    %3480 = vrot.lane.b32.xlu0 %v3415, 16
    %v3481 = vpop.permute.xlu0 %3480
    %3486 = vrot.lane.b32.xlu0 %v3462, 24
    %v3487 = vpop.permute.xlu0 %3486
    %3488 = vrot.lane.b32.xlu0 %v3465, 24
    %v3489 = vpop.permute.xlu0 %3488
    %v3492 = vsel %vm452, %v3312, %v3471
    %v3493 = vsel %vm452, %v3315, %v3473
    %v3494 = vsel %vm666, %v3492, %v3479
    %v3495 = vsel %vm666, %v3493, %v3481
    %v3496 = vsel %vm975, %v3494, %v3487
    %v3497 = vsel %vm975, %v3495, %v3489
    %v3498 = vpack.c.bf16 %v3497, %v3496
    %v3500 = vlaneseq
    %v3501 = vshrl.u32 %v3500, 7
    %v3502 = vsub.s32 0, %v3501
    %v3503 = vrot.slane %v2919, %v3502
    %v3509 = vunpack.c.l.b16 %v2914
    %v3510 = vunpack.c.l.b16 %v2915
    %v3511 = vunpack.c.l.b16 %v2916
    %v3512 = vunpack.c.l.b16 %v2917
    %v3513 = vpack.c.b16 %v3510, %v3509
    %v3514 = vpack.c.b16 %v3512, %v3511
    %v3518 = vsel %vm296, %v3498, 0
    %3520 = vmatprep.subr.bf16.mxu0 0
    %3521 = vmatpush1.bf16.msra.mxu0 %v3513
    %3522 = vmatprep.subr.bf16.mxu0 0
    %3523 = vmatpush1.bf16.msra.mxu0 %v3514
    %3524 = vmatprep.subr.bf16.mxu0 0
    %3525 = vmatpush1.bf16.msra.mxu0 0
    %3526 = vmatprep.subr.bf16.mxu0 0
    %3527 = vmatpush1.bf16.msra.mxu0 0
    %3528 = vmatprep.subr.bf16.mxu0 0
    %3529 = vmatpush1.bf16.msra.mxu0 0
    %3530 = vmatprep.subr.bf16.mxu0 0
    %3531 = vmatpush1.bf16.msra.mxu0 0
    %3532 = vmatprep.subr.bf16.mxu0 0
    %3533 = vmatpush1.bf16.msra.mxu0 0
    %3534 = vmatprep.subr.bf16.mxu0 0
    %3535 = vmatpush1.bf16.msra.mxu0 0
    %3536 = vmatprep.subr.bf16.mxu0 0
    %3537 = vmatpush1.bf16.msra.mxu0 0
    %3538 = vmatprep.subr.bf16.mxu0 0
    %3539 = vmatpush1.bf16.msra.mxu0 0
    %3540 = vmatprep.subr.bf16.mxu0 0
    %3541 = vmatpush1.bf16.msra.mxu0 0
    %3542 = vmatprep.subr.bf16.mxu0 0
    %3543 = vmatpush1.bf16.msra.mxu0 0
    %3544 = vmatprep.subr.bf16.mxu0 0
    %3545 = vmatpush1.bf16.msra.mxu0 0
    %3546 = vmatprep.subr.bf16.mxu0 0
    %3547 = vmatpush1.bf16.msra.mxu0 0
    %3548 = vmatprep.subr.bf16.mxu0 0
    %3549 = vmatpush1.bf16.msra.mxu0 0
    %3550 = vmatprep.subr.bf16.mxu0 0
    %3551 = vmatpush1.bf16.msra.mxu0 0
    %3552 = vmatprep.mubr.bf16.mxu0 0
    %3553 = vmatmul.mubr.bf16.gmra.mrb[0].mxu0 %v3518
    %v3554 = vpop.f32.mrb[0].mxu0
    %v3555 = vadd.f32 %v3503, %v3554
    %v3556 = vpop.f32.mrb[0].mxu0
    %v3557 = vpop.f32.mrb[0].mxu0
    %v3558 = vadd.f32 %v3503, %v3557
    %v3559 = vpop.f32.mrb[0].mxu0
    %3560 = vdwg.mxu0
    %v3561 = vadd.f32 %v2841, %v3555
    %v3562 = vadd.f32 %v2842, %v3558
    %s3563 = scalar_lea.vmem [#allocation13], 1
    %v3564 = vld [vmem:[%s3563] sm:$0x1]
    %s3565 = scalar_lea.vmem [#allocation14], 1
    %v3566 = vld [vmem:[%s3565] sm:$0x1]
    %v3567 = vsel %vm296, %v3561, 0.0
    %3568 = vadd.xlane.f32.xlu0 %v3567
    %v3569 = vpop.xlane.xlu0 %3568
    %v3570 = vsel %vm296, %v3562, 0.0
    %3571 = vadd.xlane.f32.xlu0 %v3570
    %v3572 = vpop.xlane.xlu0 %3571
    %v3573 = vmul.f32 %v3569, %v1051
    %v3574 = vmul.f32 %v3572, %v1051
    %v3575 = vmul.f32 %v3561, %v3561
    %v3576 = vmul.f32 %v3562, %v3562
    %v3577 = vsel %vm296, %v3575, 0.0
    %3578 = vadd.xlane.f32.xlu0 %v3577
    %v3579 = vpop.xlane.xlu0 %3578
    %v3580 = vsel %vm296, %v3576, 0.0
    %3581 = vadd.xlane.f32.xlu0 %v3580
    %v3582 = vpop.xlane.xlu0 %3581
    %v3583 = vmul.f32 %v3579, %v1051
    %v3584 = vmul.f32 %v3582, %v1051
    %v3585 = vmul.f32 %v3573, %v3573
    %v3586 = vmul.f32 %v3574, %v3574
    %v3587 = vsub.f32 %v3583, %v3585
    %v3588 = vsub.f32 %v3584, %v3586
    %v3589 = vsub.f32 %v3561, %v3573
    %v3590 = vsub.f32 %v3562, %v3574
    %v3591 = vadd.f32 %v3587, 1e-05
    %v3592 = vadd.f32 %v3588, 1e-05
    %v3593 = vrsqrt.pop %v3591
    %v3594 = vrsqrt.pop %v3592
    %v3595 = vmul.f32 %v3589, %v3593
    %v3596 = vmul.f32 %v3590, %v3594
    %v3598 = vlaneseq
    %v3599 = vshrl.u32 %v3598, 7
    %v3600 = vsub.s32 0, %v3599
    %v3601 = vrot.slane %v3564, %v3600
    %v3603 = vmul.f32 %v3595, %v3601
    %v3604 = vmul.f32 %v3596, %v3601
    %v3606 = vlaneseq
    %v3607 = vshrl.u32 %v3606, 7
    %v3608 = vsub.s32 0, %v3607
    %v3609 = vrot.slane %v3566, %v3608
    %v3611 = vadd.f32 %v3603, %v3609
    %v3612 = vadd.f32 %v3604, %v3609
    %v3613 = vpack.c.bf16 %v3612, %v3611
    %s3614 = scalar_lea.vmem %s21, 16
    %v3615 = vld [vmem:[%s3614] sm:$0xf]
    %v3616 = vld [vmem:[%s3614 + $0x4] sm:$0xf]
    %v3617 = vld [vmem:[%s3614 + $0x8] sm:$0xf]
    %v3618 = vld [vmem:[%s3614 + $0xc] sm:$0xf]
    %s3619 = scalar_lea.vmem [#allocation19], 1
    %v3620 = vld [vmem:[%s3619] sm:$0x1]
    %v3622 = vlaneseq
    %v3623 = vshrl.u32 %v3622, 7
    %v3624 = vsub.s32 0, %v3623
    %v3625 = vrot.slane %v3620, %v3624
    %v3631 = vunpack.c.l.b16 %v3615
    %v3632 = vunpack.c.l.b16 %v3616
    %v3633 = vunpack.c.l.b16 %v3617
    %v3634 = vunpack.c.l.b16 %v3618
    %v3635 = vpack.c.b16 %v3632, %v3631
    %v3636 = vpack.c.b16 %v3634, %v3633
    %v3640 = vsel %vm296, %v3613, 0
    %3642 = vmatprep.subr.bf16.mxu0 0
    %3643 = vmatpush1.bf16.msra.mxu0 %v3635
    %3644 = vmatprep.subr.bf16.mxu0 0
    %3645 = vmatpush1.bf16.msra.mxu0 %v3636
    %3646 = vmatprep.subr.bf16.mxu0 0
    %3647 = vmatpush1.bf16.msra.mxu0 0
    %3648 = vmatprep.subr.bf16.mxu0 0
    %3649 = vmatpush1.bf16.msra.mxu0 0
    %3650 = vmatprep.subr.bf16.mxu0 0
    %3651 = vmatpush1.bf16.msra.mxu0 0
    %3652 = vmatprep.subr.bf16.mxu0 0
    %3653 = vmatpush1.bf16.msra.mxu0 0
    %3654 = vmatprep.subr.bf16.mxu0 0
    %3655 = vmatpush1.bf16.msra.mxu0 0
    %3656 = vmatprep.subr.bf16.mxu0 0
    %3657 = vmatpush1.bf16.msra.mxu0 0
    %3658 = vmatprep.subr.bf16.mxu0 0
    %3659 = vmatpush1.bf16.msra.mxu0 0
    %3660 = vmatprep.subr.bf16.mxu0 0
    %3661 = vmatpush1.bf16.msra.mxu0 0
    %3662 = vmatprep.subr.bf16.mxu0 0
    %3663 = vmatpush1.bf16.msra.mxu0 0
    %3664 = vmatprep.subr.bf16.mxu0 0
    %3665 = vmatpush1.bf16.msra.mxu0 0
    %3666 = vmatprep.subr.bf16.mxu0 0
    %3667 = vmatpush1.bf16.msra.mxu0 0
    %3668 = vmatprep.subr.bf16.mxu0 0
    %3669 = vmatpush1.bf16.msra.mxu0 0
    %3670 = vmatprep.subr.bf16.mxu0 0
    %3671 = vmatpush1.bf16.msra.mxu0 0
    %3672 = vmatprep.subr.bf16.mxu0 0
    %3673 = vmatpush1.bf16.msra.mxu0 0
    %3674 = vmatprep.mubr.bf16.mxu0 0
    %3675 = vmatmul.mubr.bf16.gmra.mrb[0].mxu0 %v3640
    %v3676 = vpop.f32.mrb[0].mxu0
    %v3677 = vadd.f32 %v3625, %v3676
    %v3678 = vpop.f32.mrb[0].mxu0
    %v3679 = vpop.f32.mrb[0].mxu0
    %v3680 = vadd.f32 %v3625, %v3679
    %v3681 = vpop.f32.mrb[0].mxu0
    %3682 = vdwg.mxu0
    %v3683 = vmax.f32 %v3677, 0.0
    %v3684 = vmax.f32 %v3680, 0.0
    %v3685 = vpack.c.bf16 %v3684, %v3683
    %s3686 = scalar_lea.vmem %s23, 32
    %v3687 = vld [vmem:[%s3686] sm:$0xf]
    %v3688 = vld [vmem:[%s3686 + $0x4] sm:$0xf]
    %v3689 = vld [vmem:[%s3686 + $0x8] sm:$0xf]
    %v3690 = vld [vmem:[%s3686 + $0xc] sm:$0xf]
    %v3691 = vld [vmem:[%s3686 + $0x10] sm:$0xf]
    %v3692 = vld [vmem:[%s3686 + $0x14] sm:$0xf]
    %v3693 = vld [vmem:[%s3686 + $0x18] sm:$0xf]
    %v3694 = vld [vmem:[%s3686 + $0x1c] sm:$0xf]
    %s3695 = scalar_lea.vmem [#allocation20], 1
    %v3696 = vld [vmem:[%s3695] sm:$0x1]
    %v3698 = vlaneseq
    %v3699 = vshrl.u32 %v3698, 7
    %v3700 = vsub.s32 0, %v3699
    %v3701 = vrot.slane %v3696, %v3700
    %v3711 = vunpack.c.l.b16 %v3687
    %v3712 = vunpack.c.l.b16 %v3688
    %v3713 = vunpack.c.l.b16 %v3689
    %v3714 = vunpack.c.l.b16 %v3690
    %v3715 = vunpack.c.l.b16 %v3691
    %v3716 = vunpack.c.l.b16 %v3692
    %v3717 = vunpack.c.l.b16 %v3693
    %v3718 = vunpack.c.l.b16 %v3694
    %v3719 = vpack.c.b16 %v3712, %v3711
    %v3720 = vpack.c.b16 %v3714, %v3713
    %v3721 = vpack.c.b16 %v3716, %v3715
    %v3722 = vpack.c.b16 %v3718, %v3717
    %v3728 = vsel %vm2006, %v3685, 0
    %3730 = vmatprep.subr.bf16.mxu0 0
    %3731 = vmatpush1.bf16.msra.mxu0 %v3719
    %3732 = vmatprep.subr.bf16.mxu0 0
    %3733 = vmatpush1.bf16.msra.mxu0 %v3720
    %3734 = vmatprep.subr.bf16.mxu0 0
    %3735 = vmatpush1.bf16.msra.mxu0 %v3721
    %3736 = vmatprep.subr.bf16.mxu0 0
    %3737 = vmatpush1.bf16.msra.mxu0 %v3722
    %3738 = vmatprep.subr.bf16.mxu0 0
    %3739 = vmatpush1.bf16.msra.mxu0 0
    %3740 = vmatprep.subr.bf16.mxu0 0
    %3741 = vmatpush1.bf16.msra.mxu0 0
    %3742 = vmatprep.subr.bf16.mxu0 0
    %3743 = vmatpush1.bf16.msra.mxu0 0
    %3744 = vmatprep.subr.bf16.mxu0 0
    %3745 = vmatpush1.bf16.msra.mxu0 0
    %3746 = vmatprep.subr.bf16.mxu0 0
    %3747 = vmatpush1.bf16.msra.mxu0 0
    %3748 = vmatprep.subr.bf16.mxu0 0
    %3749 = vmatpush1.bf16.msra.mxu0 0
    %3750 = vmatprep.subr.bf16.mxu0 0
    %3751 = vmatpush1.bf16.msra.mxu0 0
    %3752 = vmatprep.subr.bf16.mxu0 0
    %3753 = vmatpush1.bf16.msra.mxu0 0
    %3754 = vmatprep.subr.bf16.mxu0 0
    %3755 = vmatpush1.bf16.msra.mxu0 0
    %3756 = vmatprep.subr.bf16.mxu0 0
    %3757 = vmatpush1.bf16.msra.mxu0 0
    %3758 = vmatprep.subr.bf16.mxu0 0
    %3759 = vmatpush1.bf16.msra.mxu0 0
    %3760 = vmatprep.subr.bf16.mxu0 0
    %3761 = vmatpush1.bf16.msra.mxu0 0
    %3762 = vmatprep.mubr.bf16.mxu0 0
    %3763 = vmatmul.mubr.bf16.gmra.mrb[0].mxu0 %v3728
    %v3764 = vpop.f32.mrb[0].mxu0
    %v3765 = vadd.f32 %v3701, %v3764
    %v3766 = vpop.f32.mrb[0].mxu0
    %v3767 = vpop.f32.mrb[0].mxu0
    %v3768 = vadd.f32 %v3701, %v3767
    %v3769 = vpop.f32.mrb[0].mxu0
    %3770 = vdwg.mxu0
    %v3771 = vadd.f32 %v3611, %v3765
    %v3772 = vadd.f32 %v3612, %v3768
    %s3773 = scalar_lea.vmem [#allocation16], 1
    %v3774 = vld [vmem:[%s3773] sm:$0x1]
    %s3775 = scalar_lea.vmem [#allocation17], 1
    %v3776 = vld [vmem:[%s3775] sm:$0x1]
    %v3777 = vsel %vm296, %v3771, 0.0
    %3778 = vadd.xlane.f32.xlu0 %v3777
    %v3779 = vpop.xlane.xlu0 %3778
    %v3780 = vsel %vm296, %v3772, 0.0
    %3781 = vadd.xlane.f32.xlu0 %v3780
    %v3782 = vpop.xlane.xlu0 %3781
    %v3783 = vmul.f32 %v3779, %v1051
    %v3784 = vmul.f32 %v3782, %v1051
    %v3785 = vmul.f32 %v3771, %v3771
    %v3786 = vmul.f32 %v3772, %v3772
    %v3787 = vsel %vm296, %v3785, 0.0
    %3788 = vadd.xlane.f32.xlu0 %v3787
    %v3789 = vpop.xlane.xlu0 %3788
    %v3790 = vsel %vm296, %v3786, 0.0
    %3791 = vadd.xlane.f32.xlu0 %v3790
    %v3792 = vpop.xlane.xlu0 %3791
    %v3793 = vmul.f32 %v3789, %v1051
    %v3794 = vmul.f32 %v3792, %v1051
    %v3795 = vmul.f32 %v3783, %v3783
    %v3796 = vmul.f32 %v3784, %v3784
    %v3797 = vsub.f32 %v3793, %v3795
    %v3798 = vsub.f32 %v3794, %v3796
    %v3799 = vsub.f32 %v3771, %v3783
    %v3800 = vsub.f32 %v3772, %v3784
    %v3801 = vadd.f32 %v3797, 1e-05
    %v3802 = vadd.f32 %v3798, 1e-05
    %v3803 = vrsqrt.pop %v3801
    %v3804 = vrsqrt.pop %v3802
    %v3805 = vmul.f32 %v3799, %v3803
    %v3806 = vmul.f32 %v3800, %v3804
    %v3808 = vlaneseq
    %v3809 = vshrl.u32 %v3808, 7
    %v3810 = vsub.s32 0, %v3809
    %v3811 = vrot.slane %v3774, %v3810
    %v3813 = vmul.f32 %v3805, %v3811
    %v3814 = vmul.f32 %v3806, %v3811
    %v3816 = vlaneseq
    %v3817 = vshrl.u32 %v3816, 7
    %v3818 = vsub.s32 0, %v3817
    %v3819 = vrot.slane %v3776, %v3818
    %v3821 = vadd.f32 %v3813, %v3819
    %v3822 = vadd.f32 %v3814, %v3819
    %v3823 = vpack.c.bf16 %v3822, %v3821
    %v3824 = vld [vmem:[%s25] sm:$0xf]
    %v3825 = vld [vmem:[%s25 + $0x4] sm:$0xf]
    %v3826 = vld [vmem:[%s25 + $0x8] sm:$0xf]
    %v3827 = vld [vmem:[%s25 + $0xc] sm:$0xf]
    %v3828 = vld [vmem:[#allocation22] sm:$0x1]
    %v3830 = vlaneseq
    %v3831 = vshrl.u32 %v3830, 7
    %v3832 = vsub.s32 0, %v3831
    %v3833 = vrot.slane %v3828, %v3832
    %v3839 = vunpack.c.l.b16 %v3824
    %v3840 = vunpack.c.l.b16 %v3825
    %v3841 = vunpack.c.l.b16 %v3826
    %v3842 = vunpack.c.l.b16 %v3827
    %v3843 = vpack.c.b16 %v3840, %v3839
    %v3844 = vpack.c.b16 %v3842, %v3841
    %v3848 = vsel %vm296, %v3823, 0
    %3850 = vmatprep.subr.bf16.mxu0 0
    %3851 = vmatpush1.bf16.msra.mxu0 %v3843
    %3852 = vmatprep.subr.bf16.mxu0 0
    %3853 = vmatpush1.bf16.msra.mxu0 %v3844
    %3854 = vmatprep.subr.bf16.mxu0 0
    %3855 = vmatpush1.bf16.msra.mxu0 0
    %3856 = vmatprep.subr.bf16.mxu0 0
    %3857 = vmatpush1.bf16.msra.mxu0 0
    %3858 = vmatprep.subr.bf16.mxu0 0
    %3859 = vmatpush1.bf16.msra.mxu0 0
    %3860 = vmatprep.subr.bf16.mxu0 0
    %3861 = vmatpush1.bf16.msra.mxu0 0
    %3862 = vmatprep.subr.bf16.mxu0 0
    %3863 = vmatpush1.bf16.msra.mxu0 0
    %3864 = vmatprep.subr.bf16.mxu0 0
    %3865 = vmatpush1.bf16.msra.mxu0 0
    %3866 = vmatprep.subr.bf16.mxu0 0
    %3867 = vmatpush1.bf16.msra.mxu0 0
    %3868 = vmatprep.subr.bf16.mxu0 0
    %3869 = vmatpush1.bf16.msra.mxu0 0
    %3870 = vmatprep.subr.bf16.mxu0 0
    %3871 = vmatpush1.bf16.msra.mxu0 0
    %3872 = vmatprep.subr.bf16.mxu0 0
    %3873 = vmatpush1.bf16.msra.mxu0 0
    %3874 = vmatprep.subr.bf16.mxu0 0
    %3875 = vmatpush1.bf16.msra.mxu0 0
    %3876 = vmatprep.subr.bf16.mxu0 0
    %3877 = vmatpush1.bf16.msra.mxu0 0
    %3878 = vmatprep.subr.bf16.mxu0 0
    %3879 = vmatpush1.bf16.msra.mxu0 0
    %3880 = vmatprep.subr.bf16.mxu0 0
    %3881 = vmatpush1.bf16.msra.mxu0 0
    %3882 = vmatprep.mubr.bf16.mxu0 0
    %3883 = vmatmul.mubr.bf16.gmra.mrb[0].mxu0 %v3848
    %v3884 = vpop.f32.mrb[0].mxu0
    %v3885 = vadd.f32 %v3833, %v3884
    %v3886 = vpop.f32.mrb[0].mxu0
    %v3887 = vpop.f32.mrb[0].mxu0
    %v3888 = vadd.f32 %v3833, %v3887
    %v3889 = vpop.f32.mrb[0].mxu0
    %3890 = vdwg.mxu0
    %3891 = vst [vmem:[#allocation23] sm:$0xff] %v3885
    %3892 = vst [vmem:[#allocation23 + $0x8] sm:$0xff] %v3888
    // Predicated region
    $region162: #{transformer_decoder_forward.1} parent=1 // pred_check
      _
    $region163: #{transformer_decoder_forward.1} parent=1 // pred_check_branch
      %3894 = sbr.rel (0) target = $region165
    $region164: #{transformer_decoder_forward.1} parent=1 // pred_region
      %s3896 = ssub.s32 256, 256
      %3897 = vsyncadd [#allocation4], %s3896
      %s3898 = sshll.u32 [#allocation23], 4
      %s3899 = int_to_ptr.vmem [resolvable:$true] %s3898
      %3904 = dma.vmem_to_hbm [thread:$0]  %s3899, 256, %s27, [#allocation4], 128, 128, 8
    $region165: #{transformer_decoder_forward.1} parent=1 // pred_fallthru
      _
    // Predicated region
    $region166: #{transformer_decoder_forward.1} parent=1 // pred_check
      _
    $region167: #{transformer_decoder_forward.1} parent=1 // pred_check_branch
      %3906 = sbr.rel (0) target = $region169
    $region168: #{transformer_decoder_forward.1} parent=1 // pred_region
      %3907 = dma.done [#allocation4], 256
    $region169: #{transformer_decoder_forward.1} parent=1 // pred_fallthru
      _
    %3908 = vsyncpa [#allocation3], 1
    %3909 = vsyncpa [#allocation6], 1
    %3910 = vsyncpa [#allocation9], 1
    %3911 = vsyncpa [#allocation12], 1
    %3912 = vsyncpa [#allocation15], 1
    %3913 = vsyncpa [#allocation18], 1
    %3914 = vsyncpa [#allocation21], 1
    %3915 = vsyncpa [#allocation4], 1

</llo_original>
